<compile_context>
chip_gen: v5e
topology: v5e:2x2
jax: 0.10.0
libtpu: 0.0.40
codegen_flags: <defaults>
</compile_context>

<pallas_src>
import jax
import jax.numpy as jnp
from jax.experimental import pallas as pl
from jax.experimental.pallas import tpu as pltpu

N_FEATURES = 784
DIMS = [(784, 1024), (1024, 512), (512, 256), (256, 1)]


def _leaky_relu(x, slope=0.2):
    # max(x, 0.2*x) == LeakyReLU(0.2); one VALU max instead of cmp+select.
    return jnp.maximum(x, slope * x)


def discriminator_kernel(x_ref,
                         w0_ref, b0_ref,
                         w1_ref, b1_ref,
                         w2_ref, b2_ref,
                         w3_ref, b3_ref,
                         o_ref):
    # Cast the streamed f32 batch tile to bf16 for the MXU.
    x = x_ref[...].astype(jnp.bfloat16)                       # (tb, 784)

    # hidden0: Linear(784->1024) + LeakyReLU(0.2)   (Dropout = identity)
    h = jnp.dot(x, w0_ref[...], preferred_element_type=jnp.float32)
    h = _leaky_relu(h.astype(jnp.bfloat16) + b0_ref[...])     # bf16 epilogue

    # hidden1: Linear(1024->512) + LeakyReLU(0.2)
    h = jnp.dot(h, w1_ref[...], preferred_element_type=jnp.float32)
    h = _leaky_relu(h.astype(jnp.bfloat16) + b1_ref[...])

    # hidden2: Linear(512->256) + LeakyReLU(0.2)
    h = jnp.dot(h, w2_ref[...], preferred_element_type=jnp.float32)
    h = _leaky_relu(h.astype(jnp.bfloat16) + b2_ref[...])     # (tb, 256) bf16

    # out: Linear(256->1) + Sigmoid.  N=1 matmul wastes the MXU; do it as a
    # broadcast-multiply + lane reduction (f32) instead.
    z = jnp.sum(h.astype(jnp.float32) * w3_ref[...], axis=-1, keepdims=True)
    z = z + b3_ref[...]
    z = jnp.clip(z, -30.0, 30.0)  # avoid inf in exp; sigmoid saturated anyway
    o_ref[...] = (pl.reciprocal(1.0 + jnp.exp(-z), approx=True)
                  ).astype(o_ref.dtype)


def discriminator_forward(x, kparams, *, tb=512):
    """x: [B, 784] float32. kparams: kernel-ready params (see prepare_params)."""
    B, F = x.shape
    assert F == N_FEATURES, F

    # Tile selection: big tiles amortize per-grid-step overhead, but keep the
    # grid length >= 2 when the batch allows it (v7x has 2 TensorCores sharing
    # the "parallel" axis).  tb must be a multiple of 8 or equal to B.
    if B >= 2 * tb:
        tb_eff = tb
    elif B >= 16:
        tb_eff = max(8, ((B // 2) // 8) * 8)
    else:
        tb_eff = B
    grid = (pl.cdiv(B, tb_eff),)

    def resident(shape):
        # Full-array block, same block index every grid step -> stays in VMEM
        # (no re-fetch across batch tiles).
        return pl.BlockSpec(shape, lambda i: (0, 0))

    in_specs = [
        pl.BlockSpec((tb_eff, N_FEATURES), lambda i: (i, 0)),  # x: streamed tiles
        resident((N_FEATURES, 1024)), resident((1, 1024)),
        resident((1024, 512)),        resident((1, 512)),
        resident((512, 256)),         resident((1, 256)),
        resident((1, 256)),           resident((1, 1)),
    ]
    out_spec = pl.BlockSpec((tb_eff, 1), lambda i: (i, 0))

    flops = 2 * B * sum(fi * fo for fi, fo in DIMS)
    weight_bytes = sum(fi * fo * 2 for fi, fo in DIMS)
    cost = pl.CostEstimate(
        flops=flops,
        transcendentals=B,
        bytes_accessed=B * N_FEATURES * 4 + weight_bytes + B * 4,
    )

    out = pl.pallas_call(
        discriminator_kernel,
        out_shape=jax.ShapeDtypeStruct((B, 1), jnp.float32),
        grid=grid,
        in_specs=in_specs,
        out_specs=out_spec,
        compiler_params=pltpu.CompilerParams(
            dimension_semantics=("parallel",),
            vmem_limit_bytes=40 << 20,
        ),
        cost_estimate=cost,
    )(x,
      kparams["w0"], kparams["b0"],
      kparams["w1"], kparams["b1"],
      kparams["w2"], kparams["b2"],
      kparams["w3"], kparams["b3"])
    return out


def init_params(key):
    """PyTorch-Linear-style init: U(-1/sqrt(fan_in), 1/sqrt(fan_in)).
    Weights stored as [in, out] (PyTorch stores [out, in]); biases as [1, out]."""
    params = {}
    keys = jax.random.split(key, 2 * len(DIMS))
    for i, (fin, fout) in enumerate(DIMS):
        bound = 1.0 / (fin ** 0.5)
        params[f"w{i}"] = jax.random.uniform(
            keys[2 * i], (fin, fout), jnp.float32, minval=-bound, maxval=bound)
        params[f"b{i}"] = jax.random.uniform(
            keys[2 * i + 1], (1, fout), jnp.float32, minval=-bound, maxval=bound)
    return params


def prepare_params(params):
    """Convert f32 [in,out] params to kernel layout:
       - hidden weights + biases in bf16 (bf16 MXU inputs, bf16 VPU epilogue)
       - w3 stored as an f32 [1, 256] row (used by the f32 VPU reduction)
       - b3 kept f32 for the f32 logit path."""
    return {
        "w0": params["w0"].astype(jnp.bfloat16),     # (784, 1024)
        "w1": params["w1"].astype(jnp.bfloat16),     # (1024, 512)
        "w2": params["w2"].astype(jnp.bfloat16),     # (512, 256)
        "w3": params["w3"].T,                        # (256,1) -> (1,256) f32
        "b0": params["b0"].astype(jnp.bfloat16),
        "b1": params["b1"].astype(jnp.bfloat16),
        "b2": params["b2"].astype(jnp.bfloat16),
        "b3": params["b3"],                          # (1, 1) f32
    }


def reference_forward(x, params):
    """Pure-JAX f32 reference for sanity checking."""
    h = x
    for i in range(3):
        h = h @ params[f"w{i}"] + params[f"b{i}"]
        h = jnp.where(h > 0, h, 0.2 * h)
    z = h @ params["w3"] + params["b3"]
    return jax.nn.sigmoid(z)


if __name__ == "__main__":
    key = jax.random.PRNGKey(0)
    pkey, xkey = jax.random.split(key)
    params = init_params(pkey)
    kparams = prepare_params(params)

    B = 8
    x = jax.random.normal(xkey, (B, 784), jnp.float32)

    out = discriminator_forward(x, kparams)
    out = jax.block_until_ready(out)

    ref = reference_forward(x, params)
    assert out.shape == (B, 1), out.shape
    # bf16 weights/epilogue + approx reciprocal vs. f32 reference -> loose tol
    # (outputs are sigmoid probabilities in [0, 1]).
    assert jnp.allclose(out, ref, atol=2e-2, rtol=0.0), (out, ref)

    print("KERNEL_OK")
</pallas_src>

<mosaic_0001>
module attributes {stable_mosaic.version = 11 : i64} {
  func.func @discriminator_kernel(%arg0: i32, %arg1: memref<8x784xf32, #tpu.memory_space<vmem>>, %arg2: memref<784x1024xbf16, #tpu.memory_space<vmem>>, %arg3: memref<1x1024xbf16, #tpu.memory_space<vmem>>, %arg4: memref<1024x512xbf16, #tpu.memory_space<vmem>>, %arg5: memref<1x512xbf16, #tpu.memory_space<vmem>>, %arg6: memref<512x256xbf16, #tpu.memory_space<vmem>>, %arg7: memref<1x256xbf16, #tpu.memory_space<vmem>>, %arg8: memref<1x256xf32, #tpu.memory_space<vmem>>, %arg9: memref<1x1xf32, #tpu.memory_space<vmem>>, %arg10: memref<8x1xf32, #tpu.memory_space<vmem>>) attributes {dimension_semantics = [#tpu.dimension_semantics<parallel>], iteration_bounds = array<i64: 1>, scalar_prefetch = 0 : i64, scratch_operands = 0 : i64, tpu.core_type = #tpu.core_type<tc>, window_params = [{transform_indices = @transform_0, window_bounds = array<i64: 8, 784>}, {pipeline_mode = #tpu.pipeline_mode<synchronous>, transform_indices = @transform_1, window_bounds = array<i64: 784, 1024>}, {pipeline_mode = #tpu.pipeline_mode<synchronous>, transform_indices = @transform_2, window_bounds = array<i64: 1, 1024>}, {pipeline_mode = #tpu.pipeline_mode<synchronous>, transform_indices = @transform_3, window_bounds = array<i64: 1024, 512>}, {pipeline_mode = #tpu.pipeline_mode<synchronous>, transform_indices = @transform_4, window_bounds = array<i64: 1, 512>}, {pipeline_mode = #tpu.pipeline_mode<synchronous>, transform_indices = @transform_5, window_bounds = array<i64: 512, 256>}, {pipeline_mode = #tpu.pipeline_mode<synchronous>, transform_indices = @transform_6, window_bounds = array<i64: 1, 256>}, {pipeline_mode = #tpu.pipeline_mode<synchronous>, transform_indices = @transform_7, window_bounds = array<i64: 1, 256>}, {pipeline_mode = #tpu.pipeline_mode<synchronous>, transform_indices = @transform_8, window_bounds = array<i64: 1, 1>}, {transform_indices = @transform_9, window_bounds = array<i64: 8, 1>}]} {
    %c0 = arith.constant 0 : index
    %c0_0 = arith.constant 0 : index
    %0 = vector.load %arg1[%c0, %c0_0] : memref<8x784xf32, #tpu.memory_space<vmem>>, vector<8x784xf32>
    %1 = arith.truncf %0 : vector<8x784xf32> to vector<8x784xbf16>
    %c0_1 = arith.constant 0 : index
    %c0_2 = arith.constant 0 : index
    %2 = vector.load %arg2[%c0_1, %c0_2] : memref<784x1024xbf16, #tpu.memory_space<vmem>>, vector<784x1024xbf16>
    %cst = arith.constant dense<0.000000e+00> : vector<8x1024xf32>
    %3 = tpu.matmul %1, %2, %cst {dimension_numbers = #tpu.dot_dimension_numbers<[1], [0], [0], [1], [0, 0, 1, 1], [], []>} : vector<8x784xbf16>, vector<784x1024xbf16>, vector<8x1024xf32> -> vector<8x1024xf32>
    %4 = arith.truncf %3 : vector<8x1024xf32> to vector<8x1024xbf16>
    %c0_3 = arith.constant 0 : index
    %c0_4 = arith.constant 0 : index
    %5 = vector.load %arg3[%c0_3, %c0_4] : memref<1x1024xbf16, #tpu.memory_space<vmem>>, vector<1x1024xbf16>
    %6 = vector.broadcast %5 : vector<1x1024xbf16> to vector<8x1024xbf16>
    %7 = arith.addf %4, %6 : vector<8x1024xbf16>
    %cst_5 = arith.constant 2.001950e-01 : bf16
    %8 = vector.broadcast %cst_5 : bf16 to vector<8x1024xbf16>
    %9 = arith.mulf %8, %7 : vector<8x1024xbf16>
    %10 = arith.maximumf %7, %9 : vector<8x1024xbf16>
    %c0_6 = arith.constant 0 : index
    %c0_7 = arith.constant 0 : index
    %11 = vector.load %arg4[%c0_6, %c0_7] : memref<1024x512xbf16, #tpu.memory_space<vmem>>, vector<1024x512xbf16>
    %cst_8 = arith.constant dense<0.000000e+00> : vector<8x512xf32>
    %12 = tpu.matmul %10, %11, %cst_8 {dimension_numbers = #tpu.dot_dimension_numbers<[1], [0], [0], [1], [0, 0, 1, 1], [], []>} : vector<8x1024xbf16>, vector<1024x512xbf16>, vector<8x512xf32> -> vector<8x512xf32>
    %13 = arith.truncf %12 : vector<8x512xf32> to vector<8x512xbf16>
    %c0_9 = arith.constant 0 : index
    %c0_10 = arith.constant 0 : index
    %14 = vector.load %arg5[%c0_9, %c0_10] : memref<1x512xbf16, #tpu.memory_space<vmem>>, vector<1x512xbf16>
    %15 = vector.broadcast %14 : vector<1x512xbf16> to vector<8x512xbf16>
    %16 = arith.addf %13, %15 : vector<8x512xbf16>
    %cst_11 = arith.constant 2.001950e-01 : bf16
    %17 = vector.broadcast %cst_11 : bf16 to vector<8x512xbf16>
    %18 = arith.mulf %17, %16 : vector<8x512xbf16>
    %19 = arith.maximumf %16, %18 : vector<8x512xbf16>
    %c0_12 = arith.constant 0 : index
    %c0_13 = arith.constant 0 : index
    %20 = vector.load %arg6[%c0_12, %c0_13] : memref<512x256xbf16, #tpu.memory_space<vmem>>, vector<512x256xbf16>
    %cst_14 = arith.constant dense<0.000000e+00> : vector<8x256xf32>
    %21 = tpu.matmul %19, %20, %cst_14 {dimension_numbers = #tpu.dot_dimension_numbers<[1], [0], [0], [1], [0, 0, 1, 1], [], []>} : vector<8x512xbf16>, vector<512x256xbf16>, vector<8x256xf32> -> vector<8x256xf32>
    %22 = arith.truncf %21 : vector<8x256xf32> to vector<8x256xbf16>
    %c0_15 = arith.constant 0 : index
    %c0_16 = arith.constant 0 : index
    %23 = vector.load %arg7[%c0_15, %c0_16] : memref<1x256xbf16, #tpu.memory_space<vmem>>, vector<1x256xbf16>
    %24 = vector.broadcast %23 : vector<1x256xbf16> to vector<8x256xbf16>
    %25 = arith.addf %22, %24 : vector<8x256xbf16>
    %cst_17 = arith.constant 2.001950e-01 : bf16
    %26 = vector.broadcast %cst_17 : bf16 to vector<8x256xbf16>
    %27 = arith.mulf %26, %25 : vector<8x256xbf16>
    %28 = arith.maximumf %25, %27 : vector<8x256xbf16>
    %29 = arith.extf %28 : vector<8x256xbf16> to vector<8x256xf32>
    %c0_18 = arith.constant 0 : index
    %c0_19 = arith.constant 0 : index
    %30 = vector.load %arg8[%c0_18, %c0_19] : memref<1x256xf32, #tpu.memory_space<vmem>>, vector<1x256xf32>
    %31 = vector.broadcast %30 : vector<1x256xf32> to vector<8x256xf32>
    %32 = arith.mulf %29, %31 : vector<8x256xf32>
    %cst_20 = arith.constant dense<0.000000e+00> : vector<8xf32>
    %33 = vector.multi_reduction <add>, %32, %cst_20 [1] : vector<8x256xf32> to vector<8xf32>
    %34 = vector.shape_cast %33 : vector<8xf32> to vector<8x1xf32>
    %c0_21 = arith.constant 0 : index
    %c0_22 = arith.constant 0 : index
    %35 = vector.load %arg9[%c0_21, %c0_22] : memref<1x1xf32, #tpu.memory_space<vmem>>, vector<1x1xf32>
    %36 = vector.broadcast %35 : vector<1x1xf32> to vector<8x1xf32>
    %37 = arith.addf %34, %36 : vector<8x1xf32>
    %cst_23 = arith.constant -3.000000e+01 : f32
    %cst_24 = arith.constant 3.000000e+01 : f32
    %38 = vector.broadcast %cst_23 : f32 to vector<8x1xf32>
    %39 = arith.maximumf %38, %37 : vector<8x1xf32>
    %40 = vector.broadcast %cst_24 : f32 to vector<8x1xf32>
    %41 = arith.minimumf %40, %39 : vector<8x1xf32>
    %cst_25 = arith.constant 0.000000e+00 : f32
    %42 = vector.broadcast %cst_25 : f32 to vector<8x1xf32>
    %43 = arith.subf %42, %41 : vector<8x1xf32>
    %44 = math.exp %43 : vector<8x1xf32>
    %cst_26 = arith.constant 1.000000e+00 : f32
    %45 = vector.broadcast %cst_26 : f32 to vector<8x1xf32>
    %46 = arith.addf %45, %44 : vector<8x1xf32>
    %47 = tpu.reciprocal %46 {approx = true} : vector<8x1xf32> -> vector<8x1xf32>
    %c0_27 = arith.constant 0 : index
    %c0_28 = arith.constant 0 : index
    %48 = vector.load %arg10[%c0_27, %c0_28] : memref<8x1xf32, #tpu.memory_space<vmem>>, vector<8x1xf32>
    tpu.vector_store %arg10[%c0_27, %c0_28], %47 {strides = array<i32>} : memref<8x1xf32, #tpu.memory_space<vmem>>, vector<8x1xf32>,
    return
  }
  func.func @transform_0(%arg0: i32) -> (i32, i32) {
    %c0_i32 = arith.constant 0 : i32
    %c0_i32_0 = arith.constant 0 : i32
    return %arg0, %c0_i32 : i32, i32
  }
  func.func @transform_1(%arg0: i32) -> (i32, i32) {
    %c0_i32 = arith.constant 0 : i32
    %c0_i32_0 = arith.constant 0 : i32
    %c0_i32_1 = arith.constant 0 : i32
    return %c0_i32, %c0_i32_0 : i32, i32
  }
  func.func @transform_2(%arg0: i32) -> (i32, i32) {
    %c0_i32 = arith.constant 0 : i32
    %c0_i32_0 = arith.constant 0 : i32
    %c0_i32_1 = arith.constant 0 : i32
    return %c0_i32, %c0_i32_0 : i32, i32
  }
  func.func @transform_3(%arg0: i32) -> (i32, i32) {
    %c0_i32 = arith.constant 0 : i32
    %c0_i32_0 = arith.constant 0 : i32
    %c0_i32_1 = arith.constant 0 : i32
    return %c0_i32, %c0_i32_0 : i32, i32
  }
  func.func @transform_4(%arg0: i32) -> (i32, i32) {
    %c0_i32 = arith.constant 0 : i32
    %c0_i32_0 = arith.constant 0 : i32
    %c0_i32_1 = arith.constant 0 : i32
    return %c0_i32, %c0_i32_0 : i32, i32
  }
  func.func @transform_5(%arg0: i32) -> (i32, i32) {
    %c0_i32 = arith.constant 0 : i32
    %c0_i32_0 = arith.constant 0 : i32
    %c0_i32_1 = arith.constant 0 : i32
    return %c0_i32, %c0_i32_0 : i32, i32
  }
  func.func @transform_6(%arg0: i32) -> (i32, i32) {
    %c0_i32 = arith.constant 0 : i32
    %c0_i32_0 = arith.constant 0 : i32
    %c0_i32_1 = arith.constant 0 : i32
    return %c0_i32, %c0_i32_0 : i32, i32
  }
  func.func @transform_7(%arg0: i32) -> (i32, i32) {
    %c0_i32 = arith.constant 0 : i32
    %c0_i32_0 = arith.constant 0 : i32
    %c0_i32_1 = arith.constant 0 : i32
    return %c0_i32, %c0_i32_0 : i32, i32
  }
  func.func @transform_8(%arg0: i32) -> (i32, i32) {
    %c0_i32 = arith.constant 0 : i32
    %c0_i32_0 = arith.constant 0 : i32
    %c0_i32_1 = arith.constant 0 : i32
    return %c0_i32, %c0_i32_0 : i32, i32
  }
  func.func @transform_9(%arg0: i32) -> (i32, i32) {
    %c0_i32 = arith.constant 0 : i32
    %c0_i32_0 = arith.constant 0 : i32
    return %arg0, %c0_i32 : i32, i32
  }
}

</mosaic_0001>

<llo_original>
// kernel: tpu_custom_call.1
$region0: #{tpu_custom_call.1}
  #allocation0 [shape = 'u32[]', space=smem, size = 0x4, offset = 0x4, fixed_abs, tag = 'smem constant byte address 0x4 - core index']
  #allocation1 [shape = 'u32[72,128]{1,0:T(1,128)}', space=vmem, size = 0x9000, scoped, tag = 'internal scratch']
  #allocation2 [shape = 'f32[1,1]{1,0:T(1,128)S(1)}', space=vmem, size = 0x200, scoped, tag = 'scoped memory for tpu_custom_call.1']
  %s0 = inlined_call_operand.hbm [shape: f32[8,784], index: 0, kind: input, shape index: {}]
  %s1 = inlined_call_operand.hbm [shape: bf16[784,1024], index: 1, kind: input, shape index: {}]
  %s2 = inlined_call_operand.hbm [shape: bf16[1,1024], index: 2, kind: input, shape index: {}]
  %s3 = inlined_call_operand.hbm [shape: bf16[1024,512], index: 3, kind: input, shape index: {}]
  %s4 = inlined_call_operand.hbm [shape: bf16[1,512], index: 4, kind: input, shape index: {}]
  %s5 = inlined_call_operand.hbm [shape: bf16[512,256], index: 5, kind: input, shape index: {}]
  %s6 = inlined_call_operand.hbm [shape: bf16[1,256], index: 6, kind: input, shape index: {}]
  %s7 = inlined_call_operand.hbm [shape: f32[1,256], index: 7, kind: input, shape index: {}]
  %s8 = inlined_call_operand.<no memory space> [shape: f32[1,1], index: 8, kind: input, shape index: {}]
  %s9 = inlined_call_operand.vmem [shape: f32[8,1], index: 9, kind: output, shape index: {}]
  %s10 = sld [smem:[#allocation0]]
  $region78: #{tpu_custom_call.1} parent=0
    _
  %s12 = ssub.s32 1, %s10
  %s13 = scalar_select 0, %s12, %s10
  %v14 = vstv %s8
  %15 = vst [vmem:[#allocation2] sm:$0x1] %v14
  $region1: #{tpu_custom_call.1} parent=0
    #allocation3 [shape = 'u8[28672]{0}', space=vmem, size = 0x7000, scoped, tag = 'input window, operand 0, single buffered']
    #allocation4 [shape = 's32[1]{0}', space=sflag, size = 0x4, scoped, tag = 'scoped memory for tpu_custom_call.1']
    #allocation5 [shape = 'u8[1605632]{0}', space=vmem, size = 0x188000, scoped, tag = 'input window, operand 1, single buffered']
    #allocation6 [shape = 's32[1]{0}', space=sflag, size = 0x4, scoped, tag = 'scoped memory for tpu_custom_call.1']
    #allocation7 [shape = 'u8[4096]{0}', space=vmem, size = 0x1000, scoped, tag = 'input window, operand 2, single buffered']
    #allocation8 [shape = 'u8[1048576]{0}', space=vmem, size = 0x100000, scoped, tag = 'input window, operand 3, single buffered']
    #allocation9 [shape = 's32[1]{0}', space=sflag, size = 0x4, scoped, tag = 'scoped memory for tpu_custom_call.1']
    #allocation10 [shape = 'u8[2048]{0}', space=vmem, size = 0x800, scoped, tag = 'input window, operand 4, single buffered']
    #allocation11 [shape = 'u8[262144]{0}', space=vmem, size = 0x40000, scoped, tag = 'input window, operand 5, single buffered']
    #allocation12 [shape = 's32[1]{0}', space=sflag, size = 0x4, scoped, tag = 'scoped memory for tpu_custom_call.1']
    #allocation13 [shape = 'u8[1024]{0}', space=vmem, size = 0x400, scoped, tag = 'input window, operand 6, single buffered']
    #allocation14 [shape = 'u8[1024]{0}', space=vmem, size = 0x400, scoped, tag = 'input window, operand 7, single buffered']
    #allocation15 [shape = 's32[1]{0}', space=sflag, size = 0x4, scoped, tag = 'scoped memory for tpu_custom_call.1']
    %16 = vsyncpa [#allocation4], 0
    %17 = vsyncpa [#allocation6], 0
    %18 = vsyncpa [#allocation9], 0
    %19 = vsyncpa [#allocation12], 0
    %20 = vsyncpa [#allocation15], 0
    // Predicated region
    $region2: #{tpu_custom_call.1} parent=1 // pred_check
      _
    $region3: #{tpu_custom_call.1} parent=1 // pred_check_branch
      %22 = sbr.rel (0) target = $region5
    $region4: #{tpu_custom_call.1} parent=1 // pred_region
      %24 = vsyncadd [#allocation4], 0
      %s26 = sshll.u32 %s0, 4
      %s27 = int_to_ptr.hbm [resolvable:$true] %s26
      %s28 = sshll.u32 [#allocation3], 4
      %s29 = int_to_ptr.vmem [resolvable:$true] %s28
      %31 = dma.hbm_to_vmem [thread:$0]  %s27, 896, %s29, [#allocation4]
    $region5: #{tpu_custom_call.1} parent=1 // pred_fallthru
      _
    // Predicated region
    $region6: #{tpu_custom_call.1} parent=1 // pred_check
      _
    $region7: #{tpu_custom_call.1} parent=1 // pred_check_branch
      %33 = sbr.rel (0) target = $region9
    $region8: #{tpu_custom_call.1} parent=1 // pred_region
      %35 = vsyncadd [#allocation6], 0
      %s36 = sshll.u32 %s1, 4
      %s37 = int_to_ptr.hbm [resolvable:$true] %s36
      %s38 = sshll.u32 [#allocation5], 4
      %s39 = int_to_ptr.vmem [resolvable:$true] %s38
      %44 = dma.hbm_to_vmem [thread:$0]  %s37, 50176, %s39, [#allocation6], 512, 512, 32
    $region9: #{tpu_custom_call.1} parent=1 // pred_fallthru
      _
    // Predicated region
    $region10: #{tpu_custom_call.1} parent=1 // pred_check
      _
    $region11: #{tpu_custom_call.1} parent=1 // pred_check_branch
      %46 = sbr.rel (0) target = $region13
    $region12: #{tpu_custom_call.1} parent=1 // pred_region
      %48 = vsyncadd [#allocation6], 0
      %s50 = sshll.u32 %s2, 4
      %s51 = int_to_ptr.hbm [resolvable:$true] %s50
      %s52 = sshll.u32 [#allocation7], 4
      %s53 = int_to_ptr.vmem [resolvable:$true] %s52
      %55 = dma.hbm_to_vmem [thread:$0]  %s51, 128, %s53, [#allocation6]
    $region13: #{tpu_custom_call.1} parent=1 // pred_fallthru
      _
    // Predicated region
    $region14: #{tpu_custom_call.1} parent=1 // pred_check
      _
    $region15: #{tpu_custom_call.1} parent=1 // pred_check_branch
      %57 = sbr.rel (0) target = $region17
    $region16: #{tpu_custom_call.1} parent=1 // pred_region
      %59 = vsyncadd [#allocation9], 0
      %s60 = sshll.u32 %s3, 4
      %s61 = int_to_ptr.hbm [resolvable:$true] %s60
      %s62 = sshll.u32 [#allocation8], 4
      %s63 = int_to_ptr.vmem [resolvable:$true] %s62
      %68 = dma.hbm_to_vmem [thread:$0]  %s61, 32768, %s63, [#allocation9], 256, 256, 16
    $region17: #{tpu_custom_call.1} parent=1 // pred_fallthru
      _
    // Predicated region
    $region18: #{tpu_custom_call.1} parent=1 // pred_check
      _
    $region19: #{tpu_custom_call.1} parent=1 // pred_check_branch
      %70 = sbr.rel (0) target = $region21
    $region20: #{tpu_custom_call.1} parent=1 // pred_region
      %72 = vsyncadd [#allocation9], 0
      %s74 = sshll.u32 %s4, 4
      %s75 = int_to_ptr.hbm [resolvable:$true] %s74
      %s76 = sshll.u32 [#allocation10], 4
      %s77 = int_to_ptr.vmem [resolvable:$true] %s76
      %79 = dma.hbm_to_vmem [thread:$0]  %s75, 64, %s77, [#allocation9]
    $region21: #{tpu_custom_call.1} parent=1 // pred_fallthru
      _
    // Predicated region
    $region22: #{tpu_custom_call.1} parent=1 // pred_check
      _
    $region23: #{tpu_custom_call.1} parent=1 // pred_check_branch
      %81 = sbr.rel (0) target = $region25
    $region24: #{tpu_custom_call.1} parent=1 // pred_region
      %83 = vsyncadd [#allocation12], 0
      %s84 = sshll.u32 %s5, 4
      %s85 = int_to_ptr.hbm [resolvable:$true] %s84
      %s86 = sshll.u32 [#allocation11], 4
      %s87 = int_to_ptr.vmem [resolvable:$true] %s86
      %92 = dma.hbm_to_vmem [thread:$0]  %s85, 8192, %s87, [#allocation12], 128, 128, 8
    $region25: #{tpu_custom_call.1} parent=1 // pred_fallthru
      _
    // Predicated region
    $region26: #{tpu_custom_call.1} parent=1 // pred_check
      _
    $region27: #{tpu_custom_call.1} parent=1 // pred_check_branch
      %94 = sbr.rel (0) target = $region29
    $region28: #{tpu_custom_call.1} parent=1 // pred_region
      %96 = vsyncadd [#allocation12], 0
      %s98 = sshll.u32 %s6, 4
      %s99 = int_to_ptr.hbm [resolvable:$true] %s98
      %s100 = sshll.u32 [#allocation13], 4
      %s101 = int_to_ptr.vmem [resolvable:$true] %s100
      %103 = dma.hbm_to_vmem [thread:$0]  %s99, 32, %s101, [#allocation12]
    $region29: #{tpu_custom_call.1} parent=1 // pred_fallthru
      _
    // Predicated region
    $region30: #{tpu_custom_call.1} parent=1 // pred_check
      _
    $region31: #{tpu_custom_call.1} parent=1 // pred_check_branch
      %105 = sbr.rel (0) target = $region33
    $region32: #{tpu_custom_call.1} parent=1 // pred_region
      %107 = vsyncadd [#allocation15], 0
      %s109 = sshll.u32 %s7, 4
      %s110 = int_to_ptr.hbm [resolvable:$true] %s109
      %s111 = sshll.u32 [#allocation14], 4
      %s112 = int_to_ptr.vmem [resolvable:$true] %s111
      %114 = dma.hbm_to_vmem [thread:$0]  %s110, 32, %s112, [#allocation15]
    $region33: #{tpu_custom_call.1} parent=1 // pred_fallthru
      _
    // Predicated region
    $region34: #{tpu_custom_call.1} parent=1 // pred_check
      _
    $region35: #{tpu_custom_call.1} parent=1 // pred_check_branch
      %116 = sbr.rel (0) target = $region37
    $region36: #{tpu_custom_call.1} parent=1 // pred_region
      _
    $region37: #{tpu_custom_call.1} parent=1 // pred_fallthru
      _
    // Predicated region
    $region38: #{tpu_custom_call.1} parent=1 // pred_check
      _
    $region39: #{tpu_custom_call.1} parent=1 // pred_check_branch
      %118 = sbr.rel (0) target = $region41
    $region40: #{tpu_custom_call.1} parent=1 // pred_region
      %120 = dma.done [#allocation4], 896
    $region41: #{tpu_custom_call.1} parent=1 // pred_fallthru
      _
    // Predicated region
    $region42: #{tpu_custom_call.1} parent=1 // pred_check
      _
    $region43: #{tpu_custom_call.1} parent=1 // pred_check_branch
      %122 = sbr.rel (0) target = $region45
    $region44: #{tpu_custom_call.1} parent=1 // pred_region
      %124 = dma.done [#allocation6], 50176
    $region45: #{tpu_custom_call.1} parent=1 // pred_fallthru
      _
    // Predicated region
    $region46: #{tpu_custom_call.1} parent=1 // pred_check
      _
    $region47: #{tpu_custom_call.1} parent=1 // pred_check_branch
      %126 = sbr.rel (0) target = $region49
    $region48: #{tpu_custom_call.1} parent=1 // pred_region
      %128 = dma.done [#allocation6], 128
    $region49: #{tpu_custom_call.1} parent=1 // pred_fallthru
      _
    // Predicated region
    $region50: #{tpu_custom_call.1} parent=1 // pred_check
      _
    $region51: #{tpu_custom_call.1} parent=1 // pred_check_branch
      %130 = sbr.rel (0) target = $region53
    $region52: #{tpu_custom_call.1} parent=1 // pred_region
      %132 = dma.done [#allocation9], 32768
    $region53: #{tpu_custom_call.1} parent=1 // pred_fallthru
      _
    // Predicated region
    $region54: #{tpu_custom_call.1} parent=1 // pred_check
      _
    $region55: #{tpu_custom_call.1} parent=1 // pred_check_branch
      %134 = sbr.rel (0) target = $region57
    $region56: #{tpu_custom_call.1} parent=1 // pred_region
      %136 = dma.done [#allocation9], 64
    $region57: #{tpu_custom_call.1} parent=1 // pred_fallthru
      _
    // Predicated region
    $region58: #{tpu_custom_call.1} parent=1 // pred_check
      _
    $region59: #{tpu_custom_call.1} parent=1 // pred_check_branch
      %138 = sbr.rel (0) target = $region61
    $region60: #{tpu_custom_call.1} parent=1 // pred_region
      %140 = dma.done [#allocation12], 8192
    $region61: #{tpu_custom_call.1} parent=1 // pred_fallthru
      _
    // Predicated region
    $region62: #{tpu_custom_call.1} parent=1 // pred_check
      _
    $region63: #{tpu_custom_call.1} parent=1 // pred_check_branch
      %142 = sbr.rel (0) target = $region65
    $region64: #{tpu_custom_call.1} parent=1 // pred_region
      %144 = dma.done [#allocation12], 32
    $region65: #{tpu_custom_call.1} parent=1 // pred_fallthru
      _
    // Predicated region
    $region66: #{tpu_custom_call.1} parent=1 // pred_check
      _
    $region67: #{tpu_custom_call.1} parent=1 // pred_check_branch
      %146 = sbr.rel (0) target = $region69
    $region68: #{tpu_custom_call.1} parent=1 // pred_region
      %148 = dma.done [#allocation15], 32
    $region69: #{tpu_custom_call.1} parent=1 // pred_fallthru
      _
    %v150 = vld [vmem:[#allocation3] sm:$0xff]
    %v151 = vld [vmem:[#allocation3 + $0x8] sm:$0xff]
    %v152 = vld [vmem:[#allocation3 + $0x10] sm:$0xff]
    %v153 = vld [vmem:[#allocation3 + $0x18] sm:$0xff]
    %v154 = vld [vmem:[#allocation3 + $0x20] sm:$0xff]
    %v155 = vld [vmem:[#allocation3 + $0x28] sm:$0xff]
    %v156 = vld [vmem:[#allocation3 + $0x30] sm:$0xff]
    %v157 = vpack.c.bf16 %v150, %v150
    %v158 = vpack.c.bf16 %v151, %v151
    %v159 = vpack.c.bf16 %v152, %v152
    %v160 = vpack.c.bf16 %v153, %v153
    %v161 = vpack.c.bf16 %v154, %v154
    %v162 = vpack.c.bf16 %v155, %v155
    %v163 = vpack.c.bf16 %v156, %v156
    %v164 = vld [vmem:[#allocation5] sm:$0xff]
    %v165 = vld [vmem:[#allocation5 + $0x8] sm:$0xff]
    %v166 = vld [vmem:[#allocation5 + $0x10] sm:$0xff]
    %v167 = vld [vmem:[#allocation5 + $0x18] sm:$0xff]
    %v168 = vld [vmem:[#allocation5 + $0x20] sm:$0xff]
    %v169 = vld [vmem:[#allocation5 + $0x28] sm:$0xff]
    %v170 = vld [vmem:[#allocation5 + $0x30] sm:$0xff]
    %v171 = vld [vmem:[#allocation5 + $0x38] sm:$0xff]
    %v172 = vld [vmem:[#allocation5 + $0x40] sm:$0xff]
    %v173 = vld [vmem:[#allocation5 + $0x48] sm:$0xff]
    %v174 = vld [vmem:[#allocation5 + $0x50] sm:$0xff]
    %v175 = vld [vmem:[#allocation5 + $0x58] sm:$0xff]
    %v176 = vld [vmem:[#allocation5 + $0x60] sm:$0xff]
    %v177 = vld [vmem:[#allocation5 + $0x68] sm:$0xff]
    %v178 = vld [vmem:[#allocation5 + $0x70] sm:$0xff]
    %v179 = vld [vmem:[#allocation5 + $0x78] sm:$0xff]
    %v180 = vld [vmem:[#allocation5 + $0x80] sm:$0xff]
    %v181 = vld [vmem:[#allocation5 + $0x88] sm:$0xff]
    %v182 = vld [vmem:[#allocation5 + $0x90] sm:$0xff]
    %v183 = vld [vmem:[#allocation5 + $0x98] sm:$0xff]
    %v184 = vld [vmem:[#allocation5 + $0xa0] sm:$0xff]
    %v185 = vld [vmem:[#allocation5 + $0xa8] sm:$0xff]
    %v186 = vld [vmem:[#allocation5 + $0xb0] sm:$0xff]
    %v187 = vld [vmem:[#allocation5 + $0xb8] sm:$0xff]
    %v188 = vld [vmem:[#allocation5 + $0xc0] sm:$0xff]
    %v189 = vld [vmem:[#allocation5 + $0xc8] sm:$0xff]
    %v190 = vld [vmem:[#allocation5 + $0xd0] sm:$0xff]
    %v191 = vld [vmem:[#allocation5 + $0xd8] sm:$0xff]
    %v192 = vld [vmem:[#allocation5 + $0xe0] sm:$0xff]
    %v193 = vld [vmem:[#allocation5 + $0xe8] sm:$0xff]
    %v194 = vld [vmem:[#allocation5 + $0xf0] sm:$0xff]
    %v195 = vld [vmem:[#allocation5 + $0xf8] sm:$0xff]
    %v196 = vld [vmem:[#allocation5 + $0x100] sm:$0xff]
    %v197 = vld [vmem:[#allocation5 + $0x108] sm:$0xff]
    %v198 = vld [vmem:[#allocation5 + $0x110] sm:$0xff]
    %v199 = vld [vmem:[#allocation5 + $0x118] sm:$0xff]
    %v200 = vld [vmem:[#allocation5 + $0x120] sm:$0xff]
    %v201 = vld [vmem:[#allocation5 + $0x128] sm:$0xff]
    %v202 = vld [vmem:[#allocation5 + $0x130] sm:$0xff]
    %v203 = vld [vmem:[#allocation5 + $0x138] sm:$0xff]
    %v204 = vld [vmem:[#allocation5 + $0x140] sm:$0xff]
    %v205 = vld [vmem:[#allocation5 + $0x148] sm:$0xff]
    %v206 = vld [vmem:[#allocation5 + $0x150] sm:$0xff]
    %v207 = vld [vmem:[#allocation5 + $0x158] sm:$0xff]
    %v208 = vld [vmem:[#allocation5 + $0x160] sm:$0xff]
    %v209 = vld [vmem:[#allocation5 + $0x168] sm:$0xff]
    %v210 = vld [vmem:[#allocation5 + $0x170] sm:$0xff]
    %v211 = vld [vmem:[#allocation5 + $0x178] sm:$0xff]
    %v212 = vld [vmem:[#allocation5 + $0x180] sm:$0xff]
    %v213 = vld [vmem:[#allocation5 + $0x188] sm:$0xff]
    %v214 = vld [vmem:[#allocation5 + $0x190] sm:$0xff]
    %v215 = vld [vmem:[#allocation5 + $0x198] sm:$0xff]
    %v216 = vld [vmem:[#allocation5 + $0x1a0] sm:$0xff]
    %v217 = vld [vmem:[#allocation5 + $0x1a8] sm:$0xff]
    %v218 = vld [vmem:[#allocation5 + $0x1b0] sm:$0xff]
    %v219 = vld [vmem:[#allocation5 + $0x1b8] sm:$0xff]
    %v220 = vld [vmem:[#allocation5 + $0x1c0] sm:$0xff]
    %v221 = vld [vmem:[#allocation5 + $0x1c8] sm:$0xff]
    %v222 = vld [vmem:[#allocation5 + $0x1d0] sm:$0xff]
    %v223 = vld [vmem:[#allocation5 + $0x1d8] sm:$0xff]
    %v224 = vld [vmem:[#allocation5 + $0x1e0] sm:$0xff]
    %v225 = vld [vmem:[#allocation5 + $0x1e8] sm:$0xff]
    %v226 = vld [vmem:[#allocation5 + $0x1f0] sm:$0xff]
    %v227 = vld [vmem:[#allocation5 + $0x1f8] sm:$0xff]
    %v228 = vld [vmem:[#allocation5 + $0x200] sm:$0xff]
    %v229 = vld [vmem:[#allocation5 + $0x208] sm:$0xff]
    %v230 = vld [vmem:[#allocation5 + $0x210] sm:$0xff]
    %v231 = vld [vmem:[#allocation5 + $0x218] sm:$0xff]
    %v232 = vld [vmem:[#allocation5 + $0x220] sm:$0xff]
    %v233 = vld [vmem:[#allocation5 + $0x228] sm:$0xff]
    %v234 = vld [vmem:[#allocation5 + $0x230] sm:$0xff]
    %v235 = vld [vmem:[#allocation5 + $0x238] sm:$0xff]
    %v236 = vld [vmem:[#allocation5 + $0x240] sm:$0xff]
    %v237 = vld [vmem:[#allocation5 + $0x248] sm:$0xff]
    %v238 = vld [vmem:[#allocation5 + $0x250] sm:$0xff]
    %v239 = vld [vmem:[#allocation5 + $0x258] sm:$0xff]
    %v240 = vld [vmem:[#allocation5 + $0x260] sm:$0xff]
    %v241 = vld [vmem:[#allocation5 + $0x268] sm:$0xff]
    %v242 = vld [vmem:[#allocation5 + $0x270] sm:$0xff]
    %v243 = vld [vmem:[#allocation5 + $0x278] sm:$0xff]
    %v244 = vld [vmem:[#allocation5 + $0x280] sm:$0xff]
    %v245 = vld [vmem:[#allocation5 + $0x288] sm:$0xff]
    %v246 = vld [vmem:[#allocation5 + $0x290] sm:$0xff]
    %v247 = vld [vmem:[#allocation5 + $0x298] sm:$0xff]
    %v248 = vld [vmem:[#allocation5 + $0x2a0] sm:$0xff]
    %v249 = vld [vmem:[#allocation5 + $0x2a8] sm:$0xff]
    %v250 = vld [vmem:[#allocation5 + $0x2b0] sm:$0xff]
    %v251 = vld [vmem:[#allocation5 + $0x2b8] sm:$0xff]
    %v252 = vld [vmem:[#allocation5 + $0x2c0] sm:$0xff]
    %v253 = vld [vmem:[#allocation5 + $0x2c8] sm:$0xff]
    %v254 = vld [vmem:[#allocation5 + $0x2d0] sm:$0xff]
    %v255 = vld [vmem:[#allocation5 + $0x2d8] sm:$0xff]
    %v256 = vld [vmem:[#allocation5 + $0x2e0] sm:$0xff]
    %v257 = vld [vmem:[#allocation5 + $0x2e8] sm:$0xff]
    %v258 = vld [vmem:[#allocation5 + $0x2f0] sm:$0xff]
    %v259 = vld [vmem:[#allocation5 + $0x2f8] sm:$0xff]
    %v260 = vld [vmem:[#allocation5 + $0x300] sm:$0xff]
    %v261 = vld [vmem:[#allocation5 + $0x308] sm:$0xff]
    %v262 = vld [vmem:[#allocation5 + $0x310] sm:$0xff]
    %v263 = vld [vmem:[#allocation5 + $0x318] sm:$0xff]
    %v264 = vld [vmem:[#allocation5 + $0x320] sm:$0xff]
    %v265 = vld [vmem:[#allocation5 + $0x328] sm:$0xff]
    %v266 = vld [vmem:[#allocation5 + $0x330] sm:$0xff]
    %v267 = vld [vmem:[#allocation5 + $0x338] sm:$0xff]
    %v268 = vld [vmem:[#allocation5 + $0x340] sm:$0xff]
    %v269 = vld [vmem:[#allocation5 + $0x348] sm:$0xff]
    %v270 = vld [vmem:[#allocation5 + $0x350] sm:$0xff]
    %v271 = vld [vmem:[#allocation5 + $0x358] sm:$0xff]
    %v272 = vld [vmem:[#allocation5 + $0x360] sm:$0xff]
    %v273 = vld [vmem:[#allocation5 + $0x368] sm:$0xff]
    %v274 = vld [vmem:[#allocation5 + $0x370] sm:$0xff]
    %v275 = vld [vmem:[#allocation5 + $0x378] sm:$0xff]
    %v276 = vld [vmem:[#allocation5 + $0x380] sm:$0xff]
    %v277 = vld [vmem:[#allocation5 + $0x388] sm:$0xff]
    %v278 = vld [vmem:[#allocation5 + $0x390] sm:$0xff]
    %v279 = vld [vmem:[#allocation5 + $0x398] sm:$0xff]
    %v280 = vld [vmem:[#allocation5 + $0x3a0] sm:$0xff]
    %v281 = vld [vmem:[#allocation5 + $0x3a8] sm:$0xff]
    %v282 = vld [vmem:[#allocation5 + $0x3b0] sm:$0xff]
    %v283 = vld [vmem:[#allocation5 + $0x3b8] sm:$0xff]
    %v284 = vld [vmem:[#allocation5 + $0x3c0] sm:$0xff]
    %v285 = vld [vmem:[#allocation5 + $0x3c8] sm:$0xff]
    %v286 = vld [vmem:[#allocation5 + $0x3d0] sm:$0xff]
    %v287 = vld [vmem:[#allocation5 + $0x3d8] sm:$0xff]
    %v288 = vld [vmem:[#allocation5 + $0x3e0] sm:$0xff]
    %v289 = vld [vmem:[#allocation5 + $0x3e8] sm:$0xff]
    %v290 = vld [vmem:[#allocation5 + $0x3f0] sm:$0xff]
    %v291 = vld [vmem:[#allocation5 + $0x3f8] sm:$0xff]
    %v292 = vld [vmem:[#allocation5 + $0x400] sm:$0xff]
    %v293 = vld [vmem:[#allocation5 + $0x408] sm:$0xff]
    %v294 = vld [vmem:[#allocation5 + $0x410] sm:$0xff]
    %v295 = vld [vmem:[#allocation5 + $0x418] sm:$0xff]
    %v296 = vld [vmem:[#allocation5 + $0x420] sm:$0xff]
    %v297 = vld [vmem:[#allocation5 + $0x428] sm:$0xff]
    %v298 = vld [vmem:[#allocation5 + $0x430] sm:$0xff]
    %v299 = vld [vmem:[#allocation5 + $0x438] sm:$0xff]
    %v300 = vld [vmem:[#allocation5 + $0x440] sm:$0xff]
    %v301 = vld [vmem:[#allocation5 + $0x448] sm:$0xff]
    %v302 = vld [vmem:[#allocation5 + $0x450] sm:$0xff]
    %v303 = vld [vmem:[#allocation5 + $0x458] sm:$0xff]
    %v304 = vld [vmem:[#allocation5 + $0x460] sm:$0xff]
    %v305 = vld [vmem:[#allocation5 + $0x468] sm:$0xff]
    %v306 = vld [vmem:[#allocation5 + $0x470] sm:$0xff]
    %v307 = vld [vmem:[#allocation5 + $0x478] sm:$0xff]
    %v308 = vld [vmem:[#allocation5 + $0x480] sm:$0xff]
    %v309 = vld [vmem:[#allocation5 + $0x488] sm:$0xff]
    %v310 = vld [vmem:[#allocation5 + $0x490] sm:$0xff]
    %v311 = vld [vmem:[#allocation5 + $0x498] sm:$0xff]
    %v312 = vld [vmem:[#allocation5 + $0x4a0] sm:$0xff]
    %v313 = vld [vmem:[#allocation5 + $0x4a8] sm:$0xff]
    %v314 = vld [vmem:[#allocation5 + $0x4b0] sm:$0xff]
    %v315 = vld [vmem:[#allocation5 + $0x4b8] sm:$0xff]
    %v316 = vld [vmem:[#allocation5 + $0x4c0] sm:$0xff]
    %v317 = vld [vmem:[#allocation5 + $0x4c8] sm:$0xff]
    %v318 = vld [vmem:[#allocation5 + $0x4d0] sm:$0xff]
    %v319 = vld [vmem:[#allocation5 + $0x4d8] sm:$0xff]
    %v320 = vld [vmem:[#allocation5 + $0x4e0] sm:$0xff]
    %v321 = vld [vmem:[#allocation5 + $0x4e8] sm:$0xff]
    %v322 = vld [vmem:[#allocation5 + $0x4f0] sm:$0xff]
    %v323 = vld [vmem:[#allocation5 + $0x4f8] sm:$0xff]
    %v324 = vld [vmem:[#allocation5 + $0x500] sm:$0xff]
    %v325 = vld [vmem:[#allocation5 + $0x508] sm:$0xff]
    %v326 = vld [vmem:[#allocation5 + $0x510] sm:$0xff]
    %v327 = vld [vmem:[#allocation5 + $0x518] sm:$0xff]
    %v328 = vld [vmem:[#allocation5 + $0x520] sm:$0xff]
    %v329 = vld [vmem:[#allocation5 + $0x528] sm:$0xff]
    %v330 = vld [vmem:[#allocation5 + $0x530] sm:$0xff]
    %v331 = vld [vmem:[#allocation5 + $0x538] sm:$0xff]
    %v332 = vld [vmem:[#allocation5 + $0x540] sm:$0xff]
    %v333 = vld [vmem:[#allocation5 + $0x548] sm:$0xff]
    %v334 = vld [vmem:[#allocation5 + $0x550] sm:$0xff]
    %v335 = vld [vmem:[#allocation5 + $0x558] sm:$0xff]
    %v336 = vld [vmem:[#allocation5 + $0x560] sm:$0xff]
    %v337 = vld [vmem:[#allocation5 + $0x568] sm:$0xff]
    %v338 = vld [vmem:[#allocation5 + $0x570] sm:$0xff]
    %v339 = vld [vmem:[#allocation5 + $0x578] sm:$0xff]
    %v340 = vld [vmem:[#allocation5 + $0x580] sm:$0xff]
    %v341 = vld [vmem:[#allocation5 + $0x588] sm:$0xff]
    %v342 = vld [vmem:[#allocation5 + $0x590] sm:$0xff]
    %v343 = vld [vmem:[#allocation5 + $0x598] sm:$0xff]
    %v344 = vld [vmem:[#allocation5 + $0x5a0] sm:$0xff]
    %v345 = vld [vmem:[#allocation5 + $0x5a8] sm:$0xff]
    %v346 = vld [vmem:[#allocation5 + $0x5b0] sm:$0xff]
    %v347 = vld [vmem:[#allocation5 + $0x5b8] sm:$0xff]
    %v348 = vld [vmem:[#allocation5 + $0x5c0] sm:$0xff]
    %v349 = vld [vmem:[#allocation5 + $0x5c8] sm:$0xff]
    %v350 = vld [vmem:[#allocation5 + $0x5d0] sm:$0xff]
    %v351 = vld [vmem:[#allocation5 + $0x5d8] sm:$0xff]
    %v352 = vld [vmem:[#allocation5 + $0x5e0] sm:$0xff]
    %v353 = vld [vmem:[#allocation5 + $0x5e8] sm:$0xff]
    %v354 = vld [vmem:[#allocation5 + $0x5f0] sm:$0xff]
    %v355 = vld [vmem:[#allocation5 + $0x5f8] sm:$0xff]
    %v356 = vld [vmem:[#allocation5 + $0x600] sm:$0xff]
    %v357 = vld [vmem:[#allocation5 + $0x608] sm:$0xff]
    %v358 = vld [vmem:[#allocation5 + $0x610] sm:$0xff]
    %v359 = vld [vmem:[#allocation5 + $0x618] sm:$0xff]
    %v360 = vld [vmem:[#allocation5 + $0x620] sm:$0xff]
    %v361 = vld [vmem:[#allocation5 + $0x628] sm:$0xff]
    %v362 = vld [vmem:[#allocation5 + $0x630] sm:$0xff]
    %v363 = vld [vmem:[#allocation5 + $0x638] sm:$0xff]
    %v364 = vld [vmem:[#allocation5 + $0x640] sm:$0xff]
    %v365 = vld [vmem:[#allocation5 + $0x648] sm:$0xff]
    %v366 = vld [vmem:[#allocation5 + $0x650] sm:$0xff]
    %v367 = vld [vmem:[#allocation5 + $0x658] sm:$0xff]
    %v368 = vld [vmem:[#allocation5 + $0x660] sm:$0xff]
    %v369 = vld [vmem:[#allocation5 + $0x668] sm:$0xff]
    %v370 = vld [vmem:[#allocation5 + $0x670] sm:$0xff]
    %v371 = vld [vmem:[#allocation5 + $0x678] sm:$0xff]
    %v372 = vld [vmem:[#allocation5 + $0x680] sm:$0xff]
    %v373 = vld [vmem:[#allocation5 + $0x688] sm:$0xff]
    %v374 = vld [vmem:[#allocation5 + $0x690] sm:$0xff]
    %v375 = vld [vmem:[#allocation5 + $0x698] sm:$0xff]
    %v376 = vld [vmem:[#allocation5 + $0x6a0] sm:$0xff]
    %v377 = vld [vmem:[#allocation5 + $0x6a8] sm:$0xff]
    %v378 = vld [vmem:[#allocation5 + $0x6b0] sm:$0xff]
    %v379 = vld [vmem:[#allocation5 + $0x6b8] sm:$0xff]
    %v380 = vld [vmem:[#allocation5 + $0x6c0] sm:$0xff]
    %v381 = vld [vmem:[#allocation5 + $0x6c8] sm:$0xff]
    %v382 = vld [vmem:[#allocation5 + $0x6d0] sm:$0xff]
    %v383 = vld [vmem:[#allocation5 + $0x6d8] sm:$0xff]
    %v384 = vld [vmem:[#allocation5 + $0x6e0] sm:$0xff]
    %v385 = vld [vmem:[#allocation5 + $0x6e8] sm:$0xff]
    %v386 = vld [vmem:[#allocation5 + $0x6f0] sm:$0xff]
    %v387 = vld [vmem:[#allocation5 + $0x6f8] sm:$0xff]
    %v388 = vld [vmem:[#allocation5 + $0x700] sm:$0xff]
    %v389 = vld [vmem:[#allocation5 + $0x708] sm:$0xff]
    %v390 = vld [vmem:[#allocation5 + $0x710] sm:$0xff]
    %v391 = vld [vmem:[#allocation5 + $0x718] sm:$0xff]
    %v392 = vld [vmem:[#allocation5 + $0x720] sm:$0xff]
    %v393 = vld [vmem:[#allocation5 + $0x728] sm:$0xff]
    %v394 = vld [vmem:[#allocation5 + $0x730] sm:$0xff]
    %v395 = vld [vmem:[#allocation5 + $0x738] sm:$0xff]
    %v396 = vld [vmem:[#allocation5 + $0x740] sm:$0xff]
    %v397 = vld [vmem:[#allocation5 + $0x748] sm:$0xff]
    %v398 = vld [vmem:[#allocation5 + $0x750] sm:$0xff]
    %v399 = vld [vmem:[#allocation5 + $0x758] sm:$0xff]
    %v400 = vld [vmem:[#allocation5 + $0x760] sm:$0xff]
    %v401 = vld [vmem:[#allocation5 + $0x768] sm:$0xff]
    %v402 = vld [vmem:[#allocation5 + $0x770] sm:$0xff]
    %v403 = vld [vmem:[#allocation5 + $0x778] sm:$0xff]
    %v404 = vld [vmem:[#allocation5 + $0x780] sm:$0xff]
    %v405 = vld [vmem:[#allocation5 + $0x788] sm:$0xff]
    %v406 = vld [vmem:[#allocation5 + $0x790] sm:$0xff]
    %v407 = vld [vmem:[#allocation5 + $0x798] sm:$0xff]
    %v408 = vld [vmem:[#allocation5 + $0x7a0] sm:$0xff]
    %v409 = vld [vmem:[#allocation5 + $0x7a8] sm:$0xff]
    %v410 = vld [vmem:[#allocation5 + $0x7b0] sm:$0xff]
    %v411 = vld [vmem:[#allocation5 + $0x7b8] sm:$0xff]
    %v412 = vld [vmem:[#allocation5 + $0x7c0] sm:$0xff]
    %v413 = vld [vmem:[#allocation5 + $0x7c8] sm:$0xff]
    %v414 = vld [vmem:[#allocation5 + $0x7d0] sm:$0xff]
    %v415 = vld [vmem:[#allocation5 + $0x7d8] sm:$0xff]
    %v416 = vld [vmem:[#allocation5 + $0x7e0] sm:$0xff]
    %v417 = vld [vmem:[#allocation5 + $0x7e8] sm:$0xff]
    %v418 = vld [vmem:[#allocation5 + $0x7f0] sm:$0xff]
    %v419 = vld [vmem:[#allocation5 + $0x7f8] sm:$0xff]
    %v420 = vld [vmem:[#allocation5 + $0x800] sm:$0xff]
    %v421 = vld [vmem:[#allocation5 + $0x808] sm:$0xff]
    %v422 = vld [vmem:[#allocation5 + $0x810] sm:$0xff]
    %v423 = vld [vmem:[#allocation5 + $0x818] sm:$0xff]
    %v424 = vld [vmem:[#allocation5 + $0x820] sm:$0xff]
    %v425 = vld [vmem:[#allocation5 + $0x828] sm:$0xff]
    %v426 = vld [vmem:[#allocation5 + $0x830] sm:$0xff]
    %v427 = vld [vmem:[#allocation5 + $0x838] sm:$0xff]
    %v428 = vld [vmem:[#allocation5 + $0x840] sm:$0xff]
    %v429 = vld [vmem:[#allocation5 + $0x848] sm:$0xff]
    %v430 = vld [vmem:[#allocation5 + $0x850] sm:$0xff]
    %v431 = vld [vmem:[#allocation5 + $0x858] sm:$0xff]
    %v432 = vld [vmem:[#allocation5 + $0x860] sm:$0xff]
    %v433 = vld [vmem:[#allocation5 + $0x868] sm:$0xff]
    %v434 = vld [vmem:[#allocation5 + $0x870] sm:$0xff]
    %v435 = vld [vmem:[#allocation5 + $0x878] sm:$0xff]
    %v436 = vld [vmem:[#allocation5 + $0x880] sm:$0xff]
    %v437 = vld [vmem:[#allocation5 + $0x888] sm:$0xff]
    %v438 = vld [vmem:[#allocation5 + $0x890] sm:$0xff]
    %v439 = vld [vmem:[#allocation5 + $0x898] sm:$0xff]
    %v440 = vld [vmem:[#allocation5 + $0x8a0] sm:$0xff]
    %v441 = vld [vmem:[#allocation5 + $0x8a8] sm:$0xff]
    %v442 = vld [vmem:[#allocation5 + $0x8b0] sm:$0xff]
    %v443 = vld [vmem:[#allocation5 + $0x8b8] sm:$0xff]
    %v444 = vld [vmem:[#allocation5 + $0x8c0] sm:$0xff]
    %v445 = vld [vmem:[#allocation5 + $0x8c8] sm:$0xff]
    %v446 = vld [vmem:[#allocation5 + $0x8d0] sm:$0xff]
    %v447 = vld [vmem:[#allocation5 + $0x8d8] sm:$0xff]
    %v448 = vld [vmem:[#allocation5 + $0x8e0] sm:$0xff]
    %v449 = vld [vmem:[#allocation5 + $0x8e8] sm:$0xff]
    %v450 = vld [vmem:[#allocation5 + $0x8f0] sm:$0xff]
    %v451 = vld [vmem:[#allocation5 + $0x8f8] sm:$0xff]
    %v452 = vld [vmem:[#allocation5 + $0x900] sm:$0xff]
    %v453 = vld [vmem:[#allocation5 + $0x908] sm:$0xff]
    %v454 = vld [vmem:[#allocation5 + $0x910] sm:$0xff]
    %v455 = vld [vmem:[#allocation5 + $0x918] sm:$0xff]
    %v456 = vld [vmem:[#allocation5 + $0x920] sm:$0xff]
    %v457 = vld [vmem:[#allocation5 + $0x928] sm:$0xff]
    %v458 = vld [vmem:[#allocation5 + $0x930] sm:$0xff]
    %v459 = vld [vmem:[#allocation5 + $0x938] sm:$0xff]
    %v460 = vld [vmem:[#allocation5 + $0x940] sm:$0xff]
    %v461 = vld [vmem:[#allocation5 + $0x948] sm:$0xff]
    %v462 = vld [vmem:[#allocation5 + $0x950] sm:$0xff]
    %v463 = vld [vmem:[#allocation5 + $0x958] sm:$0xff]
    %v464 = vld [vmem:[#allocation5 + $0x960] sm:$0xff]
    %v465 = vld [vmem:[#allocation5 + $0x968] sm:$0xff]
    %v466 = vld [vmem:[#allocation5 + $0x970] sm:$0xff]
    %v467 = vld [vmem:[#allocation5 + $0x978] sm:$0xff]
    %v468 = vld [vmem:[#allocation5 + $0x980] sm:$0xff]
    %v469 = vld [vmem:[#allocation5 + $0x988] sm:$0xff]
    %v470 = vld [vmem:[#allocation5 + $0x990] sm:$0xff]
    %v471 = vld [vmem:[#allocation5 + $0x998] sm:$0xff]
    %v472 = vld [vmem:[#allocation5 + $0x9a0] sm:$0xff]
    %v473 = vld [vmem:[#allocation5 + $0x9a8] sm:$0xff]
    %v474 = vld [vmem:[#allocation5 + $0x9b0] sm:$0xff]
    %v475 = vld [vmem:[#allocation5 + $0x9b8] sm:$0xff]
    %v476 = vld [vmem:[#allocation5 + $0x9c0] sm:$0xff]
    %v477 = vld [vmem:[#allocation5 + $0x9c8] sm:$0xff]
    %v478 = vld [vmem:[#allocation5 + $0x9d0] sm:$0xff]
    %v479 = vld [vmem:[#allocation5 + $0x9d8] sm:$0xff]
    %v480 = vld [vmem:[#allocation5 + $0x9e0] sm:$0xff]
    %v481 = vld [vmem:[#allocation5 + $0x9e8] sm:$0xff]
    %v482 = vld [vmem:[#allocation5 + $0x9f0] sm:$0xff]
    %v483 = vld [vmem:[#allocation5 + $0x9f8] sm:$0xff]
    %v484 = vld [vmem:[#allocation5 + $0xa00] sm:$0xff]
    %v485 = vld [vmem:[#allocation5 + $0xa08] sm:$0xff]
    %v486 = vld [vmem:[#allocation5 + $0xa10] sm:$0xff]
    %v487 = vld [vmem:[#allocation5 + $0xa18] sm:$0xff]
    %v488 = vld [vmem:[#allocation5 + $0xa20] sm:$0xff]
    %v489 = vld [vmem:[#allocation5 + $0xa28] sm:$0xff]
    %v490 = vld [vmem:[#allocation5 + $0xa30] sm:$0xff]
    %v491 = vld [vmem:[#allocation5 + $0xa38] sm:$0xff]
    %v492 = vld [vmem:[#allocation5 + $0xa40] sm:$0xff]
    %v493 = vld [vmem:[#allocation5 + $0xa48] sm:$0xff]
    %v494 = vld [vmem:[#allocation5 + $0xa50] sm:$0xff]
    %v495 = vld [vmem:[#allocation5 + $0xa58] sm:$0xff]
    %v496 = vld [vmem:[#allocation5 + $0xa60] sm:$0xff]
    %v497 = vld [vmem:[#allocation5 + $0xa68] sm:$0xff]
    %v498 = vld [vmem:[#allocation5 + $0xa70] sm:$0xff]
    %v499 = vld [vmem:[#allocation5 + $0xa78] sm:$0xff]
    %v500 = vld [vmem:[#allocation5 + $0xa80] sm:$0xff]
    %v501 = vld [vmem:[#allocation5 + $0xa88] sm:$0xff]
    %v502 = vld [vmem:[#allocation5 + $0xa90] sm:$0xff]
    %v503 = vld [vmem:[#allocation5 + $0xa98] sm:$0xff]
    %v504 = vld [vmem:[#allocation5 + $0xaa0] sm:$0xff]
    %v505 = vld [vmem:[#allocation5 + $0xaa8] sm:$0xff]
    %v506 = vld [vmem:[#allocation5 + $0xab0] sm:$0xff]
    %v507 = vld [vmem:[#allocation5 + $0xab8] sm:$0xff]
    %v508 = vld [vmem:[#allocation5 + $0xac0] sm:$0xff]
    %v509 = vld [vmem:[#allocation5 + $0xac8] sm:$0xff]
    %v510 = vld [vmem:[#allocation5 + $0xad0] sm:$0xff]
    %v511 = vld [vmem:[#allocation5 + $0xad8] sm:$0xff]
    %v512 = vld [vmem:[#allocation5 + $0xae0] sm:$0xff]
    %v513 = vld [vmem:[#allocation5 + $0xae8] sm:$0xff]
    %v514 = vld [vmem:[#allocation5 + $0xaf0] sm:$0xff]
    %v515 = vld [vmem:[#allocation5 + $0xaf8] sm:$0xff]
    %v516 = vld [vmem:[#allocation5 + $0xb00] sm:$0xff]
    %v517 = vld [vmem:[#allocation5 + $0xb08] sm:$0xff]
    %v518 = vld [vmem:[#allocation5 + $0xb10] sm:$0xff]
    %v519 = vld [vmem:[#allocation5 + $0xb18] sm:$0xff]
    %v520 = vld [vmem:[#allocation5 + $0xb20] sm:$0xff]
    %v521 = vld [vmem:[#allocation5 + $0xb28] sm:$0xff]
    %v522 = vld [vmem:[#allocation5 + $0xb30] sm:$0xff]
    %v523 = vld [vmem:[#allocation5 + $0xb38] sm:$0xff]
    %v524 = vld [vmem:[#allocation5 + $0xb40] sm:$0xff]
    %v525 = vld [vmem:[#allocation5 + $0xb48] sm:$0xff]
    %v526 = vld [vmem:[#allocation5 + $0xb50] sm:$0xff]
    %v527 = vld [vmem:[#allocation5 + $0xb58] sm:$0xff]
    %v528 = vld [vmem:[#allocation5 + $0xb60] sm:$0xff]
    %v529 = vld [vmem:[#allocation5 + $0xb68] sm:$0xff]
    %v530 = vld [vmem:[#allocation5 + $0xb70] sm:$0xff]
    %v531 = vld [vmem:[#allocation5 + $0xb78] sm:$0xff]
    %v532 = vld [vmem:[#allocation5 + $0xb80] sm:$0xff]
    %v533 = vld [vmem:[#allocation5 + $0xb88] sm:$0xff]
    %v534 = vld [vmem:[#allocation5 + $0xb90] sm:$0xff]
    %v535 = vld [vmem:[#allocation5 + $0xb98] sm:$0xff]
    %v536 = vld [vmem:[#allocation5 + $0xba0] sm:$0xff]
    %v537 = vld [vmem:[#allocation5 + $0xba8] sm:$0xff]
    %v538 = vld [vmem:[#allocation5 + $0xbb0] sm:$0xff]
    %v539 = vld [vmem:[#allocation5 + $0xbb8] sm:$0xff]
    %v540 = vld [vmem:[#allocation5 + $0xbc0] sm:$0xff]
    %v541 = vld [vmem:[#allocation5 + $0xbc8] sm:$0xff]
    %v542 = vld [vmem:[#allocation5 + $0xbd0] sm:$0xff]
    %v543 = vld [vmem:[#allocation5 + $0xbd8] sm:$0xff]
    %v544 = vld [vmem:[#allocation5 + $0xbe0] sm:$0xff]
    %v545 = vld [vmem:[#allocation5 + $0xbe8] sm:$0xff]
    %v546 = vld [vmem:[#allocation5 + $0xbf0] sm:$0xff]
    %v547 = vld [vmem:[#allocation5 + $0xbf8] sm:$0xff]
    %v548 = vld [vmem:[#allocation5 + $0xc00] sm:$0xff]
    %v549 = vld [vmem:[#allocation5 + $0xc08] sm:$0xff]
    %v550 = vld [vmem:[#allocation5 + $0xc10] sm:$0xff]
    %v551 = vld [vmem:[#allocation5 + $0xc18] sm:$0xff]
    %v552 = vld [vmem:[#allocation5 + $0xc20] sm:$0xff]
    %v553 = vld [vmem:[#allocation5 + $0xc28] sm:$0xff]
    %v554 = vld [vmem:[#allocation5 + $0xc30] sm:$0xff]
    %v555 = vld [vmem:[#allocation5 + $0xc38] sm:$0xff]
    %v948 = vunpack.c.l.b16 %v164
    %v949 = vunpack.c.h.b16 %v164
    %v950 = vunpack.c.l.b16 %v165
    %v951 = vunpack.c.h.b16 %v165
    %v952 = vunpack.c.l.b16 %v166
    %v953 = vunpack.c.h.b16 %v166
    %v954 = vunpack.c.l.b16 %v167
    %v955 = vunpack.c.h.b16 %v167
    %v956 = vunpack.c.l.b16 %v168
    %v957 = vunpack.c.h.b16 %v168
    %v958 = vunpack.c.l.b16 %v169
    %v959 = vunpack.c.h.b16 %v169
    %v960 = vunpack.c.l.b16 %v170
    %v961 = vunpack.c.h.b16 %v170
    %v962 = vunpack.c.l.b16 %v171
    %v963 = vunpack.c.h.b16 %v171
    %v964 = vunpack.c.l.b16 %v172
    %v965 = vunpack.c.h.b16 %v172
    %v966 = vunpack.c.l.b16 %v173
    %v967 = vunpack.c.h.b16 %v173
    %v968 = vunpack.c.l.b16 %v174
    %v969 = vunpack.c.h.b16 %v174
    %v970 = vunpack.c.l.b16 %v175
    %v971 = vunpack.c.h.b16 %v175
    %v972 = vunpack.c.l.b16 %v176
    %v973 = vunpack.c.h.b16 %v176
    %v974 = vunpack.c.l.b16 %v177
    %v975 = vunpack.c.h.b16 %v177
    %v976 = vunpack.c.l.b16 %v178
    %v977 = vunpack.c.h.b16 %v178
    %v978 = vunpack.c.l.b16 %v179
    %v979 = vunpack.c.h.b16 %v179
    %v980 = vunpack.c.l.b16 %v180
    %v981 = vunpack.c.h.b16 %v180
    %v982 = vunpack.c.l.b16 %v181
    %v983 = vunpack.c.h.b16 %v181
    %v984 = vunpack.c.l.b16 %v182
    %v985 = vunpack.c.h.b16 %v182
    %v986 = vunpack.c.l.b16 %v183
    %v987 = vunpack.c.h.b16 %v183
    %v988 = vunpack.c.l.b16 %v184
    %v989 = vunpack.c.h.b16 %v184
    %v990 = vunpack.c.l.b16 %v185
    %v991 = vunpack.c.h.b16 %v185
    %v992 = vunpack.c.l.b16 %v186
    %v993 = vunpack.c.h.b16 %v186
    %v994 = vunpack.c.l.b16 %v187
    %v995 = vunpack.c.h.b16 %v187
    %v996 = vunpack.c.l.b16 %v188
    %v997 = vunpack.c.h.b16 %v188
    %v998 = vunpack.c.l.b16 %v189
    %v999 = vunpack.c.h.b16 %v189
    %v1000 = vunpack.c.l.b16 %v190
    %v1001 = vunpack.c.h.b16 %v190
    %v1002 = vunpack.c.l.b16 %v191
    %v1003 = vunpack.c.h.b16 %v191
    %v1004 = vunpack.c.l.b16 %v192
    %v1005 = vunpack.c.h.b16 %v192
    %v1006 = vunpack.c.l.b16 %v193
    %v1007 = vunpack.c.h.b16 %v193
    %v1008 = vunpack.c.l.b16 %v194
    %v1009 = vunpack.c.h.b16 %v194
    %v1010 = vunpack.c.l.b16 %v195
    %v1011 = vunpack.c.h.b16 %v195
    %v1012 = vunpack.c.l.b16 %v196
    %v1013 = vunpack.c.h.b16 %v196
    %v1014 = vunpack.c.l.b16 %v197
    %v1015 = vunpack.c.h.b16 %v197
    %v1016 = vunpack.c.l.b16 %v198
    %v1017 = vunpack.c.h.b16 %v198
    %v1018 = vunpack.c.l.b16 %v199
    %v1019 = vunpack.c.h.b16 %v199
    %v1020 = vunpack.c.l.b16 %v200
    %v1021 = vunpack.c.h.b16 %v200
    %v1022 = vunpack.c.l.b16 %v201
    %v1023 = vunpack.c.h.b16 %v201
    %v1024 = vunpack.c.l.b16 %v202
    %v1025 = vunpack.c.h.b16 %v202
    %v1026 = vunpack.c.l.b16 %v203
    %v1027 = vunpack.c.h.b16 %v203
    %v1028 = vunpack.c.l.b16 %v204
    %v1029 = vunpack.c.h.b16 %v204
    %v1030 = vunpack.c.l.b16 %v205
    %v1031 = vunpack.c.h.b16 %v205
    %v1032 = vunpack.c.l.b16 %v206
    %v1033 = vunpack.c.h.b16 %v206
    %v1034 = vunpack.c.l.b16 %v207
    %v1035 = vunpack.c.h.b16 %v207
    %v1036 = vunpack.c.l.b16 %v208
    %v1037 = vunpack.c.h.b16 %v208
    %v1038 = vunpack.c.l.b16 %v209
    %v1039 = vunpack.c.h.b16 %v209
    %v1040 = vunpack.c.l.b16 %v210
    %v1041 = vunpack.c.h.b16 %v210
    %v1042 = vunpack.c.l.b16 %v211
    %v1043 = vunpack.c.h.b16 %v211
    %v1044 = vunpack.c.l.b16 %v212
    %v1045 = vunpack.c.h.b16 %v212
    %v1046 = vunpack.c.l.b16 %v213
    %v1047 = vunpack.c.h.b16 %v213
    %v1048 = vunpack.c.l.b16 %v214
    %v1049 = vunpack.c.h.b16 %v214
    %v1050 = vunpack.c.l.b16 %v215
    %v1051 = vunpack.c.h.b16 %v215
    %v1052 = vunpack.c.l.b16 %v216
    %v1053 = vunpack.c.h.b16 %v216
    %v1054 = vunpack.c.l.b16 %v217
    %v1055 = vunpack.c.h.b16 %v217
    %v1056 = vunpack.c.l.b16 %v218
    %v1057 = vunpack.c.h.b16 %v218
    %v1058 = vunpack.c.l.b16 %v219
    %v1059 = vunpack.c.h.b16 %v219
    %v1060 = vunpack.c.l.b16 %v220
    %v1061 = vunpack.c.h.b16 %v220
    %v1062 = vunpack.c.l.b16 %v221
    %v1063 = vunpack.c.h.b16 %v221
    %v1064 = vunpack.c.l.b16 %v222
    %v1065 = vunpack.c.h.b16 %v222
    %v1066 = vunpack.c.l.b16 %v223
    %v1067 = vunpack.c.h.b16 %v223
    %v1068 = vunpack.c.l.b16 %v224
    %v1069 = vunpack.c.h.b16 %v224
    %v1070 = vunpack.c.l.b16 %v225
    %v1071 = vunpack.c.h.b16 %v225
    %v1072 = vunpack.c.l.b16 %v226
    %v1073 = vunpack.c.h.b16 %v226
    %v1074 = vunpack.c.l.b16 %v227
    %v1075 = vunpack.c.h.b16 %v227
    %v1076 = vunpack.c.l.b16 %v228
    %v1077 = vunpack.c.h.b16 %v228
    %v1078 = vunpack.c.l.b16 %v229
    %v1079 = vunpack.c.h.b16 %v229
    %v1080 = vunpack.c.l.b16 %v230
    %v1081 = vunpack.c.h.b16 %v230
    %v1082 = vunpack.c.l.b16 %v231
    %v1083 = vunpack.c.h.b16 %v231
    %v1084 = vunpack.c.l.b16 %v232
    %v1085 = vunpack.c.h.b16 %v232
    %v1086 = vunpack.c.l.b16 %v233
    %v1087 = vunpack.c.h.b16 %v233
    %v1088 = vunpack.c.l.b16 %v234
    %v1089 = vunpack.c.h.b16 %v234
    %v1090 = vunpack.c.l.b16 %v235
    %v1091 = vunpack.c.h.b16 %v235
    %v1092 = vunpack.c.l.b16 %v236
    %v1093 = vunpack.c.h.b16 %v236
    %v1094 = vunpack.c.l.b16 %v237
    %v1095 = vunpack.c.h.b16 %v237
    %v1096 = vunpack.c.l.b16 %v238
    %v1097 = vunpack.c.h.b16 %v238
    %v1098 = vunpack.c.l.b16 %v239
    %v1099 = vunpack.c.h.b16 %v239
    %v1100 = vunpack.c.l.b16 %v240
    %v1101 = vunpack.c.h.b16 %v240
    %v1102 = vunpack.c.l.b16 %v241
    %v1103 = vunpack.c.h.b16 %v241
    %v1104 = vunpack.c.l.b16 %v242
    %v1105 = vunpack.c.h.b16 %v242
    %v1106 = vunpack.c.l.b16 %v243
    %v1107 = vunpack.c.h.b16 %v243
    %v1108 = vunpack.c.l.b16 %v244
    %v1109 = vunpack.c.h.b16 %v244
    %v1110 = vunpack.c.l.b16 %v245
    %v1111 = vunpack.c.h.b16 %v245
    %v1112 = vunpack.c.l.b16 %v246
    %v1113 = vunpack.c.h.b16 %v246
    %v1114 = vunpack.c.l.b16 %v247
    %v1115 = vunpack.c.h.b16 %v247
    %v1116 = vunpack.c.l.b16 %v248
    %v1117 = vunpack.c.h.b16 %v248
    %v1118 = vunpack.c.l.b16 %v249
    %v1119 = vunpack.c.h.b16 %v249
    %v1120 = vunpack.c.l.b16 %v250
    %v1121 = vunpack.c.h.b16 %v250
    %v1122 = vunpack.c.l.b16 %v251
    %v1123 = vunpack.c.h.b16 %v251
    %v1124 = vunpack.c.l.b16 %v252
    %v1125 = vunpack.c.h.b16 %v252
    %v1126 = vunpack.c.l.b16 %v253
    %v1127 = vunpack.c.h.b16 %v253
    %v1128 = vunpack.c.l.b16 %v254
    %v1129 = vunpack.c.h.b16 %v254
    %v1130 = vunpack.c.l.b16 %v255
    %v1131 = vunpack.c.h.b16 %v255
    %v1132 = vunpack.c.l.b16 %v256
    %v1133 = vunpack.c.h.b16 %v256
    %v1134 = vunpack.c.l.b16 %v257
    %v1135 = vunpack.c.h.b16 %v257
    %v1136 = vunpack.c.l.b16 %v258
    %v1137 = vunpack.c.h.b16 %v258
    %v1138 = vunpack.c.l.b16 %v259
    %v1139 = vunpack.c.h.b16 %v259
    %v1140 = vunpack.c.l.b16 %v260
    %v1141 = vunpack.c.h.b16 %v260
    %v1142 = vunpack.c.l.b16 %v261
    %v1143 = vunpack.c.h.b16 %v261
    %v1144 = vunpack.c.l.b16 %v262
    %v1145 = vunpack.c.h.b16 %v262
    %v1146 = vunpack.c.l.b16 %v263
    %v1147 = vunpack.c.h.b16 %v263
    %v1148 = vunpack.c.l.b16 %v264
    %v1149 = vunpack.c.h.b16 %v264
    %v1150 = vunpack.c.l.b16 %v265
    %v1151 = vunpack.c.h.b16 %v265
    %v1152 = vunpack.c.l.b16 %v266
    %v1153 = vunpack.c.h.b16 %v266
    %v1154 = vunpack.c.l.b16 %v267
    %v1155 = vunpack.c.h.b16 %v267
    %v1156 = vunpack.c.l.b16 %v268
    %v1157 = vunpack.c.h.b16 %v268
    %v1158 = vunpack.c.l.b16 %v269
    %v1159 = vunpack.c.h.b16 %v269
    %v1160 = vunpack.c.l.b16 %v270
    %v1161 = vunpack.c.h.b16 %v270
    %v1162 = vunpack.c.l.b16 %v271
    %v1163 = vunpack.c.h.b16 %v271
    %v1164 = vunpack.c.l.b16 %v272
    %v1165 = vunpack.c.h.b16 %v272
    %v1166 = vunpack.c.l.b16 %v273
    %v1167 = vunpack.c.h.b16 %v273
    %v1168 = vunpack.c.l.b16 %v274
    %v1169 = vunpack.c.h.b16 %v274
    %v1170 = vunpack.c.l.b16 %v275
    %v1171 = vunpack.c.h.b16 %v275
    %v1172 = vunpack.c.l.b16 %v276
    %v1173 = vunpack.c.h.b16 %v276
    %v1174 = vunpack.c.l.b16 %v277
    %v1175 = vunpack.c.h.b16 %v277
    %v1176 = vunpack.c.l.b16 %v278
    %v1177 = vunpack.c.h.b16 %v278
    %v1178 = vunpack.c.l.b16 %v279
    %v1179 = vunpack.c.h.b16 %v279
    %v1180 = vunpack.c.l.b16 %v280
    %v1181 = vunpack.c.h.b16 %v280
    %v1182 = vunpack.c.l.b16 %v281
    %v1183 = vunpack.c.h.b16 %v281
    %v1184 = vunpack.c.l.b16 %v282
    %v1185 = vunpack.c.h.b16 %v282
    %v1186 = vunpack.c.l.b16 %v283
    %v1187 = vunpack.c.h.b16 %v283
    %v1188 = vunpack.c.l.b16 %v284
    %v1189 = vunpack.c.h.b16 %v284
    %v1190 = vunpack.c.l.b16 %v285
    %v1191 = vunpack.c.h.b16 %v285
    %v1192 = vunpack.c.l.b16 %v286
    %v1193 = vunpack.c.h.b16 %v286
    %v1194 = vunpack.c.l.b16 %v287
    %v1195 = vunpack.c.h.b16 %v287
    %v1196 = vunpack.c.l.b16 %v288
    %v1197 = vunpack.c.h.b16 %v288
    %v1198 = vunpack.c.l.b16 %v289
    %v1199 = vunpack.c.h.b16 %v289
    %v1200 = vunpack.c.l.b16 %v290
    %v1201 = vunpack.c.h.b16 %v290
    %v1202 = vunpack.c.l.b16 %v291
    %v1203 = vunpack.c.h.b16 %v291
    %v1204 = vunpack.c.l.b16 %v292
    %v1205 = vunpack.c.h.b16 %v292
    %v1206 = vunpack.c.l.b16 %v293
    %v1207 = vunpack.c.h.b16 %v293
    %v1208 = vunpack.c.l.b16 %v294
    %v1209 = vunpack.c.h.b16 %v294
    %v1210 = vunpack.c.l.b16 %v295
    %v1211 = vunpack.c.h.b16 %v295
    %v1212 = vunpack.c.l.b16 %v296
    %v1213 = vunpack.c.h.b16 %v296
    %v1214 = vunpack.c.l.b16 %v297
    %v1215 = vunpack.c.h.b16 %v297
    %v1216 = vunpack.c.l.b16 %v298
    %v1217 = vunpack.c.h.b16 %v298
    %v1218 = vunpack.c.l.b16 %v299
    %v1219 = vunpack.c.h.b16 %v299
    %v1220 = vunpack.c.l.b16 %v300
    %v1221 = vunpack.c.h.b16 %v300
    %v1222 = vunpack.c.l.b16 %v301
    %v1223 = vunpack.c.h.b16 %v301
    %v1224 = vunpack.c.l.b16 %v302
    %v1225 = vunpack.c.h.b16 %v302
    %v1226 = vunpack.c.l.b16 %v303
    %v1227 = vunpack.c.h.b16 %v303
    %v1228 = vunpack.c.l.b16 %v304
    %v1229 = vunpack.c.h.b16 %v304
    %v1230 = vunpack.c.l.b16 %v305
    %v1231 = vunpack.c.h.b16 %v305
    %v1232 = vunpack.c.l.b16 %v306
    %v1233 = vunpack.c.h.b16 %v306
    %v1234 = vunpack.c.l.b16 %v307
    %v1235 = vunpack.c.h.b16 %v307
    %v1236 = vunpack.c.l.b16 %v308
    %v1237 = vunpack.c.h.b16 %v308
    %v1238 = vunpack.c.l.b16 %v309
    %v1239 = vunpack.c.h.b16 %v309
    %v1240 = vunpack.c.l.b16 %v310
    %v1241 = vunpack.c.h.b16 %v310
    %v1242 = vunpack.c.l.b16 %v311
    %v1243 = vunpack.c.h.b16 %v311
    %v1244 = vunpack.c.l.b16 %v312
    %v1245 = vunpack.c.h.b16 %v312
    %v1246 = vunpack.c.l.b16 %v313
    %v1247 = vunpack.c.h.b16 %v313
    %v1248 = vunpack.c.l.b16 %v314
    %v1249 = vunpack.c.h.b16 %v314
    %v1250 = vunpack.c.l.b16 %v315
    %v1251 = vunpack.c.h.b16 %v315
    %v1252 = vunpack.c.l.b16 %v316
    %v1253 = vunpack.c.h.b16 %v316
    %v1254 = vunpack.c.l.b16 %v317
    %v1255 = vunpack.c.h.b16 %v317
    %v1256 = vunpack.c.l.b16 %v318
    %v1257 = vunpack.c.h.b16 %v318
    %v1258 = vunpack.c.l.b16 %v319
    %v1259 = vunpack.c.h.b16 %v319
    %v1260 = vunpack.c.l.b16 %v320
    %v1261 = vunpack.c.h.b16 %v320
    %v1262 = vunpack.c.l.b16 %v321
    %v1263 = vunpack.c.h.b16 %v321
    %v1264 = vunpack.c.l.b16 %v322
    %v1265 = vunpack.c.h.b16 %v322
    %v1266 = vunpack.c.l.b16 %v323
    %v1267 = vunpack.c.h.b16 %v323
    %v1268 = vunpack.c.l.b16 %v324
    %v1269 = vunpack.c.h.b16 %v324
    %v1270 = vunpack.c.l.b16 %v325
    %v1271 = vunpack.c.h.b16 %v325
    %v1272 = vunpack.c.l.b16 %v326
    %v1273 = vunpack.c.h.b16 %v326
    %v1274 = vunpack.c.l.b16 %v327
    %v1275 = vunpack.c.h.b16 %v327
    %v1276 = vunpack.c.l.b16 %v328
    %v1277 = vunpack.c.h.b16 %v328
    %v1278 = vunpack.c.l.b16 %v329
    %v1279 = vunpack.c.h.b16 %v329
    %v1280 = vunpack.c.l.b16 %v330
    %v1281 = vunpack.c.h.b16 %v330
    %v1282 = vunpack.c.l.b16 %v331
    %v1283 = vunpack.c.h.b16 %v331
    %v1284 = vunpack.c.l.b16 %v332
    %v1285 = vunpack.c.h.b16 %v332
    %v1286 = vunpack.c.l.b16 %v333
    %v1287 = vunpack.c.h.b16 %v333
    %v1288 = vunpack.c.l.b16 %v334
    %v1289 = vunpack.c.h.b16 %v334
    %v1290 = vunpack.c.l.b16 %v335
    %v1291 = vunpack.c.h.b16 %v335
    %v1292 = vunpack.c.l.b16 %v336
    %v1293 = vunpack.c.h.b16 %v336
    %v1294 = vunpack.c.l.b16 %v337
    %v1295 = vunpack.c.h.b16 %v337
    %v1296 = vunpack.c.l.b16 %v338
    %v1297 = vunpack.c.h.b16 %v338
    %v1298 = vunpack.c.l.b16 %v339
    %v1299 = vunpack.c.h.b16 %v339
    %v1300 = vunpack.c.l.b16 %v340
    %v1301 = vunpack.c.h.b16 %v340
    %v1302 = vunpack.c.l.b16 %v341
    %v1303 = vunpack.c.h.b16 %v341
    %v1304 = vunpack.c.l.b16 %v342
    %v1305 = vunpack.c.h.b16 %v342
    %v1306 = vunpack.c.l.b16 %v343
    %v1307 = vunpack.c.h.b16 %v343
    %v1308 = vunpack.c.l.b16 %v344
    %v1309 = vunpack.c.h.b16 %v344
    %v1310 = vunpack.c.l.b16 %v345
    %v1311 = vunpack.c.h.b16 %v345
    %v1312 = vunpack.c.l.b16 %v346
    %v1313 = vunpack.c.h.b16 %v346
    %v1314 = vunpack.c.l.b16 %v347
    %v1315 = vunpack.c.h.b16 %v347
    %v1316 = vunpack.c.l.b16 %v348
    %v1317 = vunpack.c.h.b16 %v348
    %v1318 = vunpack.c.l.b16 %v349
    %v1319 = vunpack.c.h.b16 %v349
    %v1320 = vunpack.c.l.b16 %v350
    %v1321 = vunpack.c.h.b16 %v350
    %v1322 = vunpack.c.l.b16 %v351
    %v1323 = vunpack.c.h.b16 %v351
    %v1324 = vunpack.c.l.b16 %v352
    %v1325 = vunpack.c.h.b16 %v352
    %v1326 = vunpack.c.l.b16 %v353
    %v1327 = vunpack.c.h.b16 %v353
    %v1328 = vunpack.c.l.b16 %v354
    %v1329 = vunpack.c.h.b16 %v354
    %v1330 = vunpack.c.l.b16 %v355
    %v1331 = vunpack.c.h.b16 %v355
    %v1332 = vunpack.c.l.b16 %v356
    %v1333 = vunpack.c.h.b16 %v356
    %v1334 = vunpack.c.l.b16 %v357
    %v1335 = vunpack.c.h.b16 %v357
    %v1336 = vunpack.c.l.b16 %v358
    %v1337 = vunpack.c.h.b16 %v358
    %v1338 = vunpack.c.l.b16 %v359
    %v1339 = vunpack.c.h.b16 %v359
    %v1340 = vunpack.c.l.b16 %v360
    %v1341 = vunpack.c.h.b16 %v360
    %v1342 = vunpack.c.l.b16 %v361
    %v1343 = vunpack.c.h.b16 %v361
    %v1344 = vunpack.c.l.b16 %v362
    %v1345 = vunpack.c.h.b16 %v362
    %v1346 = vunpack.c.l.b16 %v363
    %v1347 = vunpack.c.h.b16 %v363
    %v1348 = vunpack.c.l.b16 %v364
    %v1349 = vunpack.c.h.b16 %v364
    %v1350 = vunpack.c.l.b16 %v365
    %v1351 = vunpack.c.h.b16 %v365
    %v1352 = vunpack.c.l.b16 %v366
    %v1353 = vunpack.c.h.b16 %v366
    %v1354 = vunpack.c.l.b16 %v367
    %v1355 = vunpack.c.h.b16 %v367
    %v1356 = vunpack.c.l.b16 %v368
    %v1357 = vunpack.c.h.b16 %v368
    %v1358 = vunpack.c.l.b16 %v369
    %v1359 = vunpack.c.h.b16 %v369
    %v1360 = vunpack.c.l.b16 %v370
    %v1361 = vunpack.c.h.b16 %v370
    %v1362 = vunpack.c.l.b16 %v371
    %v1363 = vunpack.c.h.b16 %v371
    %v1364 = vunpack.c.l.b16 %v372
    %v1365 = vunpack.c.h.b16 %v372
    %v1366 = vunpack.c.l.b16 %v373
    %v1367 = vunpack.c.h.b16 %v373
    %v1368 = vunpack.c.l.b16 %v374
    %v1369 = vunpack.c.h.b16 %v374
    %v1370 = vunpack.c.l.b16 %v375
    %v1371 = vunpack.c.h.b16 %v375
    %v1372 = vunpack.c.l.b16 %v376
    %v1373 = vunpack.c.h.b16 %v376
    %v1374 = vunpack.c.l.b16 %v377
    %v1375 = vunpack.c.h.b16 %v377
    %v1376 = vunpack.c.l.b16 %v378
    %v1377 = vunpack.c.h.b16 %v378
    %v1378 = vunpack.c.l.b16 %v379
    %v1379 = vunpack.c.h.b16 %v379
    %v1380 = vunpack.c.l.b16 %v380
    %v1381 = vunpack.c.h.b16 %v380
    %v1382 = vunpack.c.l.b16 %v381
    %v1383 = vunpack.c.h.b16 %v381
    %v1384 = vunpack.c.l.b16 %v382
    %v1385 = vunpack.c.h.b16 %v382
    %v1386 = vunpack.c.l.b16 %v383
    %v1387 = vunpack.c.h.b16 %v383
    %v1388 = vunpack.c.l.b16 %v384
    %v1389 = vunpack.c.h.b16 %v384
    %v1390 = vunpack.c.l.b16 %v385
    %v1391 = vunpack.c.h.b16 %v385
    %v1392 = vunpack.c.l.b16 %v386
    %v1393 = vunpack.c.h.b16 %v386
    %v1394 = vunpack.c.l.b16 %v387
    %v1395 = vunpack.c.h.b16 %v387
    %v1396 = vunpack.c.l.b16 %v388
    %v1397 = vunpack.c.h.b16 %v388
    %v1398 = vunpack.c.l.b16 %v389
    %v1399 = vunpack.c.h.b16 %v389
    %v1400 = vunpack.c.l.b16 %v390
    %v1401 = vunpack.c.h.b16 %v390
    %v1402 = vunpack.c.l.b16 %v391
    %v1403 = vunpack.c.h.b16 %v391
    %v1404 = vunpack.c.l.b16 %v392
    %v1405 = vunpack.c.h.b16 %v392
    %v1406 = vunpack.c.l.b16 %v393
    %v1407 = vunpack.c.h.b16 %v393
    %v1408 = vunpack.c.l.b16 %v394
    %v1409 = vunpack.c.h.b16 %v394
    %v1410 = vunpack.c.l.b16 %v395
    %v1411 = vunpack.c.h.b16 %v395
    %v1412 = vunpack.c.l.b16 %v396
    %v1413 = vunpack.c.h.b16 %v396
    %v1414 = vunpack.c.l.b16 %v397
    %v1415 = vunpack.c.h.b16 %v397
    %v1416 = vunpack.c.l.b16 %v398
    %v1417 = vunpack.c.h.b16 %v398
    %v1418 = vunpack.c.l.b16 %v399
    %v1419 = vunpack.c.h.b16 %v399
    %v1420 = vunpack.c.l.b16 %v400
    %v1421 = vunpack.c.h.b16 %v400
    %v1422 = vunpack.c.l.b16 %v401
    %v1423 = vunpack.c.h.b16 %v401
    %v1424 = vunpack.c.l.b16 %v402
    %v1425 = vunpack.c.h.b16 %v402
    %v1426 = vunpack.c.l.b16 %v403
    %v1427 = vunpack.c.h.b16 %v403
    %v1428 = vunpack.c.l.b16 %v404
    %v1429 = vunpack.c.h.b16 %v404
    %v1430 = vunpack.c.l.b16 %v405
    %v1431 = vunpack.c.h.b16 %v405
    %v1432 = vunpack.c.l.b16 %v406
    %v1433 = vunpack.c.h.b16 %v406
    %v1434 = vunpack.c.l.b16 %v407
    %v1435 = vunpack.c.h.b16 %v407
    %v1436 = vunpack.c.l.b16 %v408
    %v1437 = vunpack.c.h.b16 %v408
    %v1438 = vunpack.c.l.b16 %v409
    %v1439 = vunpack.c.h.b16 %v409
    %v1440 = vunpack.c.l.b16 %v410
    %v1441 = vunpack.c.h.b16 %v410
    %v1442 = vunpack.c.l.b16 %v411
    %v1443 = vunpack.c.h.b16 %v411
    %v1444 = vunpack.c.l.b16 %v412
    %v1445 = vunpack.c.h.b16 %v412
    %v1446 = vunpack.c.l.b16 %v413
    %v1447 = vunpack.c.h.b16 %v413
    %v1448 = vunpack.c.l.b16 %v414
    %v1449 = vunpack.c.h.b16 %v414
    %v1450 = vunpack.c.l.b16 %v415
    %v1451 = vunpack.c.h.b16 %v415
    %v1452 = vunpack.c.l.b16 %v416
    %v1453 = vunpack.c.h.b16 %v416
    %v1454 = vunpack.c.l.b16 %v417
    %v1455 = vunpack.c.h.b16 %v417
    %v1456 = vunpack.c.l.b16 %v418
    %v1457 = vunpack.c.h.b16 %v418
    %v1458 = vunpack.c.l.b16 %v419
    %v1459 = vunpack.c.h.b16 %v419
    %v1460 = vunpack.c.l.b16 %v420
    %v1461 = vunpack.c.h.b16 %v420
    %v1462 = vunpack.c.l.b16 %v421
    %v1463 = vunpack.c.h.b16 %v421
    %v1464 = vunpack.c.l.b16 %v422
    %v1465 = vunpack.c.h.b16 %v422
    %v1466 = vunpack.c.l.b16 %v423
    %v1467 = vunpack.c.h.b16 %v423
    %v1468 = vunpack.c.l.b16 %v424
    %v1469 = vunpack.c.h.b16 %v424
    %v1470 = vunpack.c.l.b16 %v425
    %v1471 = vunpack.c.h.b16 %v425
    %v1472 = vunpack.c.l.b16 %v426
    %v1473 = vunpack.c.h.b16 %v426
    %v1474 = vunpack.c.l.b16 %v427
    %v1475 = vunpack.c.h.b16 %v427
    %v1476 = vunpack.c.l.b16 %v428
    %v1477 = vunpack.c.h.b16 %v428
    %v1478 = vunpack.c.l.b16 %v429
    %v1479 = vunpack.c.h.b16 %v429
    %v1480 = vunpack.c.l.b16 %v430
    %v1481 = vunpack.c.h.b16 %v430
    %v1482 = vunpack.c.l.b16 %v431
    %v1483 = vunpack.c.h.b16 %v431
    %v1484 = vunpack.c.l.b16 %v432
    %v1485 = vunpack.c.h.b16 %v432
    %v1486 = vunpack.c.l.b16 %v433
    %v1487 = vunpack.c.h.b16 %v433
    %v1488 = vunpack.c.l.b16 %v434
    %v1489 = vunpack.c.h.b16 %v434
    %v1490 = vunpack.c.l.b16 %v435
    %v1491 = vunpack.c.h.b16 %v435
    %v1492 = vunpack.c.l.b16 %v436
    %v1493 = vunpack.c.h.b16 %v436
    %v1494 = vunpack.c.l.b16 %v437
    %v1495 = vunpack.c.h.b16 %v437
    %v1496 = vunpack.c.l.b16 %v438
    %v1497 = vunpack.c.h.b16 %v438
    %v1498 = vunpack.c.l.b16 %v439
    %v1499 = vunpack.c.h.b16 %v439
    %v1500 = vunpack.c.l.b16 %v440
    %v1501 = vunpack.c.h.b16 %v440
    %v1502 = vunpack.c.l.b16 %v441
    %v1503 = vunpack.c.h.b16 %v441
    %v1504 = vunpack.c.l.b16 %v442
    %v1505 = vunpack.c.h.b16 %v442
    %v1506 = vunpack.c.l.b16 %v443
    %v1507 = vunpack.c.h.b16 %v443
    %v1508 = vunpack.c.l.b16 %v444
    %v1509 = vunpack.c.h.b16 %v444
    %v1510 = vunpack.c.l.b16 %v445
    %v1511 = vunpack.c.h.b16 %v445
    %v1512 = vunpack.c.l.b16 %v446
    %v1513 = vunpack.c.h.b16 %v446
    %v1514 = vunpack.c.l.b16 %v447
    %v1515 = vunpack.c.h.b16 %v447
    %v1516 = vunpack.c.l.b16 %v448
    %v1517 = vunpack.c.h.b16 %v448
    %v1518 = vunpack.c.l.b16 %v449
    %v1519 = vunpack.c.h.b16 %v449
    %v1520 = vunpack.c.l.b16 %v450
    %v1521 = vunpack.c.h.b16 %v450
    %v1522 = vunpack.c.l.b16 %v451
    %v1523 = vunpack.c.h.b16 %v451
    %v1524 = vunpack.c.l.b16 %v452
    %v1525 = vunpack.c.h.b16 %v452
    %v1526 = vunpack.c.l.b16 %v453
    %v1527 = vunpack.c.h.b16 %v453
    %v1528 = vunpack.c.l.b16 %v454
    %v1529 = vunpack.c.h.b16 %v454
    %v1530 = vunpack.c.l.b16 %v455
    %v1531 = vunpack.c.h.b16 %v455
    %v1532 = vunpack.c.l.b16 %v456
    %v1533 = vunpack.c.h.b16 %v456
    %v1534 = vunpack.c.l.b16 %v457
    %v1535 = vunpack.c.h.b16 %v457
    %v1536 = vunpack.c.l.b16 %v458
    %v1537 = vunpack.c.h.b16 %v458
    %v1538 = vunpack.c.l.b16 %v459
    %v1539 = vunpack.c.h.b16 %v459
    %v1540 = vunpack.c.l.b16 %v460
    %v1541 = vunpack.c.h.b16 %v460
    %v1542 = vunpack.c.l.b16 %v461
    %v1543 = vunpack.c.h.b16 %v461
    %v1544 = vunpack.c.l.b16 %v462
    %v1545 = vunpack.c.h.b16 %v462
    %v1546 = vunpack.c.l.b16 %v463
    %v1547 = vunpack.c.h.b16 %v463
    %v1548 = vunpack.c.l.b16 %v464
    %v1549 = vunpack.c.h.b16 %v464
    %v1550 = vunpack.c.l.b16 %v465
    %v1551 = vunpack.c.h.b16 %v465
    %v1552 = vunpack.c.l.b16 %v466
    %v1553 = vunpack.c.h.b16 %v466
    %v1554 = vunpack.c.l.b16 %v467
    %v1555 = vunpack.c.h.b16 %v467
    %v1556 = vunpack.c.l.b16 %v468
    %v1557 = vunpack.c.h.b16 %v468
    %v1558 = vunpack.c.l.b16 %v469
    %v1559 = vunpack.c.h.b16 %v469
    %v1560 = vunpack.c.l.b16 %v470
    %v1561 = vunpack.c.h.b16 %v470
    %v1562 = vunpack.c.l.b16 %v471
    %v1563 = vunpack.c.h.b16 %v471
    %v1564 = vunpack.c.l.b16 %v472
    %v1565 = vunpack.c.h.b16 %v472
    %v1566 = vunpack.c.l.b16 %v473
    %v1567 = vunpack.c.h.b16 %v473
    %v1568 = vunpack.c.l.b16 %v474
    %v1569 = vunpack.c.h.b16 %v474
    %v1570 = vunpack.c.l.b16 %v475
    %v1571 = vunpack.c.h.b16 %v475
    %v1572 = vunpack.c.l.b16 %v476
    %v1573 = vunpack.c.h.b16 %v476
    %v1574 = vunpack.c.l.b16 %v477
    %v1575 = vunpack.c.h.b16 %v477
    %v1576 = vunpack.c.l.b16 %v478
    %v1577 = vunpack.c.h.b16 %v478
    %v1578 = vunpack.c.l.b16 %v479
    %v1579 = vunpack.c.h.b16 %v479
    %v1580 = vunpack.c.l.b16 %v480
    %v1581 = vunpack.c.h.b16 %v480
    %v1582 = vunpack.c.l.b16 %v481
    %v1583 = vunpack.c.h.b16 %v481
    %v1584 = vunpack.c.l.b16 %v482
    %v1585 = vunpack.c.h.b16 %v482
    %v1586 = vunpack.c.l.b16 %v483
    %v1587 = vunpack.c.h.b16 %v483
    %v1588 = vunpack.c.l.b16 %v484
    %v1589 = vunpack.c.h.b16 %v484
    %v1590 = vunpack.c.l.b16 %v485
    %v1591 = vunpack.c.h.b16 %v485
    %v1592 = vunpack.c.l.b16 %v486
    %v1593 = vunpack.c.h.b16 %v486
    %v1594 = vunpack.c.l.b16 %v487
    %v1595 = vunpack.c.h.b16 %v487
    %v1596 = vunpack.c.l.b16 %v488
    %v1597 = vunpack.c.h.b16 %v488
    %v1598 = vunpack.c.l.b16 %v489
    %v1599 = vunpack.c.h.b16 %v489
    %v1600 = vunpack.c.l.b16 %v490
    %v1601 = vunpack.c.h.b16 %v490
    %v1602 = vunpack.c.l.b16 %v491
    %v1603 = vunpack.c.h.b16 %v491
    %v1604 = vunpack.c.l.b16 %v492
    %v1605 = vunpack.c.h.b16 %v492
    %v1606 = vunpack.c.l.b16 %v493
    %v1607 = vunpack.c.h.b16 %v493
    %v1608 = vunpack.c.l.b16 %v494
    %v1609 = vunpack.c.h.b16 %v494
    %v1610 = vunpack.c.l.b16 %v495
    %v1611 = vunpack.c.h.b16 %v495
    %v1612 = vunpack.c.l.b16 %v496
    %v1613 = vunpack.c.h.b16 %v496
    %v1614 = vunpack.c.l.b16 %v497
    %v1615 = vunpack.c.h.b16 %v497
    %v1616 = vunpack.c.l.b16 %v498
    %v1617 = vunpack.c.h.b16 %v498
    %v1618 = vunpack.c.l.b16 %v499
    %v1619 = vunpack.c.h.b16 %v499
    %v1620 = vunpack.c.l.b16 %v500
    %v1621 = vunpack.c.h.b16 %v500
    %v1622 = vunpack.c.l.b16 %v501
    %v1623 = vunpack.c.h.b16 %v501
    %v1624 = vunpack.c.l.b16 %v502
    %v1625 = vunpack.c.h.b16 %v502
    %v1626 = vunpack.c.l.b16 %v503
    %v1627 = vunpack.c.h.b16 %v503
    %v1628 = vunpack.c.l.b16 %v504
    %v1629 = vunpack.c.h.b16 %v504
    %v1630 = vunpack.c.l.b16 %v505
    %v1631 = vunpack.c.h.b16 %v505
    %v1632 = vunpack.c.l.b16 %v506
    %v1633 = vunpack.c.h.b16 %v506
    %v1634 = vunpack.c.l.b16 %v507
    %v1635 = vunpack.c.h.b16 %v507
    %v1636 = vunpack.c.l.b16 %v508
    %v1637 = vunpack.c.h.b16 %v508
    %v1638 = vunpack.c.l.b16 %v509
    %v1639 = vunpack.c.h.b16 %v509
    %v1640 = vunpack.c.l.b16 %v510
    %v1641 = vunpack.c.h.b16 %v510
    %v1642 = vunpack.c.l.b16 %v511
    %v1643 = vunpack.c.h.b16 %v511
    %v1644 = vunpack.c.l.b16 %v512
    %v1645 = vunpack.c.h.b16 %v512
    %v1646 = vunpack.c.l.b16 %v513
    %v1647 = vunpack.c.h.b16 %v513
    %v1648 = vunpack.c.l.b16 %v514
    %v1649 = vunpack.c.h.b16 %v514
    %v1650 = vunpack.c.l.b16 %v515
    %v1651 = vunpack.c.h.b16 %v515
    %v1652 = vunpack.c.l.b16 %v516
    %v1653 = vunpack.c.h.b16 %v516
    %v1654 = vunpack.c.l.b16 %v517
    %v1655 = vunpack.c.h.b16 %v517
    %v1656 = vunpack.c.l.b16 %v518
    %v1657 = vunpack.c.h.b16 %v518
    %v1658 = vunpack.c.l.b16 %v519
    %v1659 = vunpack.c.h.b16 %v519
    %v1660 = vunpack.c.l.b16 %v520
    %v1661 = vunpack.c.h.b16 %v520
    %v1662 = vunpack.c.l.b16 %v521
    %v1663 = vunpack.c.h.b16 %v521
    %v1664 = vunpack.c.l.b16 %v522
    %v1665 = vunpack.c.h.b16 %v522
    %v1666 = vunpack.c.l.b16 %v523
    %v1667 = vunpack.c.h.b16 %v523
    %v1668 = vunpack.c.l.b16 %v524
    %v1669 = vunpack.c.h.b16 %v524
    %v1670 = vunpack.c.l.b16 %v525
    %v1671 = vunpack.c.h.b16 %v525
    %v1672 = vunpack.c.l.b16 %v526
    %v1673 = vunpack.c.h.b16 %v526
    %v1674 = vunpack.c.l.b16 %v527
    %v1675 = vunpack.c.h.b16 %v527
    %v1676 = vunpack.c.l.b16 %v528
    %v1677 = vunpack.c.h.b16 %v528
    %v1678 = vunpack.c.l.b16 %v529
    %v1679 = vunpack.c.h.b16 %v529
    %v1680 = vunpack.c.l.b16 %v530
    %v1681 = vunpack.c.h.b16 %v530
    %v1682 = vunpack.c.l.b16 %v531
    %v1683 = vunpack.c.h.b16 %v531
    %v1684 = vunpack.c.l.b16 %v532
    %v1685 = vunpack.c.h.b16 %v532
    %v1686 = vunpack.c.l.b16 %v533
    %v1687 = vunpack.c.h.b16 %v533
    %v1688 = vunpack.c.l.b16 %v534
    %v1689 = vunpack.c.h.b16 %v534
    %v1690 = vunpack.c.l.b16 %v535
    %v1691 = vunpack.c.h.b16 %v535
    %v1692 = vunpack.c.l.b16 %v536
    %v1693 = vunpack.c.h.b16 %v536
    %v1694 = vunpack.c.l.b16 %v537
    %v1695 = vunpack.c.h.b16 %v537
    %v1696 = vunpack.c.l.b16 %v538
    %v1697 = vunpack.c.h.b16 %v538
    %v1698 = vunpack.c.l.b16 %v539
    %v1699 = vunpack.c.h.b16 %v539
    %v1700 = vunpack.c.l.b16 %v540
    %v1701 = vunpack.c.h.b16 %v540
    %v1702 = vunpack.c.l.b16 %v541
    %v1703 = vunpack.c.h.b16 %v541
    %v1704 = vunpack.c.l.b16 %v542
    %v1705 = vunpack.c.h.b16 %v542
    %v1706 = vunpack.c.l.b16 %v543
    %v1707 = vunpack.c.h.b16 %v543
    %v1708 = vunpack.c.l.b16 %v544
    %v1709 = vunpack.c.h.b16 %v544
    %v1710 = vunpack.c.l.b16 %v545
    %v1711 = vunpack.c.h.b16 %v545
    %v1712 = vunpack.c.l.b16 %v546
    %v1713 = vunpack.c.h.b16 %v546
    %v1714 = vunpack.c.l.b16 %v547
    %v1715 = vunpack.c.h.b16 %v547
    %v1716 = vunpack.c.l.b16 %v548
    %v1717 = vunpack.c.h.b16 %v548
    %v1718 = vunpack.c.l.b16 %v549
    %v1719 = vunpack.c.h.b16 %v549
    %v1720 = vunpack.c.l.b16 %v550
    %v1721 = vunpack.c.h.b16 %v550
    %v1722 = vunpack.c.l.b16 %v551
    %v1723 = vunpack.c.h.b16 %v551
    %v1724 = vunpack.c.l.b16 %v552
    %v1725 = vunpack.c.h.b16 %v552
    %v1726 = vunpack.c.l.b16 %v553
    %v1727 = vunpack.c.h.b16 %v553
    %v1728 = vunpack.c.l.b16 %v554
    %v1729 = vunpack.c.h.b16 %v554
    %v1730 = vunpack.c.l.b16 %v555
    %v1731 = vunpack.c.h.b16 %v555
    %v1732 = vpack.c.b16 %v956, %v948
    %v1733 = vpack.c.b16 %v957, %v949
    %v1734 = vpack.c.b16 %v958, %v950
    %v1735 = vpack.c.b16 %v959, %v951
    %v1736 = vpack.c.b16 %v960, %v952
    %v1737 = vpack.c.b16 %v961, %v953
    %v1738 = vpack.c.b16 %v962, %v954
    %v1739 = vpack.c.b16 %v963, %v955
    %v1740 = vpack.c.b16 %v972, %v964
    %v1741 = vpack.c.b16 %v973, %v965
    %v1742 = vpack.c.b16 %v974, %v966
    %v1743 = vpack.c.b16 %v975, %v967
    %v1744 = vpack.c.b16 %v976, %v968
    %v1745 = vpack.c.b16 %v977, %v969
    %v1746 = vpack.c.b16 %v978, %v970
    %v1747 = vpack.c.b16 %v979, %v971
    %v1748 = vpack.c.b16 %v988, %v980
    %v1749 = vpack.c.b16 %v989, %v981
    %v1750 = vpack.c.b16 %v990, %v982
    %v1751 = vpack.c.b16 %v991, %v983
    %v1752 = vpack.c.b16 %v992, %v984
    %v1753 = vpack.c.b16 %v993, %v985
    %v1754 = vpack.c.b16 %v994, %v986
    %v1755 = vpack.c.b16 %v995, %v987
    %v1756 = vpack.c.b16 %v1004, %v996
    %v1757 = vpack.c.b16 %v1005, %v997
    %v1758 = vpack.c.b16 %v1006, %v998
    %v1759 = vpack.c.b16 %v1007, %v999
    %v1760 = vpack.c.b16 %v1008, %v1000
    %v1761 = vpack.c.b16 %v1009, %v1001
    %v1762 = vpack.c.b16 %v1010, %v1002
    %v1763 = vpack.c.b16 %v1011, %v1003
    %v1764 = vpack.c.b16 %v1020, %v1012
    %v1765 = vpack.c.b16 %v1021, %v1013
    %v1766 = vpack.c.b16 %v1022, %v1014
    %v1767 = vpack.c.b16 %v1023, %v1015
    %v1768 = vpack.c.b16 %v1024, %v1016
    %v1769 = vpack.c.b16 %v1025, %v1017
    %v1770 = vpack.c.b16 %v1026, %v1018
    %v1771 = vpack.c.b16 %v1027, %v1019
    %v1772 = vpack.c.b16 %v1036, %v1028
    %v1773 = vpack.c.b16 %v1037, %v1029
    %v1774 = vpack.c.b16 %v1038, %v1030
    %v1775 = vpack.c.b16 %v1039, %v1031
    %v1776 = vpack.c.b16 %v1040, %v1032
    %v1777 = vpack.c.b16 %v1041, %v1033
    %v1778 = vpack.c.b16 %v1042, %v1034
    %v1779 = vpack.c.b16 %v1043, %v1035
    %v1780 = vpack.c.b16 %v1052, %v1044
    %v1781 = vpack.c.b16 %v1053, %v1045
    %v1782 = vpack.c.b16 %v1054, %v1046
    %v1783 = vpack.c.b16 %v1055, %v1047
    %v1784 = vpack.c.b16 %v1056, %v1048
    %v1785 = vpack.c.b16 %v1057, %v1049
    %v1786 = vpack.c.b16 %v1058, %v1050
    %v1787 = vpack.c.b16 %v1059, %v1051
    %v1788 = vpack.c.b16 %v1068, %v1060
    %v1789 = vpack.c.b16 %v1069, %v1061
    %v1790 = vpack.c.b16 %v1070, %v1062
    %v1791 = vpack.c.b16 %v1071, %v1063
    %v1792 = vpack.c.b16 %v1072, %v1064
    %v1793 = vpack.c.b16 %v1073, %v1065
    %v1794 = vpack.c.b16 %v1074, %v1066
    %v1795 = vpack.c.b16 %v1075, %v1067
    %v1796 = vpack.c.b16 %v1084, %v1076
    %v1797 = vpack.c.b16 %v1085, %v1077
    %v1798 = vpack.c.b16 %v1086, %v1078
    %v1799 = vpack.c.b16 %v1087, %v1079
    %v1800 = vpack.c.b16 %v1088, %v1080
    %v1801 = vpack.c.b16 %v1089, %v1081
    %v1802 = vpack.c.b16 %v1090, %v1082
    %v1803 = vpack.c.b16 %v1091, %v1083
    %v1804 = vpack.c.b16 %v1100, %v1092
    %v1805 = vpack.c.b16 %v1101, %v1093
    %v1806 = vpack.c.b16 %v1102, %v1094
    %v1807 = vpack.c.b16 %v1103, %v1095
    %v1808 = vpack.c.b16 %v1104, %v1096
    %v1809 = vpack.c.b16 %v1105, %v1097
    %v1810 = vpack.c.b16 %v1106, %v1098
    %v1811 = vpack.c.b16 %v1107, %v1099
    %v1812 = vpack.c.b16 %v1116, %v1108
    %v1813 = vpack.c.b16 %v1117, %v1109
    %v1814 = vpack.c.b16 %v1118, %v1110
    %v1815 = vpack.c.b16 %v1119, %v1111
    %v1816 = vpack.c.b16 %v1120, %v1112
    %v1817 = vpack.c.b16 %v1121, %v1113
    %v1818 = vpack.c.b16 %v1122, %v1114
    %v1819 = vpack.c.b16 %v1123, %v1115
    %v1820 = vpack.c.b16 %v1132, %v1124
    %v1821 = vpack.c.b16 %v1133, %v1125
    %v1822 = vpack.c.b16 %v1134, %v1126
    %v1823 = vpack.c.b16 %v1135, %v1127
    %v1824 = vpack.c.b16 %v1136, %v1128
    %v1825 = vpack.c.b16 %v1137, %v1129
    %v1826 = vpack.c.b16 %v1138, %v1130
    %v1827 = vpack.c.b16 %v1139, %v1131
    %v1828 = vpack.c.b16 %v1148, %v1140
    %v1829 = vpack.c.b16 %v1149, %v1141
    %v1830 = vpack.c.b16 %v1150, %v1142
    %v1831 = vpack.c.b16 %v1151, %v1143
    %v1832 = vpack.c.b16 %v1152, %v1144
    %v1833 = vpack.c.b16 %v1153, %v1145
    %v1834 = vpack.c.b16 %v1154, %v1146
    %v1835 = vpack.c.b16 %v1155, %v1147
    %v1836 = vpack.c.b16 %v1164, %v1156
    %v1837 = vpack.c.b16 %v1165, %v1157
    %v1838 = vpack.c.b16 %v1166, %v1158
    %v1839 = vpack.c.b16 %v1167, %v1159
    %v1840 = vpack.c.b16 %v1168, %v1160
    %v1841 = vpack.c.b16 %v1169, %v1161
    %v1842 = vpack.c.b16 %v1170, %v1162
    %v1843 = vpack.c.b16 %v1171, %v1163
    %v1844 = vpack.c.b16 %v1180, %v1172
    %v1845 = vpack.c.b16 %v1181, %v1173
    %v1846 = vpack.c.b16 %v1182, %v1174
    %v1847 = vpack.c.b16 %v1183, %v1175
    %v1848 = vpack.c.b16 %v1184, %v1176
    %v1849 = vpack.c.b16 %v1185, %v1177
    %v1850 = vpack.c.b16 %v1186, %v1178
    %v1851 = vpack.c.b16 %v1187, %v1179
    %v1852 = vpack.c.b16 %v1196, %v1188
    %v1853 = vpack.c.b16 %v1197, %v1189
    %v1854 = vpack.c.b16 %v1198, %v1190
    %v1855 = vpack.c.b16 %v1199, %v1191
    %v1856 = vpack.c.b16 %v1200, %v1192
    %v1857 = vpack.c.b16 %v1201, %v1193
    %v1858 = vpack.c.b16 %v1202, %v1194
    %v1859 = vpack.c.b16 %v1203, %v1195
    %v1860 = vpack.c.b16 %v1212, %v1204
    %v1861 = vpack.c.b16 %v1213, %v1205
    %v1862 = vpack.c.b16 %v1214, %v1206
    %v1863 = vpack.c.b16 %v1215, %v1207
    %v1864 = vpack.c.b16 %v1216, %v1208
    %v1865 = vpack.c.b16 %v1217, %v1209
    %v1866 = vpack.c.b16 %v1218, %v1210
    %v1867 = vpack.c.b16 %v1219, %v1211
    %v1868 = vpack.c.b16 %v1228, %v1220
    %v1869 = vpack.c.b16 %v1229, %v1221
    %v1870 = vpack.c.b16 %v1230, %v1222
    %v1871 = vpack.c.b16 %v1231, %v1223
    %v1872 = vpack.c.b16 %v1232, %v1224
    %v1873 = vpack.c.b16 %v1233, %v1225
    %v1874 = vpack.c.b16 %v1234, %v1226
    %v1875 = vpack.c.b16 %v1235, %v1227
    %v1876 = vpack.c.b16 %v1244, %v1236
    %v1877 = vpack.c.b16 %v1245, %v1237
    %v1878 = vpack.c.b16 %v1246, %v1238
    %v1879 = vpack.c.b16 %v1247, %v1239
    %v1880 = vpack.c.b16 %v1248, %v1240
    %v1881 = vpack.c.b16 %v1249, %v1241
    %v1882 = vpack.c.b16 %v1250, %v1242
    %v1883 = vpack.c.b16 %v1251, %v1243
    %v1884 = vpack.c.b16 %v1260, %v1252
    %v1885 = vpack.c.b16 %v1261, %v1253
    %v1886 = vpack.c.b16 %v1262, %v1254
    %v1887 = vpack.c.b16 %v1263, %v1255
    %v1888 = vpack.c.b16 %v1264, %v1256
    %v1889 = vpack.c.b16 %v1265, %v1257
    %v1890 = vpack.c.b16 %v1266, %v1258
    %v1891 = vpack.c.b16 %v1267, %v1259
    %v1892 = vpack.c.b16 %v1276, %v1268
    %v1893 = vpack.c.b16 %v1277, %v1269
    %v1894 = vpack.c.b16 %v1278, %v1270
    %v1895 = vpack.c.b16 %v1279, %v1271
    %v1896 = vpack.c.b16 %v1280, %v1272
    %v1897 = vpack.c.b16 %v1281, %v1273
    %v1898 = vpack.c.b16 %v1282, %v1274
    %v1899 = vpack.c.b16 %v1283, %v1275
    %v1900 = vpack.c.b16 %v1292, %v1284
    %v1901 = vpack.c.b16 %v1293, %v1285
    %v1902 = vpack.c.b16 %v1294, %v1286
    %v1903 = vpack.c.b16 %v1295, %v1287
    %v1904 = vpack.c.b16 %v1296, %v1288
    %v1905 = vpack.c.b16 %v1297, %v1289
    %v1906 = vpack.c.b16 %v1298, %v1290
    %v1907 = vpack.c.b16 %v1299, %v1291
    %v1908 = vpack.c.b16 %v1308, %v1300
    %v1909 = vpack.c.b16 %v1309, %v1301
    %v1910 = vpack.c.b16 %v1310, %v1302
    %v1911 = vpack.c.b16 %v1311, %v1303
    %v1912 = vpack.c.b16 %v1312, %v1304
    %v1913 = vpack.c.b16 %v1313, %v1305
    %v1914 = vpack.c.b16 %v1314, %v1306
    %v1915 = vpack.c.b16 %v1315, %v1307
    %v1916 = vpack.c.b16 %v1324, %v1316
    %v1917 = vpack.c.b16 %v1325, %v1317
    %v1918 = vpack.c.b16 %v1326, %v1318
    %v1919 = vpack.c.b16 %v1327, %v1319
    %v1920 = vpack.c.b16 %v1328, %v1320
    %v1921 = vpack.c.b16 %v1329, %v1321
    %v1922 = vpack.c.b16 %v1330, %v1322
    %v1923 = vpack.c.b16 %v1331, %v1323
    %v1924 = vpack.c.b16 %v1340, %v1332
    %v1925 = vpack.c.b16 %v1341, %v1333
    %v1926 = vpack.c.b16 %v1342, %v1334
    %v1927 = vpack.c.b16 %v1343, %v1335
    %v1928 = vpack.c.b16 %v1344, %v1336
    %v1929 = vpack.c.b16 %v1345, %v1337
    %v1930 = vpack.c.b16 %v1346, %v1338
    %v1931 = vpack.c.b16 %v1347, %v1339
    %v1932 = vpack.c.b16 %v1356, %v1348
    %v1933 = vpack.c.b16 %v1357, %v1349
    %v1934 = vpack.c.b16 %v1358, %v1350
    %v1935 = vpack.c.b16 %v1359, %v1351
    %v1936 = vpack.c.b16 %v1360, %v1352
    %v1937 = vpack.c.b16 %v1361, %v1353
    %v1938 = vpack.c.b16 %v1362, %v1354
    %v1939 = vpack.c.b16 %v1363, %v1355
    %v1940 = vpack.c.b16 %v1372, %v1364
    %v1941 = vpack.c.b16 %v1373, %v1365
    %v1942 = vpack.c.b16 %v1374, %v1366
    %v1943 = vpack.c.b16 %v1375, %v1367
    %v1944 = vpack.c.b16 %v1376, %v1368
    %v1945 = vpack.c.b16 %v1377, %v1369
    %v1946 = vpack.c.b16 %v1378, %v1370
    %v1947 = vpack.c.b16 %v1379, %v1371
    %v1948 = vpack.c.b16 %v1388, %v1380
    %v1949 = vpack.c.b16 %v1389, %v1381
    %v1950 = vpack.c.b16 %v1390, %v1382
    %v1951 = vpack.c.b16 %v1391, %v1383
    %v1952 = vpack.c.b16 %v1392, %v1384
    %v1953 = vpack.c.b16 %v1393, %v1385
    %v1954 = vpack.c.b16 %v1394, %v1386
    %v1955 = vpack.c.b16 %v1395, %v1387
    %v1956 = vpack.c.b16 %v1404, %v1396
    %v1957 = vpack.c.b16 %v1405, %v1397
    %v1958 = vpack.c.b16 %v1406, %v1398
    %v1959 = vpack.c.b16 %v1407, %v1399
    %v1960 = vpack.c.b16 %v1408, %v1400
    %v1961 = vpack.c.b16 %v1409, %v1401
    %v1962 = vpack.c.b16 %v1410, %v1402
    %v1963 = vpack.c.b16 %v1411, %v1403
    %v1964 = vpack.c.b16 %v1420, %v1412
    %v1965 = vpack.c.b16 %v1421, %v1413
    %v1966 = vpack.c.b16 %v1422, %v1414
    %v1967 = vpack.c.b16 %v1423, %v1415
    %v1968 = vpack.c.b16 %v1424, %v1416
    %v1969 = vpack.c.b16 %v1425, %v1417
    %v1970 = vpack.c.b16 %v1426, %v1418
    %v1971 = vpack.c.b16 %v1427, %v1419
    %v1972 = vpack.c.b16 %v1436, %v1428
    %v1973 = vpack.c.b16 %v1437, %v1429
    %v1974 = vpack.c.b16 %v1438, %v1430
    %v1975 = vpack.c.b16 %v1439, %v1431
    %v1976 = vpack.c.b16 %v1440, %v1432
    %v1977 = vpack.c.b16 %v1441, %v1433
    %v1978 = vpack.c.b16 %v1442, %v1434
    %v1979 = vpack.c.b16 %v1443, %v1435
    %v1980 = vpack.c.b16 %v1452, %v1444
    %v1981 = vpack.c.b16 %v1453, %v1445
    %v1982 = vpack.c.b16 %v1454, %v1446
    %v1983 = vpack.c.b16 %v1455, %v1447
    %v1984 = vpack.c.b16 %v1456, %v1448
    %v1985 = vpack.c.b16 %v1457, %v1449
    %v1986 = vpack.c.b16 %v1458, %v1450
    %v1987 = vpack.c.b16 %v1459, %v1451
    %v1988 = vpack.c.b16 %v1468, %v1460
    %v1989 = vpack.c.b16 %v1469, %v1461
    %v1990 = vpack.c.b16 %v1470, %v1462
    %v1991 = vpack.c.b16 %v1471, %v1463
    %v1992 = vpack.c.b16 %v1472, %v1464
    %v1993 = vpack.c.b16 %v1473, %v1465
    %v1994 = vpack.c.b16 %v1474, %v1466
    %v1995 = vpack.c.b16 %v1475, %v1467
    %v1996 = vpack.c.b16 %v1484, %v1476
    %v1997 = vpack.c.b16 %v1485, %v1477
    %v1998 = vpack.c.b16 %v1486, %v1478
    %v1999 = vpack.c.b16 %v1487, %v1479
    %v2000 = vpack.c.b16 %v1488, %v1480
    %v2001 = vpack.c.b16 %v1489, %v1481
    %v2002 = vpack.c.b16 %v1490, %v1482
    %v2003 = vpack.c.b16 %v1491, %v1483
    %v2004 = vpack.c.b16 %v1500, %v1492
    %v2005 = vpack.c.b16 %v1501, %v1493
    %v2006 = vpack.c.b16 %v1502, %v1494
    %v2007 = vpack.c.b16 %v1503, %v1495
    %v2008 = vpack.c.b16 %v1504, %v1496
    %v2009 = vpack.c.b16 %v1505, %v1497
    %v2010 = vpack.c.b16 %v1506, %v1498
    %v2011 = vpack.c.b16 %v1507, %v1499
    %v2012 = vpack.c.b16 %v1516, %v1508
    %v2013 = vpack.c.b16 %v1517, %v1509
    %v2014 = vpack.c.b16 %v1518, %v1510
    %v2015 = vpack.c.b16 %v1519, %v1511
    %v2016 = vpack.c.b16 %v1520, %v1512
    %v2017 = vpack.c.b16 %v1521, %v1513
    %v2018 = vpack.c.b16 %v1522, %v1514
    %v2019 = vpack.c.b16 %v1523, %v1515
    %v2020 = vpack.c.b16 %v1532, %v1524
    %v2021 = vpack.c.b16 %v1533, %v1525
    %v2022 = vpack.c.b16 %v1534, %v1526
    %v2023 = vpack.c.b16 %v1535, %v1527
    %v2024 = vpack.c.b16 %v1536, %v1528
    %v2025 = vpack.c.b16 %v1537, %v1529
    %v2026 = vpack.c.b16 %v1538, %v1530
    %v2027 = vpack.c.b16 %v1539, %v1531
    %v2028 = vpack.c.b16 %v1548, %v1540
    %v2029 = vpack.c.b16 %v1549, %v1541
    %v2030 = vpack.c.b16 %v1550, %v1542
    %v2031 = vpack.c.b16 %v1551, %v1543
    %v2032 = vpack.c.b16 %v1552, %v1544
    %v2033 = vpack.c.b16 %v1553, %v1545
    %v2034 = vpack.c.b16 %v1554, %v1546
    %v2035 = vpack.c.b16 %v1555, %v1547
    %v2036 = vpack.c.b16 %v1564, %v1556
    %v2037 = vpack.c.b16 %v1565, %v1557
    %v2038 = vpack.c.b16 %v1566, %v1558
    %v2039 = vpack.c.b16 %v1567, %v1559
    %v2040 = vpack.c.b16 %v1568, %v1560
    %v2041 = vpack.c.b16 %v1569, %v1561
    %v2042 = vpack.c.b16 %v1570, %v1562
    %v2043 = vpack.c.b16 %v1571, %v1563
    %v2044 = vpack.c.b16 %v1580, %v1572
    %v2045 = vpack.c.b16 %v1581, %v1573
    %v2046 = vpack.c.b16 %v1582, %v1574
    %v2047 = vpack.c.b16 %v1583, %v1575
    %v2048 = vpack.c.b16 %v1584, %v1576
    %v2049 = vpack.c.b16 %v1585, %v1577
    %v2050 = vpack.c.b16 %v1586, %v1578
    %v2051 = vpack.c.b16 %v1587, %v1579
    %v2052 = vpack.c.b16 %v1596, %v1588
    %v2053 = vpack.c.b16 %v1597, %v1589
    %v2054 = vpack.c.b16 %v1598, %v1590
    %v2055 = vpack.c.b16 %v1599, %v1591
    %v2056 = vpack.c.b16 %v1600, %v1592
    %v2057 = vpack.c.b16 %v1601, %v1593
    %v2058 = vpack.c.b16 %v1602, %v1594
    %v2059 = vpack.c.b16 %v1603, %v1595
    %v2060 = vpack.c.b16 %v1612, %v1604
    %v2061 = vpack.c.b16 %v1613, %v1605
    %v2062 = vpack.c.b16 %v1614, %v1606
    %v2063 = vpack.c.b16 %v1615, %v1607
    %v2064 = vpack.c.b16 %v1616, %v1608
    %v2065 = vpack.c.b16 %v1617, %v1609
    %v2066 = vpack.c.b16 %v1618, %v1610
    %v2067 = vpack.c.b16 %v1619, %v1611
    %v2068 = vpack.c.b16 %v1628, %v1620
    %v2069 = vpack.c.b16 %v1629, %v1621
    %v2070 = vpack.c.b16 %v1630, %v1622
    %v2071 = vpack.c.b16 %v1631, %v1623
    %v2072 = vpack.c.b16 %v1632, %v1624
    %v2073 = vpack.c.b16 %v1633, %v1625
    %v2074 = vpack.c.b16 %v1634, %v1626
    %v2075 = vpack.c.b16 %v1635, %v1627
    %v2076 = vpack.c.b16 %v1644, %v1636
    %v2077 = vpack.c.b16 %v1645, %v1637
    %v2078 = vpack.c.b16 %v1646, %v1638
    %v2079 = vpack.c.b16 %v1647, %v1639
    %v2080 = vpack.c.b16 %v1648, %v1640
    %v2081 = vpack.c.b16 %v1649, %v1641
    %v2082 = vpack.c.b16 %v1650, %v1642
    %v2083 = vpack.c.b16 %v1651, %v1643
    %v2084 = vpack.c.b16 %v1660, %v1652
    %v2085 = vpack.c.b16 %v1661, %v1653
    %v2086 = vpack.c.b16 %v1662, %v1654
    %v2087 = vpack.c.b16 %v1663, %v1655
    %v2088 = vpack.c.b16 %v1664, %v1656
    %v2089 = vpack.c.b16 %v1665, %v1657
    %v2090 = vpack.c.b16 %v1666, %v1658
    %v2091 = vpack.c.b16 %v1667, %v1659
    %v2092 = vpack.c.b16 %v1676, %v1668
    %v2093 = vpack.c.b16 %v1677, %v1669
    %v2094 = vpack.c.b16 %v1678, %v1670
    %v2095 = vpack.c.b16 %v1679, %v1671
    %v2096 = vpack.c.b16 %v1680, %v1672
    %v2097 = vpack.c.b16 %v1681, %v1673
    %v2098 = vpack.c.b16 %v1682, %v1674
    %v2099 = vpack.c.b16 %v1683, %v1675
    %v2100 = vpack.c.b16 %v1692, %v1684
    %v2101 = vpack.c.b16 %v1693, %v1685
    %v2102 = vpack.c.b16 %v1694, %v1686
    %v2103 = vpack.c.b16 %v1695, %v1687
    %v2104 = vpack.c.b16 %v1696, %v1688
    %v2105 = vpack.c.b16 %v1697, %v1689
    %v2106 = vpack.c.b16 %v1698, %v1690
    %v2107 = vpack.c.b16 %v1699, %v1691
    %v2108 = vpack.c.b16 %v1708, %v1700
    %v2109 = vpack.c.b16 %v1709, %v1701
    %v2110 = vpack.c.b16 %v1710, %v1702
    %v2111 = vpack.c.b16 %v1711, %v1703
    %v2112 = vpack.c.b16 %v1712, %v1704
    %v2113 = vpack.c.b16 %v1713, %v1705
    %v2114 = vpack.c.b16 %v1714, %v1706
    %v2115 = vpack.c.b16 %v1715, %v1707
    %v2116 = vpack.c.b16 %v1724, %v1716
    %v2117 = vpack.c.b16 %v1725, %v1717
    %v2118 = vpack.c.b16 %v1726, %v1718
    %v2119 = vpack.c.b16 %v1727, %v1719
    %v2120 = vpack.c.b16 %v1728, %v1720
    %v2121 = vpack.c.b16 %v1729, %v1721
    %v2122 = vpack.c.b16 %v1730, %v1722
    %v2123 = vpack.c.b16 %v1731, %v1723
    %vm2516 = vcmask 130048
    %v2518 = vsel %vm2516, %v163, 0
    %2520 = vmatpush.bf16.msra.mxu0 %v1788
    %2521 = vmatpush.bf16.msra.mxu0 %v1780
    %2522 = vmatpush.bf16.msra.mxu0 %v1772
    %2523 = vmatpush.bf16.msra.mxu0 %v1764
    %2524 = vmatpush.bf16.msra.mxu0 %v1756
    %2525 = vmatpush.bf16.msra.mxu0 %v1748
    %2526 = vmatpush.bf16.msra.mxu0 %v1740
    %2527 = vmatpush.bf16.msra.mxu0 %v1732
    %2528 = vmatmul.bf16.gmra.mxu0 %v157
    %v2529 = vpop.f32.mrf.mxu0
    %v2530 = vadd.f32 0.0, %v2529
    %v2531 = vpop.f32.mrf.mxu0
    %2532 = vdwg.mxu0
    %2533 = vmatpush.bf16.msra.mxu0 %v1852
    %2534 = vmatpush.bf16.msra.mxu0 %v1844
    %2535 = vmatpush.bf16.msra.mxu0 %v1836
    %2536 = vmatpush.bf16.msra.mxu0 %v1828
    %2537 = vmatpush.bf16.msra.mxu0 %v1820
    %2538 = vmatpush.bf16.msra.mxu0 %v1812
    %2539 = vmatpush.bf16.msra.mxu0 %v1804
    %2540 = vmatpush.bf16.msra.mxu0 %v1796
    %2541 = vmatmul.bf16.gmra.mxu0 %v158
    %v2542 = vpop.f32.mrf.mxu0
    %v2543 = vadd.f32 %v2530, %v2542
    %v2544 = vpop.f32.mrf.mxu0
    %2545 = vdwg.mxu0
    %2546 = vmatpush.bf16.msra.mxu0 %v1916
    %2547 = vmatpush.bf16.msra.mxu0 %v1908
    %2548 = vmatpush.bf16.msra.mxu0 %v1900
    %2549 = vmatpush.bf16.msra.mxu0 %v1892
    %2550 = vmatpush.bf16.msra.mxu0 %v1884
    %2551 = vmatpush.bf16.msra.mxu0 %v1876
    %2552 = vmatpush.bf16.msra.mxu0 %v1868
    %2553 = vmatpush.bf16.msra.mxu0 %v1860
    %2554 = vmatmul.bf16.gmra.mxu0 %v159
    %v2555 = vpop.f32.mrf.mxu0
    %v2556 = vadd.f32 %v2543, %v2555
    %v2557 = vpop.f32.mrf.mxu0
    %2558 = vdwg.mxu0
    %2559 = vmatpush.bf16.msra.mxu0 %v1980
    %2560 = vmatpush.bf16.msra.mxu0 %v1972
    %2561 = vmatpush.bf16.msra.mxu0 %v1964
    %2562 = vmatpush.bf16.msra.mxu0 %v1956
    %2563 = vmatpush.bf16.msra.mxu0 %v1948
    %2564 = vmatpush.bf16.msra.mxu0 %v1940
    %2565 = vmatpush.bf16.msra.mxu0 %v1932
    %2566 = vmatpush.bf16.msra.mxu0 %v1924
    %2567 = vmatmul.bf16.gmra.mxu0 %v160
    %v2568 = vpop.f32.mrf.mxu0
    %v2569 = vadd.f32 %v2556, %v2568
    %v2570 = vpop.f32.mrf.mxu0
    %2571 = vdwg.mxu0
    %2572 = vmatpush.bf16.msra.mxu0 %v2044
    %2573 = vmatpush.bf16.msra.mxu0 %v2036
    %2574 = vmatpush.bf16.msra.mxu0 %v2028
    %2575 = vmatpush.bf16.msra.mxu0 %v2020
    %2576 = vmatpush.bf16.msra.mxu0 %v2012
    %2577 = vmatpush.bf16.msra.mxu0 %v2004
    %2578 = vmatpush.bf16.msra.mxu0 %v1996
    %2579 = vmatpush.bf16.msra.mxu0 %v1988
    %2580 = vmatmul.bf16.gmra.mxu0 %v161
    %v2581 = vpop.f32.mrf.mxu0
    %v2582 = vadd.f32 %v2569, %v2581
    %v2583 = vpop.f32.mrf.mxu0
    %2584 = vdwg.mxu0
    %2585 = vmatpush.bf16.msra.mxu0 %v2108
    %2586 = vmatpush.bf16.msra.mxu0 %v2100
    %2587 = vmatpush.bf16.msra.mxu0 %v2092
    %2588 = vmatpush.bf16.msra.mxu0 %v2084
    %2589 = vmatpush.bf16.msra.mxu0 %v2076
    %2590 = vmatpush.bf16.msra.mxu0 %v2068
    %2591 = vmatpush.bf16.msra.mxu0 %v2060
    %2592 = vmatpush.bf16.msra.mxu0 %v2052
    %2593 = vmatmul.bf16.gmra.mxu0 %v162
    %v2594 = vpop.f32.mrf.mxu0
    %v2595 = vadd.f32 %v2582, %v2594
    %v2596 = vpop.f32.mrf.mxu0
    %2597 = vdwg.mxu0
    %2598 = vmatpush.bf16.msra.mxu0 0
    %2599 = vmatpush.bf16.msra.mxu0 0
    %2600 = vmatpush.bf16.msra.mxu0 0
    %2601 = vmatpush.bf16.msra.mxu0 0
    %2602 = vmatpush.bf16.msra.mxu0 0
    %2603 = vmatpush.bf16.msra.mxu0 0
    %2604 = vmatpush.bf16.msra.mxu0 0
    %2605 = vmatpush.bf16.msra.mxu0 %v2116
    %2606 = vmatmul.bf16.gmra.mxu0 %v2518
    %v2607 = vpop.f32.mrf.mxu0
    %v2608 = vadd.f32 %v2595, %v2607
    %v2609 = vpop.f32.mrf.mxu0
    %2610 = vdwg.mxu0
    %2611 = vmatpush.bf16.msra.mxu0 %v1789
    %2612 = vmatpush.bf16.msra.mxu0 %v1781
    %2613 = vmatpush.bf16.msra.mxu0 %v1773
    %2614 = vmatpush.bf16.msra.mxu0 %v1765
    %2615 = vmatpush.bf16.msra.mxu0 %v1757
    %2616 = vmatpush.bf16.msra.mxu0 %v1749
    %2617 = vmatpush.bf16.msra.mxu0 %v1741
    %2618 = vmatpush.bf16.msra.mxu0 %v1733
    %2619 = vmatmul.bf16.gmra.mxu0 %v157
    %v2620 = vpop.f32.mrf.mxu0
    %v2621 = vadd.f32 0.0, %v2620
    %v2622 = vpop.f32.mrf.mxu0
    %2623 = vdwg.mxu0
    %2624 = vmatpush.bf16.msra.mxu0 %v1853
    %2625 = vmatpush.bf16.msra.mxu0 %v1845
    %2626 = vmatpush.bf16.msra.mxu0 %v1837
    %2627 = vmatpush.bf16.msra.mxu0 %v1829
    %2628 = vmatpush.bf16.msra.mxu0 %v1821
    %2629 = vmatpush.bf16.msra.mxu0 %v1813
    %2630 = vmatpush.bf16.msra.mxu0 %v1805
    %2631 = vmatpush.bf16.msra.mxu0 %v1797
    %2632 = vmatmul.bf16.gmra.mxu0 %v158
    %v2633 = vpop.f32.mrf.mxu0
    %v2634 = vadd.f32 %v2621, %v2633
    %v2635 = vpop.f32.mrf.mxu0
    %2636 = vdwg.mxu0
    %2637 = vmatpush.bf16.msra.mxu0 %v1917
    %2638 = vmatpush.bf16.msra.mxu0 %v1909
    %2639 = vmatpush.bf16.msra.mxu0 %v1901
    %2640 = vmatpush.bf16.msra.mxu0 %v1893
    %2641 = vmatpush.bf16.msra.mxu0 %v1885
    %2642 = vmatpush.bf16.msra.mxu0 %v1877
    %2643 = vmatpush.bf16.msra.mxu0 %v1869
    %2644 = vmatpush.bf16.msra.mxu0 %v1861
    %2645 = vmatmul.bf16.gmra.mxu0 %v159
    %v2646 = vpop.f32.mrf.mxu0
    %v2647 = vadd.f32 %v2634, %v2646
    %v2648 = vpop.f32.mrf.mxu0
    %2649 = vdwg.mxu0
    %2650 = vmatpush.bf16.msra.mxu0 %v1981
    %2651 = vmatpush.bf16.msra.mxu0 %v1973
    %2652 = vmatpush.bf16.msra.mxu0 %v1965
    %2653 = vmatpush.bf16.msra.mxu0 %v1957
    %2654 = vmatpush.bf16.msra.mxu0 %v1949
    %2655 = vmatpush.bf16.msra.mxu0 %v1941
    %2656 = vmatpush.bf16.msra.mxu0 %v1933
    %2657 = vmatpush.bf16.msra.mxu0 %v1925
    %2658 = vmatmul.bf16.gmra.mxu0 %v160
    %v2659 = vpop.f32.mrf.mxu0
    %v2660 = vadd.f32 %v2647, %v2659
    %v2661 = vpop.f32.mrf.mxu0
    %2662 = vdwg.mxu0
    %2663 = vmatpush.bf16.msra.mxu0 %v2045
    %2664 = vmatpush.bf16.msra.mxu0 %v2037
    %2665 = vmatpush.bf16.msra.mxu0 %v2029
    %2666 = vmatpush.bf16.msra.mxu0 %v2021
    %2667 = vmatpush.bf16.msra.mxu0 %v2013
    %2668 = vmatpush.bf16.msra.mxu0 %v2005
    %2669 = vmatpush.bf16.msra.mxu0 %v1997
    %2670 = vmatpush.bf16.msra.mxu0 %v1989
    %2671 = vmatmul.bf16.gmra.mxu0 %v161
    %v2672 = vpop.f32.mrf.mxu0
    %v2673 = vadd.f32 %v2660, %v2672
    %v2674 = vpop.f32.mrf.mxu0
    %2675 = vdwg.mxu0
    %2676 = vmatpush.bf16.msra.mxu0 %v2109
    %2677 = vmatpush.bf16.msra.mxu0 %v2101
    %2678 = vmatpush.bf16.msra.mxu0 %v2093
    %2679 = vmatpush.bf16.msra.mxu0 %v2085
    %2680 = vmatpush.bf16.msra.mxu0 %v2077
    %2681 = vmatpush.bf16.msra.mxu0 %v2069
    %2682 = vmatpush.bf16.msra.mxu0 %v2061
    %2683 = vmatpush.bf16.msra.mxu0 %v2053
    %2684 = vmatmul.bf16.gmra.mxu0 %v162
    %v2685 = vpop.f32.mrf.mxu0
    %v2686 = vadd.f32 %v2673, %v2685
    %v2687 = vpop.f32.mrf.mxu0
    %2688 = vdwg.mxu0
    %2689 = vmatpush.bf16.msra.mxu0 0
    %2690 = vmatpush.bf16.msra.mxu0 0
    %2691 = vmatpush.bf16.msra.mxu0 0
    %2692 = vmatpush.bf16.msra.mxu0 0
    %2693 = vmatpush.bf16.msra.mxu0 0
    %2694 = vmatpush.bf16.msra.mxu0 0
    %2695 = vmatpush.bf16.msra.mxu0 0
    %2696 = vmatpush.bf16.msra.mxu0 %v2117
    %2697 = vmatmul.bf16.gmra.mxu0 %v2518
    %v2698 = vpop.f32.mrf.mxu0
    %v2699 = vadd.f32 %v2686, %v2698
    %v2700 = vpop.f32.mrf.mxu0
    %2701 = vdwg.mxu0
    %2702 = vmatpush.bf16.msra.mxu0 %v1790
    %2703 = vmatpush.bf16.msra.mxu0 %v1782
    %2704 = vmatpush.bf16.msra.mxu0 %v1774
    %2705 = vmatpush.bf16.msra.mxu0 %v1766
    %2706 = vmatpush.bf16.msra.mxu0 %v1758
    %2707 = vmatpush.bf16.msra.mxu0 %v1750
    %2708 = vmatpush.bf16.msra.mxu0 %v1742
    %2709 = vmatpush.bf16.msra.mxu0 %v1734
    %2710 = vmatmul.bf16.gmra.mxu0 %v157
    %v2711 = vpop.f32.mrf.mxu0
    %v2712 = vadd.f32 0.0, %v2711
    %v2713 = vpop.f32.mrf.mxu0
    %2714 = vdwg.mxu0
    %2715 = vmatpush.bf16.msra.mxu0 %v1854
    %2716 = vmatpush.bf16.msra.mxu0 %v1846
    %2717 = vmatpush.bf16.msra.mxu0 %v1838
    %2718 = vmatpush.bf16.msra.mxu0 %v1830
    %2719 = vmatpush.bf16.msra.mxu0 %v1822
    %2720 = vmatpush.bf16.msra.mxu0 %v1814
    %2721 = vmatpush.bf16.msra.mxu0 %v1806
    %2722 = vmatpush.bf16.msra.mxu0 %v1798
    %2723 = vmatmul.bf16.gmra.mxu0 %v158
    %v2724 = vpop.f32.mrf.mxu0
    %v2725 = vadd.f32 %v2712, %v2724
    %v2726 = vpop.f32.mrf.mxu0
    %2727 = vdwg.mxu0
    %2728 = vmatpush.bf16.msra.mxu0 %v1918
    %2729 = vmatpush.bf16.msra.mxu0 %v1910
    %2730 = vmatpush.bf16.msra.mxu0 %v1902
    %2731 = vmatpush.bf16.msra.mxu0 %v1894
    %2732 = vmatpush.bf16.msra.mxu0 %v1886
    %2733 = vmatpush.bf16.msra.mxu0 %v1878
    %2734 = vmatpush.bf16.msra.mxu0 %v1870
    %2735 = vmatpush.bf16.msra.mxu0 %v1862
    %2736 = vmatmul.bf16.gmra.mxu0 %v159
    %v2737 = vpop.f32.mrf.mxu0
    %v2738 = vadd.f32 %v2725, %v2737
    %v2739 = vpop.f32.mrf.mxu0
    %2740 = vdwg.mxu0
    %2741 = vmatpush.bf16.msra.mxu0 %v1982
    %2742 = vmatpush.bf16.msra.mxu0 %v1974
    %2743 = vmatpush.bf16.msra.mxu0 %v1966
    %2744 = vmatpush.bf16.msra.mxu0 %v1958
    %2745 = vmatpush.bf16.msra.mxu0 %v1950
    %2746 = vmatpush.bf16.msra.mxu0 %v1942
    %2747 = vmatpush.bf16.msra.mxu0 %v1934
    %2748 = vmatpush.bf16.msra.mxu0 %v1926
    %2749 = vmatmul.bf16.gmra.mxu0 %v160
    %v2750 = vpop.f32.mrf.mxu0
    %v2751 = vadd.f32 %v2738, %v2750
    %v2752 = vpop.f32.mrf.mxu0
    %2753 = vdwg.mxu0
    %2754 = vmatpush.bf16.msra.mxu0 %v2046
    %2755 = vmatpush.bf16.msra.mxu0 %v2038
    %2756 = vmatpush.bf16.msra.mxu0 %v2030
    %2757 = vmatpush.bf16.msra.mxu0 %v2022
    %2758 = vmatpush.bf16.msra.mxu0 %v2014
    %2759 = vmatpush.bf16.msra.mxu0 %v2006
    %2760 = vmatpush.bf16.msra.mxu0 %v1998
    %2761 = vmatpush.bf16.msra.mxu0 %v1990
    %2762 = vmatmul.bf16.gmra.mxu0 %v161
    %v2763 = vpop.f32.mrf.mxu0
    %v2764 = vadd.f32 %v2751, %v2763
    %v2765 = vpop.f32.mrf.mxu0
    %2766 = vdwg.mxu0
    %2767 = vmatpush.bf16.msra.mxu0 %v2110
    %2768 = vmatpush.bf16.msra.mxu0 %v2102
    %2769 = vmatpush.bf16.msra.mxu0 %v2094
    %2770 = vmatpush.bf16.msra.mxu0 %v2086
    %2771 = vmatpush.bf16.msra.mxu0 %v2078
    %2772 = vmatpush.bf16.msra.mxu0 %v2070
    %2773 = vmatpush.bf16.msra.mxu0 %v2062
    %2774 = vmatpush.bf16.msra.mxu0 %v2054
    %2775 = vmatmul.bf16.gmra.mxu0 %v162
    %v2776 = vpop.f32.mrf.mxu0
    %v2777 = vadd.f32 %v2764, %v2776
    %v2778 = vpop.f32.mrf.mxu0
    %2779 = vdwg.mxu0
    %2780 = vmatpush.bf16.msra.mxu0 0
    %2781 = vmatpush.bf16.msra.mxu0 0
    %2782 = vmatpush.bf16.msra.mxu0 0
    %2783 = vmatpush.bf16.msra.mxu0 0
    %2784 = vmatpush.bf16.msra.mxu0 0
    %2785 = vmatpush.bf16.msra.mxu0 0
    %2786 = vmatpush.bf16.msra.mxu0 0
    %2787 = vmatpush.bf16.msra.mxu0 %v2118
    %2788 = vmatmul.bf16.gmra.mxu0 %v2518
    %v2789 = vpop.f32.mrf.mxu0
    %v2790 = vadd.f32 %v2777, %v2789
    %v2791 = vpop.f32.mrf.mxu0
    %2792 = vdwg.mxu0
    %2793 = vmatpush.bf16.msra.mxu0 %v1791
    %2794 = vmatpush.bf16.msra.mxu0 %v1783
    %2795 = vmatpush.bf16.msra.mxu0 %v1775
    %2796 = vmatpush.bf16.msra.mxu0 %v1767
    %2797 = vmatpush.bf16.msra.mxu0 %v1759
    %2798 = vmatpush.bf16.msra.mxu0 %v1751
    %2799 = vmatpush.bf16.msra.mxu0 %v1743
    %2800 = vmatpush.bf16.msra.mxu0 %v1735
    %2801 = vmatmul.bf16.gmra.mxu0 %v157
    %v2802 = vpop.f32.mrf.mxu0
    %v2803 = vadd.f32 0.0, %v2802
    %v2804 = vpop.f32.mrf.mxu0
    %2805 = vdwg.mxu0
    %2806 = vmatpush.bf16.msra.mxu0 %v1855
    %2807 = vmatpush.bf16.msra.mxu0 %v1847
    %2808 = vmatpush.bf16.msra.mxu0 %v1839
    %2809 = vmatpush.bf16.msra.mxu0 %v1831
    %2810 = vmatpush.bf16.msra.mxu0 %v1823
    %2811 = vmatpush.bf16.msra.mxu0 %v1815
    %2812 = vmatpush.bf16.msra.mxu0 %v1807
    %2813 = vmatpush.bf16.msra.mxu0 %v1799
    %2814 = vmatmul.bf16.gmra.mxu0 %v158
    %v2815 = vpop.f32.mrf.mxu0
    %v2816 = vadd.f32 %v2803, %v2815
    %v2817 = vpop.f32.mrf.mxu0
    %2818 = vdwg.mxu0
    %2819 = vmatpush.bf16.msra.mxu0 %v1919
    %2820 = vmatpush.bf16.msra.mxu0 %v1911
    %2821 = vmatpush.bf16.msra.mxu0 %v1903
    %2822 = vmatpush.bf16.msra.mxu0 %v1895
    %2823 = vmatpush.bf16.msra.mxu0 %v1887
    %2824 = vmatpush.bf16.msra.mxu0 %v1879
    %2825 = vmatpush.bf16.msra.mxu0 %v1871
    %2826 = vmatpush.bf16.msra.mxu0 %v1863
    %2827 = vmatmul.bf16.gmra.mxu0 %v159
    %v2828 = vpop.f32.mrf.mxu0
    %v2829 = vadd.f32 %v2816, %v2828
    %v2830 = vpop.f32.mrf.mxu0
    %2831 = vdwg.mxu0
    %2832 = vmatpush.bf16.msra.mxu0 %v1983
    %2833 = vmatpush.bf16.msra.mxu0 %v1975
    %2834 = vmatpush.bf16.msra.mxu0 %v1967
    %2835 = vmatpush.bf16.msra.mxu0 %v1959
    %2836 = vmatpush.bf16.msra.mxu0 %v1951
    %2837 = vmatpush.bf16.msra.mxu0 %v1943
    %2838 = vmatpush.bf16.msra.mxu0 %v1935
    %2839 = vmatpush.bf16.msra.mxu0 %v1927
    %2840 = vmatmul.bf16.gmra.mxu0 %v160
    %v2841 = vpop.f32.mrf.mxu0
    %v2842 = vadd.f32 %v2829, %v2841
    %v2843 = vpop.f32.mrf.mxu0
    %2844 = vdwg.mxu0
    %2845 = vmatpush.bf16.msra.mxu0 %v2047
    %2846 = vmatpush.bf16.msra.mxu0 %v2039
    %2847 = vmatpush.bf16.msra.mxu0 %v2031
    %2848 = vmatpush.bf16.msra.mxu0 %v2023
    %2849 = vmatpush.bf16.msra.mxu0 %v2015
    %2850 = vmatpush.bf16.msra.mxu0 %v2007
    %2851 = vmatpush.bf16.msra.mxu0 %v1999
    %2852 = vmatpush.bf16.msra.mxu0 %v1991
    %2853 = vmatmul.bf16.gmra.mxu0 %v161
    %v2854 = vpop.f32.mrf.mxu0
    %v2855 = vadd.f32 %v2842, %v2854
    %v2856 = vpop.f32.mrf.mxu0
    %2857 = vdwg.mxu0
    %2858 = vmatpush.bf16.msra.mxu0 %v2111
    %2859 = vmatpush.bf16.msra.mxu0 %v2103
    %2860 = vmatpush.bf16.msra.mxu0 %v2095
    %2861 = vmatpush.bf16.msra.mxu0 %v2087
    %2862 = vmatpush.bf16.msra.mxu0 %v2079
    %2863 = vmatpush.bf16.msra.mxu0 %v2071
    %2864 = vmatpush.bf16.msra.mxu0 %v2063
    %2865 = vmatpush.bf16.msra.mxu0 %v2055
    %2866 = vmatmul.bf16.gmra.mxu0 %v162
    %v2867 = vpop.f32.mrf.mxu0
    %v2868 = vadd.f32 %v2855, %v2867
    %v2869 = vpop.f32.mrf.mxu0
    %2870 = vdwg.mxu0
    %2871 = vmatpush.bf16.msra.mxu0 0
    %2872 = vmatpush.bf16.msra.mxu0 0
    %2873 = vmatpush.bf16.msra.mxu0 0
    %2874 = vmatpush.bf16.msra.mxu0 0
    %2875 = vmatpush.bf16.msra.mxu0 0
    %2876 = vmatpush.bf16.msra.mxu0 0
    %2877 = vmatpush.bf16.msra.mxu0 0
    %2878 = vmatpush.bf16.msra.mxu0 %v2119
    %2879 = vmatmul.bf16.gmra.mxu0 %v2518
    %v2880 = vpop.f32.mrf.mxu0
    %v2881 = vadd.f32 %v2868, %v2880
    %v2882 = vpop.f32.mrf.mxu0
    %2883 = vdwg.mxu0
    %2884 = vmatpush.bf16.msra.mxu0 %v1792
    %2885 = vmatpush.bf16.msra.mxu0 %v1784
    %2886 = vmatpush.bf16.msra.mxu0 %v1776
    %2887 = vmatpush.bf16.msra.mxu0 %v1768
    %2888 = vmatpush.bf16.msra.mxu0 %v1760
    %2889 = vmatpush.bf16.msra.mxu0 %v1752
    %2890 = vmatpush.bf16.msra.mxu0 %v1744
    %2891 = vmatpush.bf16.msra.mxu0 %v1736
    %2892 = vmatmul.bf16.gmra.mxu0 %v157
    %v2893 = vpop.f32.mrf.mxu0
    %v2894 = vadd.f32 0.0, %v2893
    %v2895 = vpop.f32.mrf.mxu0
    %2896 = vdwg.mxu0
    %2897 = vmatpush.bf16.msra.mxu0 %v1856
    %2898 = vmatpush.bf16.msra.mxu0 %v1848
    %2899 = vmatpush.bf16.msra.mxu0 %v1840
    %2900 = vmatpush.bf16.msra.mxu0 %v1832
    %2901 = vmatpush.bf16.msra.mxu0 %v1824
    %2902 = vmatpush.bf16.msra.mxu0 %v1816
    %2903 = vmatpush.bf16.msra.mxu0 %v1808
    %2904 = vmatpush.bf16.msra.mxu0 %v1800
    %2905 = vmatmul.bf16.gmra.mxu0 %v158
    %v2906 = vpop.f32.mrf.mxu0
    %v2907 = vadd.f32 %v2894, %v2906
    %v2908 = vpop.f32.mrf.mxu0
    %2909 = vdwg.mxu0
    %2910 = vmatpush.bf16.msra.mxu0 %v1920
    %2911 = vmatpush.bf16.msra.mxu0 %v1912
    %2912 = vmatpush.bf16.msra.mxu0 %v1904
    %2913 = vmatpush.bf16.msra.mxu0 %v1896
    %2914 = vmatpush.bf16.msra.mxu0 %v1888
    %2915 = vmatpush.bf16.msra.mxu0 %v1880
    %2916 = vmatpush.bf16.msra.mxu0 %v1872
    %2917 = vmatpush.bf16.msra.mxu0 %v1864
    %2918 = vmatmul.bf16.gmra.mxu0 %v159
    %v2919 = vpop.f32.mrf.mxu0
    %v2920 = vadd.f32 %v2907, %v2919
    %v2921 = vpop.f32.mrf.mxu0
    %2922 = vdwg.mxu0
    %2923 = vmatpush.bf16.msra.mxu0 %v1984
    %2924 = vmatpush.bf16.msra.mxu0 %v1976
    %2925 = vmatpush.bf16.msra.mxu0 %v1968
    %2926 = vmatpush.bf16.msra.mxu0 %v1960
    %2927 = vmatpush.bf16.msra.mxu0 %v1952
    %2928 = vmatpush.bf16.msra.mxu0 %v1944
    %2929 = vmatpush.bf16.msra.mxu0 %v1936
    %2930 = vmatpush.bf16.msra.mxu0 %v1928
    %2931 = vmatmul.bf16.gmra.mxu0 %v160
    %v2932 = vpop.f32.mrf.mxu0
    %v2933 = vadd.f32 %v2920, %v2932
    %v2934 = vpop.f32.mrf.mxu0
    %2935 = vdwg.mxu0
    %2936 = vmatpush.bf16.msra.mxu0 %v2048
    %2937 = vmatpush.bf16.msra.mxu0 %v2040
    %2938 = vmatpush.bf16.msra.mxu0 %v2032
    %2939 = vmatpush.bf16.msra.mxu0 %v2024
    %2940 = vmatpush.bf16.msra.mxu0 %v2016
    %2941 = vmatpush.bf16.msra.mxu0 %v2008
    %2942 = vmatpush.bf16.msra.mxu0 %v2000
    %2943 = vmatpush.bf16.msra.mxu0 %v1992
    %2944 = vmatmul.bf16.gmra.mxu0 %v161
    %v2945 = vpop.f32.mrf.mxu0
    %v2946 = vadd.f32 %v2933, %v2945
    %v2947 = vpop.f32.mrf.mxu0
    %2948 = vdwg.mxu0
    %2949 = vmatpush.bf16.msra.mxu0 %v2112
    %2950 = vmatpush.bf16.msra.mxu0 %v2104
    %2951 = vmatpush.bf16.msra.mxu0 %v2096
    %2952 = vmatpush.bf16.msra.mxu0 %v2088
    %2953 = vmatpush.bf16.msra.mxu0 %v2080
    %2954 = vmatpush.bf16.msra.mxu0 %v2072
    %2955 = vmatpush.bf16.msra.mxu0 %v2064
    %2956 = vmatpush.bf16.msra.mxu0 %v2056
    %2957 = vmatmul.bf16.gmra.mxu0 %v162
    %v2958 = vpop.f32.mrf.mxu0
    %v2959 = vadd.f32 %v2946, %v2958
    %v2960 = vpop.f32.mrf.mxu0
    %2961 = vdwg.mxu0
    %2962 = vmatpush.bf16.msra.mxu0 0
    %2963 = vmatpush.bf16.msra.mxu0 0
    %2964 = vmatpush.bf16.msra.mxu0 0
    %2965 = vmatpush.bf16.msra.mxu0 0
    %2966 = vmatpush.bf16.msra.mxu0 0
    %2967 = vmatpush.bf16.msra.mxu0 0
    %2968 = vmatpush.bf16.msra.mxu0 0
    %2969 = vmatpush.bf16.msra.mxu0 %v2120
    %2970 = vmatmul.bf16.gmra.mxu0 %v2518
    %v2971 = vpop.f32.mrf.mxu0
    %v2972 = vadd.f32 %v2959, %v2971
    %v2973 = vpop.f32.mrf.mxu0
    %2974 = vdwg.mxu0
    %2975 = vmatpush.bf16.msra.mxu0 %v1793
    %2976 = vmatpush.bf16.msra.mxu0 %v1785
    %2977 = vmatpush.bf16.msra.mxu0 %v1777
    %2978 = vmatpush.bf16.msra.mxu0 %v1769
    %2979 = vmatpush.bf16.msra.mxu0 %v1761
    %2980 = vmatpush.bf16.msra.mxu0 %v1753
    %2981 = vmatpush.bf16.msra.mxu0 %v1745
    %2982 = vmatpush.bf16.msra.mxu0 %v1737
    %2983 = vmatmul.bf16.gmra.mxu0 %v157
    %v2984 = vpop.f32.mrf.mxu0
    %v2985 = vadd.f32 0.0, %v2984
    %v2986 = vpop.f32.mrf.mxu0
    %2987 = vdwg.mxu0
    %2988 = vmatpush.bf16.msra.mxu0 %v1857
    %2989 = vmatpush.bf16.msra.mxu0 %v1849
    %2990 = vmatpush.bf16.msra.mxu0 %v1841
    %2991 = vmatpush.bf16.msra.mxu0 %v1833
    %2992 = vmatpush.bf16.msra.mxu0 %v1825
    %2993 = vmatpush.bf16.msra.mxu0 %v1817
    %2994 = vmatpush.bf16.msra.mxu0 %v1809
    %2995 = vmatpush.bf16.msra.mxu0 %v1801
    %2996 = vmatmul.bf16.gmra.mxu0 %v158
    %v2997 = vpop.f32.mrf.mxu0
    %v2998 = vadd.f32 %v2985, %v2997
    %v2999 = vpop.f32.mrf.mxu0
    %3000 = vdwg.mxu0
    %3001 = vmatpush.bf16.msra.mxu0 %v1921
    %3002 = vmatpush.bf16.msra.mxu0 %v1913
    %3003 = vmatpush.bf16.msra.mxu0 %v1905
    %3004 = vmatpush.bf16.msra.mxu0 %v1897
    %3005 = vmatpush.bf16.msra.mxu0 %v1889
    %3006 = vmatpush.bf16.msra.mxu0 %v1881
    %3007 = vmatpush.bf16.msra.mxu0 %v1873
    %3008 = vmatpush.bf16.msra.mxu0 %v1865
    %3009 = vmatmul.bf16.gmra.mxu0 %v159
    %v3010 = vpop.f32.mrf.mxu0
    %v3011 = vadd.f32 %v2998, %v3010
    %v3012 = vpop.f32.mrf.mxu0
    %3013 = vdwg.mxu0
    %3014 = vmatpush.bf16.msra.mxu0 %v1985
    %3015 = vmatpush.bf16.msra.mxu0 %v1977
    %3016 = vmatpush.bf16.msra.mxu0 %v1969
    %3017 = vmatpush.bf16.msra.mxu0 %v1961
    %3018 = vmatpush.bf16.msra.mxu0 %v1953
    %3019 = vmatpush.bf16.msra.mxu0 %v1945
    %3020 = vmatpush.bf16.msra.mxu0 %v1937
    %3021 = vmatpush.bf16.msra.mxu0 %v1929
    %3022 = vmatmul.bf16.gmra.mxu0 %v160
    %v3023 = vpop.f32.mrf.mxu0
    %v3024 = vadd.f32 %v3011, %v3023
    %v3025 = vpop.f32.mrf.mxu0
    %3026 = vdwg.mxu0
    %3027 = vmatpush.bf16.msra.mxu0 %v2049
    %3028 = vmatpush.bf16.msra.mxu0 %v2041
    %3029 = vmatpush.bf16.msra.mxu0 %v2033
    %3030 = vmatpush.bf16.msra.mxu0 %v2025
    %3031 = vmatpush.bf16.msra.mxu0 %v2017
    %3032 = vmatpush.bf16.msra.mxu0 %v2009
    %3033 = vmatpush.bf16.msra.mxu0 %v2001
    %3034 = vmatpush.bf16.msra.mxu0 %v1993
    %3035 = vmatmul.bf16.gmra.mxu0 %v161
    %v3036 = vpop.f32.mrf.mxu0
    %v3037 = vadd.f32 %v3024, %v3036
    %v3038 = vpop.f32.mrf.mxu0
    %3039 = vdwg.mxu0
    %3040 = vmatpush.bf16.msra.mxu0 %v2113
    %3041 = vmatpush.bf16.msra.mxu0 %v2105
    %3042 = vmatpush.bf16.msra.mxu0 %v2097
    %3043 = vmatpush.bf16.msra.mxu0 %v2089
    %3044 = vmatpush.bf16.msra.mxu0 %v2081
    %3045 = vmatpush.bf16.msra.mxu0 %v2073
    %3046 = vmatpush.bf16.msra.mxu0 %v2065
    %3047 = vmatpush.bf16.msra.mxu0 %v2057
    %3048 = vmatmul.bf16.gmra.mxu0 %v162
    %v3049 = vpop.f32.mrf.mxu0
    %v3050 = vadd.f32 %v3037, %v3049
    %v3051 = vpop.f32.mrf.mxu0
    %3052 = vdwg.mxu0
    %3053 = vmatpush.bf16.msra.mxu0 0
    %3054 = vmatpush.bf16.msra.mxu0 0
    %3055 = vmatpush.bf16.msra.mxu0 0
    %3056 = vmatpush.bf16.msra.mxu0 0
    %3057 = vmatpush.bf16.msra.mxu0 0
    %3058 = vmatpush.bf16.msra.mxu0 0
    %3059 = vmatpush.bf16.msra.mxu0 0
    %3060 = vmatpush.bf16.msra.mxu0 %v2121
    %3061 = vmatmul.bf16.gmra.mxu0 %v2518
    %v3062 = vpop.f32.mrf.mxu0
    %v3063 = vadd.f32 %v3050, %v3062
    %v3064 = vpop.f32.mrf.mxu0
    %3065 = vdwg.mxu0
    %3066 = vmatpush.bf16.msra.mxu0 %v1794
    %3067 = vmatpush.bf16.msra.mxu0 %v1786
    %3068 = vmatpush.bf16.msra.mxu0 %v1778
    %3069 = vmatpush.bf16.msra.mxu0 %v1770
    %3070 = vmatpush.bf16.msra.mxu0 %v1762
    %3071 = vmatpush.bf16.msra.mxu0 %v1754
    %3072 = vmatpush.bf16.msra.mxu0 %v1746
    %3073 = vmatpush.bf16.msra.mxu0 %v1738
    %3074 = vmatmul.bf16.gmra.mxu0 %v157
    %v3075 = vpop.f32.mrf.mxu0
    %v3076 = vadd.f32 0.0, %v3075
    %v3077 = vpop.f32.mrf.mxu0
    %3078 = vdwg.mxu0
    %3079 = vmatpush.bf16.msra.mxu0 %v1858
    %3080 = vmatpush.bf16.msra.mxu0 %v1850
    %3081 = vmatpush.bf16.msra.mxu0 %v1842
    %3082 = vmatpush.bf16.msra.mxu0 %v1834
    %3083 = vmatpush.bf16.msra.mxu0 %v1826
    %3084 = vmatpush.bf16.msra.mxu0 %v1818
    %3085 = vmatpush.bf16.msra.mxu0 %v1810
    %3086 = vmatpush.bf16.msra.mxu0 %v1802
    %3087 = vmatmul.bf16.gmra.mxu0 %v158
    %v3088 = vpop.f32.mrf.mxu0
    %v3089 = vadd.f32 %v3076, %v3088
    %v3090 = vpop.f32.mrf.mxu0
    %3091 = vdwg.mxu0
    %3092 = vmatpush.bf16.msra.mxu0 %v1922
    %3093 = vmatpush.bf16.msra.mxu0 %v1914
    %3094 = vmatpush.bf16.msra.mxu0 %v1906
    %3095 = vmatpush.bf16.msra.mxu0 %v1898
    %3096 = vmatpush.bf16.msra.mxu0 %v1890
    %3097 = vmatpush.bf16.msra.mxu0 %v1882
    %3098 = vmatpush.bf16.msra.mxu0 %v1874
    %3099 = vmatpush.bf16.msra.mxu0 %v1866
    %3100 = vmatmul.bf16.gmra.mxu0 %v159
    %v3101 = vpop.f32.mrf.mxu0
    %v3102 = vadd.f32 %v3089, %v3101
    %v3103 = vpop.f32.mrf.mxu0
    %3104 = vdwg.mxu0
    %3105 = vmatpush.bf16.msra.mxu0 %v1986
    %3106 = vmatpush.bf16.msra.mxu0 %v1978
    %3107 = vmatpush.bf16.msra.mxu0 %v1970
    %3108 = vmatpush.bf16.msra.mxu0 %v1962
    %3109 = vmatpush.bf16.msra.mxu0 %v1954
    %3110 = vmatpush.bf16.msra.mxu0 %v1946
    %3111 = vmatpush.bf16.msra.mxu0 %v1938
    %3112 = vmatpush.bf16.msra.mxu0 %v1930
    %3113 = vmatmul.bf16.gmra.mxu0 %v160
    %v3114 = vpop.f32.mrf.mxu0
    %v3115 = vadd.f32 %v3102, %v3114
    %v3116 = vpop.f32.mrf.mxu0
    %3117 = vdwg.mxu0
    %3118 = vmatpush.bf16.msra.mxu0 %v2050
    %3119 = vmatpush.bf16.msra.mxu0 %v2042
    %3120 = vmatpush.bf16.msra.mxu0 %v2034
    %3121 = vmatpush.bf16.msra.mxu0 %v2026
    %3122 = vmatpush.bf16.msra.mxu0 %v2018
    %3123 = vmatpush.bf16.msra.mxu0 %v2010
    %3124 = vmatpush.bf16.msra.mxu0 %v2002
    %3125 = vmatpush.bf16.msra.mxu0 %v1994
    %3126 = vmatmul.bf16.gmra.mxu0 %v161
    %v3127 = vpop.f32.mrf.mxu0
    %v3128 = vadd.f32 %v3115, %v3127
    %v3129 = vpop.f32.mrf.mxu0
    %3130 = vdwg.mxu0
    %3131 = vmatpush.bf16.msra.mxu0 %v2114
    %3132 = vmatpush.bf16.msra.mxu0 %v2106
    %3133 = vmatpush.bf16.msra.mxu0 %v2098
    %3134 = vmatpush.bf16.msra.mxu0 %v2090
    %3135 = vmatpush.bf16.msra.mxu0 %v2082
    %3136 = vmatpush.bf16.msra.mxu0 %v2074
    %3137 = vmatpush.bf16.msra.mxu0 %v2066
    %3138 = vmatpush.bf16.msra.mxu0 %v2058
    %3139 = vmatmul.bf16.gmra.mxu0 %v162
    %v3140 = vpop.f32.mrf.mxu0
    %v3141 = vadd.f32 %v3128, %v3140
    %v3142 = vpop.f32.mrf.mxu0
    %3143 = vdwg.mxu0
    %3144 = vmatpush.bf16.msra.mxu0 0
    %3145 = vmatpush.bf16.msra.mxu0 0
    %3146 = vmatpush.bf16.msra.mxu0 0
    %3147 = vmatpush.bf16.msra.mxu0 0
    %3148 = vmatpush.bf16.msra.mxu0 0
    %3149 = vmatpush.bf16.msra.mxu0 0
    %3150 = vmatpush.bf16.msra.mxu0 0
    %3151 = vmatpush.bf16.msra.mxu0 %v2122
    %3152 = vmatmul.bf16.gmra.mxu0 %v2518
    %v3153 = vpop.f32.mrf.mxu0
    %v3154 = vadd.f32 %v3141, %v3153
    %v3155 = vpop.f32.mrf.mxu0
    %3156 = vdwg.mxu0
    %3157 = vmatpush.bf16.msra.mxu0 %v1795
    %3158 = vmatpush.bf16.msra.mxu0 %v1787
    %3159 = vmatpush.bf16.msra.mxu0 %v1779
    %3160 = vmatpush.bf16.msra.mxu0 %v1771
    %3161 = vmatpush.bf16.msra.mxu0 %v1763
    %3162 = vmatpush.bf16.msra.mxu0 %v1755
    %3163 = vmatpush.bf16.msra.mxu0 %v1747
    %3164 = vmatpush.bf16.msra.mxu0 %v1739
    %3165 = vmatmul.bf16.gmra.mxu0 %v157
    %v3166 = vpop.f32.mrf.mxu0
    %v3167 = vadd.f32 0.0, %v3166
    %v3168 = vpop.f32.mrf.mxu0
    %3169 = vdwg.mxu0
    %3170 = vmatpush.bf16.msra.mxu0 %v1859
    %3171 = vmatpush.bf16.msra.mxu0 %v1851
    %3172 = vmatpush.bf16.msra.mxu0 %v1843
    %3173 = vmatpush.bf16.msra.mxu0 %v1835
    %3174 = vmatpush.bf16.msra.mxu0 %v1827
    %3175 = vmatpush.bf16.msra.mxu0 %v1819
    %3176 = vmatpush.bf16.msra.mxu0 %v1811
    %3177 = vmatpush.bf16.msra.mxu0 %v1803
    %3178 = vmatmul.bf16.gmra.mxu0 %v158
    %v3179 = vpop.f32.mrf.mxu0
    %v3180 = vadd.f32 %v3167, %v3179
    %v3181 = vpop.f32.mrf.mxu0
    %3182 = vdwg.mxu0
    %3183 = vmatpush.bf16.msra.mxu0 %v1923
    %3184 = vmatpush.bf16.msra.mxu0 %v1915
    %3185 = vmatpush.bf16.msra.mxu0 %v1907
    %3186 = vmatpush.bf16.msra.mxu0 %v1899
    %3187 = vmatpush.bf16.msra.mxu0 %v1891
    %3188 = vmatpush.bf16.msra.mxu0 %v1883
    %3189 = vmatpush.bf16.msra.mxu0 %v1875
    %3190 = vmatpush.bf16.msra.mxu0 %v1867
    %3191 = vmatmul.bf16.gmra.mxu0 %v159
    %v3192 = vpop.f32.mrf.mxu0
    %v3193 = vadd.f32 %v3180, %v3192
    %v3194 = vpop.f32.mrf.mxu0
    %3195 = vdwg.mxu0
    %3196 = vmatpush.bf16.msra.mxu0 %v1987
    %3197 = vmatpush.bf16.msra.mxu0 %v1979
    %3198 = vmatpush.bf16.msra.mxu0 %v1971
    %3199 = vmatpush.bf16.msra.mxu0 %v1963
    %3200 = vmatpush.bf16.msra.mxu0 %v1955
    %3201 = vmatpush.bf16.msra.mxu0 %v1947
    %3202 = vmatpush.bf16.msra.mxu0 %v1939
    %3203 = vmatpush.bf16.msra.mxu0 %v1931
    %3204 = vmatmul.bf16.gmra.mxu0 %v160
    %v3205 = vpop.f32.mrf.mxu0
    %v3206 = vadd.f32 %v3193, %v3205
    %v3207 = vpop.f32.mrf.mxu0
    %3208 = vdwg.mxu0
    %3209 = vmatpush.bf16.msra.mxu0 %v2051
    %3210 = vmatpush.bf16.msra.mxu0 %v2043
    %3211 = vmatpush.bf16.msra.mxu0 %v2035
    %3212 = vmatpush.bf16.msra.mxu0 %v2027
    %3213 = vmatpush.bf16.msra.mxu0 %v2019
    %3214 = vmatpush.bf16.msra.mxu0 %v2011
    %3215 = vmatpush.bf16.msra.mxu0 %v2003
    %3216 = vmatpush.bf16.msra.mxu0 %v1995
    %3217 = vmatmul.bf16.gmra.mxu0 %v161
    %v3218 = vpop.f32.mrf.mxu0
    %v3219 = vadd.f32 %v3206, %v3218
    %v3220 = vpop.f32.mrf.mxu0
    %3221 = vdwg.mxu0
    %3222 = vmatpush.bf16.msra.mxu0 %v2115
    %3223 = vmatpush.bf16.msra.mxu0 %v2107
    %3224 = vmatpush.bf16.msra.mxu0 %v2099
    %3225 = vmatpush.bf16.msra.mxu0 %v2091
    %3226 = vmatpush.bf16.msra.mxu0 %v2083
    %3227 = vmatpush.bf16.msra.mxu0 %v2075
    %3228 = vmatpush.bf16.msra.mxu0 %v2067
    %3229 = vmatpush.bf16.msra.mxu0 %v2059
    %3230 = vmatmul.bf16.gmra.mxu0 %v162
    %v3231 = vpop.f32.mrf.mxu0
    %v3232 = vadd.f32 %v3219, %v3231
    %v3233 = vpop.f32.mrf.mxu0
    %3234 = vdwg.mxu0
    %3235 = vmatpush.bf16.msra.mxu0 0
    %3236 = vmatpush.bf16.msra.mxu0 0
    %3237 = vmatpush.bf16.msra.mxu0 0
    %3238 = vmatpush.bf16.msra.mxu0 0
    %3239 = vmatpush.bf16.msra.mxu0 0
    %3240 = vmatpush.bf16.msra.mxu0 0
    %3241 = vmatpush.bf16.msra.mxu0 0
    %3242 = vmatpush.bf16.msra.mxu0 %v2123
    %3243 = vmatmul.bf16.gmra.mxu0 %v2518
    %v3244 = vpop.f32.mrf.mxu0
    %v3245 = vadd.f32 %v3232, %v3244
    %v3246 = vpop.f32.mrf.mxu0
    %3247 = vdwg.mxu0
    %v3248 = vpack.c.bf16 %v2699, %v2608
    %v3249 = vpack.c.bf16 %v2881, %v2790
    %v3250 = vpack.c.bf16 %v3063, %v2972
    %v3251 = vpack.c.bf16 %v3245, %v3154
    %v3252 = vld [vmem:[#allocation7] sm:$0xff]
    %3254 = vst [vmem:[#allocation1] ss:$9 sm:$0xff] %v3252
    %v3255 = vld [vmem:[#allocation1] sm:$0xff]
    %v3256 = vld [vmem:[#allocation1 + $0x9] sm:$0xff]
    %v3257 = vld [vmem:[#allocation1 + $0x12] sm:$0xff]
    %v3258 = vld [vmem:[#allocation1 + $0x1b] sm:$0xff]
    %v3259 = vld [vmem:[#allocation1 + $0x24] sm:$0xff]
    %v3260 = vld [vmem:[#allocation1 + $0x2d] sm:$0xff]
    %v3261 = vld [vmem:[#allocation1 + $0x36] sm:$0xff]
    %v3262 = vld [vmem:[#allocation1 + $0x3f] sm:$0xff]
    %v3263 = vpack.i.b16 %v3255, %v3255
    %v3265 = vperm.slane %v3263, 0
    %v3266 = vpack.i.b16 %v3256, %v3256
    %v3268 = vperm.slane %v3266, 0
    %v3269 = vpack.i.b16 %v3257, %v3257
    %v3271 = vperm.slane %v3269, 0
    %v3272 = vpack.i.b16 %v3258, %v3258
    %v3274 = vperm.slane %v3272, 0
    %v3275 = vpack.i.b16 %v3259, %v3259
    %v3277 = vperm.slane %v3275, 0
    %v3278 = vpack.i.b16 %v3260, %v3260
    %v3280 = vperm.slane %v3278, 0
    %v3281 = vpack.i.b16 %v3261, %v3261
    %v3283 = vperm.slane %v3281, 0
    %v3284 = vpack.i.b16 %v3262, %v3262
    %v3286 = vperm.slane %v3284, 0
    %v3287 = vunpack.c.l.bf16 %v3248
    %v3288 = vunpack.c.h.bf16 %v3248
    %v3289 = vunpack.c.l.bf16 %v3249
    %v3290 = vunpack.c.h.bf16 %v3249
    %v3291 = vunpack.c.l.bf16 %v3250
    %v3292 = vunpack.c.h.bf16 %v3250
    %v3293 = vunpack.c.l.bf16 %v3251
    %v3294 = vunpack.c.h.bf16 %v3251
    %v3295 = vunpack.c.l.bf16 %v3265
    %v3296 = vunpack.c.l.bf16 %v3268
    %v3297 = vunpack.c.l.bf16 %v3271
    %v3298 = vunpack.c.l.bf16 %v3274
    %v3299 = vunpack.c.l.bf16 %v3277
    %v3300 = vunpack.c.l.bf16 %v3280
    %v3301 = vunpack.c.l.bf16 %v3283
    %v3302 = vunpack.c.l.bf16 %v3286
    %v3303 = vadd.f32 %v3287, %v3295
    %v3304 = vadd.f32 %v3288, %v3296
    %v3305 = vadd.f32 %v3289, %v3297
    %v3306 = vadd.f32 %v3290, %v3298
    %v3307 = vadd.f32 %v3291, %v3299
    %v3308 = vadd.f32 %v3292, %v3300
    %v3309 = vadd.f32 %v3293, %v3301
    %v3310 = vadd.f32 %v3294, %v3302
    %v3311 = vpack.c.bf16 %v3304, %v3303
    %v3312 = vpack.c.bf16 %v3306, %v3305
    %v3313 = vpack.c.bf16 %v3308, %v3307
    %v3314 = vpack.c.bf16 %v3310, %v3309
    %v3315 = vunpack.c.l.bf16 %v3311
    %v3316 = vunpack.c.h.bf16 %v3311
    %v3317 = vunpack.c.l.bf16 %v3312
    %v3318 = vunpack.c.h.bf16 %v3312
    %v3319 = vunpack.c.l.bf16 %v3313
    %v3320 = vunpack.c.h.bf16 %v3313
    %v3321 = vunpack.c.l.bf16 %v3314
    %v3322 = vunpack.c.h.bf16 %v3314
    %v3323 = vmul.f32 %v3315, 0.20019531
    %v3324 = vmul.f32 %v3316, 0.20019531
    %v3325 = vmul.f32 %v3317, 0.20019531
    %v3326 = vmul.f32 %v3318, 0.20019531
    %v3327 = vmul.f32 %v3319, 0.20019531
    %v3328 = vmul.f32 %v3320, 0.20019531
    %v3329 = vmul.f32 %v3321, 0.20019531
    %v3330 = vmul.f32 %v3322, 0.20019531
    %v3331 = vpack.c.bf16 %v3324, %v3323
    %v3332 = vpack.c.bf16 %v3326, %v3325
    %v3333 = vpack.c.bf16 %v3328, %v3327
    %v3334 = vpack.c.bf16 %v3330, %v3329
    %v3335 = vunpack.c.l.bf16 %v3331
    %v3336 = vunpack.c.h.bf16 %v3331
    %v3337 = vunpack.c.l.bf16 %v3332
    %v3338 = vunpack.c.h.bf16 %v3332
    %v3339 = vunpack.c.l.bf16 %v3333
    %v3340 = vunpack.c.h.bf16 %v3333
    %v3341 = vunpack.c.l.bf16 %v3334
    %v3342 = vunpack.c.h.bf16 %v3334
    %v3343 = vmax.f32 %v3315, %v3335
    %v3344 = vmax.f32 %v3316, %v3336
    %v3345 = vmax.f32 %v3317, %v3337
    %v3346 = vmax.f32 %v3318, %v3338
    %v3347 = vmax.f32 %v3319, %v3339
    %v3348 = vmax.f32 %v3320, %v3340
    %v3349 = vmax.f32 %v3321, %v3341
    %v3350 = vmax.f32 %v3322, %v3342
    %v3351 = vpack.c.bf16 %v3343, %v3343
    %v3352 = vpack.c.bf16 %v3344, %v3344
    %v3353 = vpack.c.bf16 %v3345, %v3345
    %v3354 = vpack.c.bf16 %v3346, %v3346
    %v3355 = vpack.c.bf16 %v3347, %v3347
    %v3356 = vpack.c.bf16 %v3348, %v3348
    %v3357 = vpack.c.bf16 %v3349, %v3349
    %v3358 = vpack.c.bf16 %v3350, %v3350
    %v3359 = vld [vmem:[#allocation8] sm:$0xff]
    %v3360 = vld [vmem:[#allocation8 + $0x8] sm:$0xff]
    %v3361 = vld [vmem:[#allocation8 + $0x10] sm:$0xff]
    %v3362 = vld [vmem:[#allocation8 + $0x18] sm:$0xff]
    %v3363 = vld [vmem:[#allocation8 + $0x20] sm:$0xff]
    %v3364 = vld [vmem:[#allocation8 + $0x28] sm:$0xff]
    %v3365 = vld [vmem:[#allocation8 + $0x30] sm:$0xff]
    %v3366 = vld [vmem:[#allocation8 + $0x38] sm:$0xff]
    %v3367 = vld [vmem:[#allocation8 + $0x40] sm:$0xff]
    %v3368 = vld [vmem:[#allocation8 + $0x48] sm:$0xff]
    %v3369 = vld [vmem:[#allocation8 + $0x50] sm:$0xff]
    %v3370 = vld [vmem:[#allocation8 + $0x58] sm:$0xff]
    %v3371 = vld [vmem:[#allocation8 + $0x60] sm:$0xff]
    %v3372 = vld [vmem:[#allocation8 + $0x68] sm:$0xff]
    %v3373 = vld [vmem:[#allocation8 + $0x70] sm:$0xff]
    %v3374 = vld [vmem:[#allocation8 + $0x78] sm:$0xff]
    %v3375 = vld [vmem:[#allocation8 + $0x80] sm:$0xff]
    %v3376 = vld [vmem:[#allocation8 + $0x88] sm:$0xff]
    %v3377 = vld [vmem:[#allocation8 + $0x90] sm:$0xff]
    %v3378 = vld [vmem:[#allocation8 + $0x98] sm:$0xff]
    %v3379 = vld [vmem:[#allocation8 + $0xa0] sm:$0xff]
    %v3380 = vld [vmem:[#allocation8 + $0xa8] sm:$0xff]
    %v3381 = vld [vmem:[#allocation8 + $0xb0] sm:$0xff]
    %v3382 = vld [vmem:[#allocation8 + $0xb8] sm:$0xff]
    %v3383 = vld [vmem:[#allocation8 + $0xc0] sm:$0xff]
    %v3384 = vld [vmem:[#allocation8 + $0xc8] sm:$0xff]
    %v3385 = vld [vmem:[#allocation8 + $0xd0] sm:$0xff]
    %v3386 = vld [vmem:[#allocation8 + $0xd8] sm:$0xff]
    %v3387 = vld [vmem:[#allocation8 + $0xe0] sm:$0xff]
    %v3388 = vld [vmem:[#allocation8 + $0xe8] sm:$0xff]
    %v3389 = vld [vmem:[#allocation8 + $0xf0] sm:$0xff]
    %v3390 = vld [vmem:[#allocation8 + $0xf8] sm:$0xff]
    %v3391 = vld [vmem:[#allocation8 + $0x100] sm:$0xff]
    %v3392 = vld [vmem:[#allocation8 + $0x108] sm:$0xff]
    %v3393 = vld [vmem:[#allocation8 + $0x110] sm:$0xff]
    %v3394 = vld [vmem:[#allocation8 + $0x118] sm:$0xff]
    %v3395 = vld [vmem:[#allocation8 + $0x120] sm:$0xff]
    %v3396 = vld [vmem:[#allocation8 + $0x128] sm:$0xff]
    %v3397 = vld [vmem:[#allocation8 + $0x130] sm:$0xff]
    %v3398 = vld [vmem:[#allocation8 + $0x138] sm:$0xff]
    %v3399 = vld [vmem:[#allocation8 + $0x140] sm:$0xff]
    %v3400 = vld [vmem:[#allocation8 + $0x148] sm:$0xff]
    %v3401 = vld [vmem:[#allocation8 + $0x150] sm:$0xff]
    %v3402 = vld [vmem:[#allocation8 + $0x158] sm:$0xff]
    %v3403 = vld [vmem:[#allocation8 + $0x160] sm:$0xff]
    %v3404 = vld [vmem:[#allocation8 + $0x168] sm:$0xff]
    %v3405 = vld [vmem:[#allocation8 + $0x170] sm:$0xff]
    %v3406 = vld [vmem:[#allocation8 + $0x178] sm:$0xff]
    %v3407 = vld [vmem:[#allocation8 + $0x180] sm:$0xff]
    %v3408 = vld [vmem:[#allocation8 + $0x188] sm:$0xff]
    %v3409 = vld [vmem:[#allocation8 + $0x190] sm:$0xff]
    %v3410 = vld [vmem:[#allocation8 + $0x198] sm:$0xff]
    %v3411 = vld [vmem:[#allocation8 + $0x1a0] sm:$0xff]
    %v3412 = vld [vmem:[#allocation8 + $0x1a8] sm:$0xff]
    %v3413 = vld [vmem:[#allocation8 + $0x1b0] sm:$0xff]
    %v3414 = vld [vmem:[#allocation8 + $0x1b8] sm:$0xff]
    %v3415 = vld [vmem:[#allocation8 + $0x1c0] sm:$0xff]
    %v3416 = vld [vmem:[#allocation8 + $0x1c8] sm:$0xff]
    %v3417 = vld [vmem:[#allocation8 + $0x1d0] sm:$0xff]
    %v3418 = vld [vmem:[#allocation8 + $0x1d8] sm:$0xff]
    %v3419 = vld [vmem:[#allocation8 + $0x1e0] sm:$0xff]
    %v3420 = vld [vmem:[#allocation8 + $0x1e8] sm:$0xff]
    %v3421 = vld [vmem:[#allocation8 + $0x1f0] sm:$0xff]
    %v3422 = vld [vmem:[#allocation8 + $0x1f8] sm:$0xff]
    %v3423 = vld [vmem:[#allocation8 + $0x200] sm:$0xff]
    %v3424 = vld [vmem:[#allocation8 + $0x208] sm:$0xff]
    %v3425 = vld [vmem:[#allocation8 + $0x210] sm:$0xff]
    %v3426 = vld [vmem:[#allocation8 + $0x218] sm:$0xff]
    %v3427 = vld [vmem:[#allocation8 + $0x220] sm:$0xff]
    %v3428 = vld [vmem:[#allocation8 + $0x228] sm:$0xff]
    %v3429 = vld [vmem:[#allocation8 + $0x230] sm:$0xff]
    %v3430 = vld [vmem:[#allocation8 + $0x238] sm:$0xff]
    %v3431 = vld [vmem:[#allocation8 + $0x240] sm:$0xff]
    %v3432 = vld [vmem:[#allocation8 + $0x248] sm:$0xff]
    %v3433 = vld [vmem:[#allocation8 + $0x250] sm:$0xff]
    %v3434 = vld [vmem:[#allocation8 + $0x258] sm:$0xff]
    %v3435 = vld [vmem:[#allocation8 + $0x260] sm:$0xff]
    %v3436 = vld [vmem:[#allocation8 + $0x268] sm:$0xff]
    %v3437 = vld [vmem:[#allocation8 + $0x270] sm:$0xff]
    %v3438 = vld [vmem:[#allocation8 + $0x278] sm:$0xff]
    %v3439 = vld [vmem:[#allocation8 + $0x280] sm:$0xff]
    %v3440 = vld [vmem:[#allocation8 + $0x288] sm:$0xff]
    %v3441 = vld [vmem:[#allocation8 + $0x290] sm:$0xff]
    %v3442 = vld [vmem:[#allocation8 + $0x298] sm:$0xff]
    %v3443 = vld [vmem:[#allocation8 + $0x2a0] sm:$0xff]
    %v3444 = vld [vmem:[#allocation8 + $0x2a8] sm:$0xff]
    %v3445 = vld [vmem:[#allocation8 + $0x2b0] sm:$0xff]
    %v3446 = vld [vmem:[#allocation8 + $0x2b8] sm:$0xff]
    %v3447 = vld [vmem:[#allocation8 + $0x2c0] sm:$0xff]
    %v3448 = vld [vmem:[#allocation8 + $0x2c8] sm:$0xff]
    %v3449 = vld [vmem:[#allocation8 + $0x2d0] sm:$0xff]
    %v3450 = vld [vmem:[#allocation8 + $0x2d8] sm:$0xff]
    %v3451 = vld [vmem:[#allocation8 + $0x2e0] sm:$0xff]
    %v3452 = vld [vmem:[#allocation8 + $0x2e8] sm:$0xff]
    %v3453 = vld [vmem:[#allocation8 + $0x2f0] sm:$0xff]
    %v3454 = vld [vmem:[#allocation8 + $0x2f8] sm:$0xff]
    %v3455 = vld [vmem:[#allocation8 + $0x300] sm:$0xff]
    %v3456 = vld [vmem:[#allocation8 + $0x308] sm:$0xff]
    %v3457 = vld [vmem:[#allocation8 + $0x310] sm:$0xff]
    %v3458 = vld [vmem:[#allocation8 + $0x318] sm:$0xff]
    %v3459 = vld [vmem:[#allocation8 + $0x320] sm:$0xff]
    %v3460 = vld [vmem:[#allocation8 + $0x328] sm:$0xff]
    %v3461 = vld [vmem:[#allocation8 + $0x330] sm:$0xff]
    %v3462 = vld [vmem:[#allocation8 + $0x338] sm:$0xff]
    %v3463 = vld [vmem:[#allocation8 + $0x340] sm:$0xff]
    %v3464 = vld [vmem:[#allocation8 + $0x348] sm:$0xff]
    %v3465 = vld [vmem:[#allocation8 + $0x350] sm:$0xff]
    %v3466 = vld [vmem:[#allocation8 + $0x358] sm:$0xff]
    %v3467 = vld [vmem:[#allocation8 + $0x360] sm:$0xff]
    %v3468 = vld [vmem:[#allocation8 + $0x368] sm:$0xff]
    %v3469 = vld [vmem:[#allocation8 + $0x370] sm:$0xff]
    %v3470 = vld [vmem:[#allocation8 + $0x378] sm:$0xff]
    %v3471 = vld [vmem:[#allocation8 + $0x380] sm:$0xff]
    %v3472 = vld [vmem:[#allocation8 + $0x388] sm:$0xff]
    %v3473 = vld [vmem:[#allocation8 + $0x390] sm:$0xff]
    %v3474 = vld [vmem:[#allocation8 + $0x398] sm:$0xff]
    %v3475 = vld [vmem:[#allocation8 + $0x3a0] sm:$0xff]
    %v3476 = vld [vmem:[#allocation8 + $0x3a8] sm:$0xff]
    %v3477 = vld [vmem:[#allocation8 + $0x3b0] sm:$0xff]
    %v3478 = vld [vmem:[#allocation8 + $0x3b8] sm:$0xff]
    %v3479 = vld [vmem:[#allocation8 + $0x3c0] sm:$0xff]
    %v3480 = vld [vmem:[#allocation8 + $0x3c8] sm:$0xff]
    %v3481 = vld [vmem:[#allocation8 + $0x3d0] sm:$0xff]
    %v3482 = vld [vmem:[#allocation8 + $0x3d8] sm:$0xff]
    %v3483 = vld [vmem:[#allocation8 + $0x3e0] sm:$0xff]
    %v3484 = vld [vmem:[#allocation8 + $0x3e8] sm:$0xff]
    %v3485 = vld [vmem:[#allocation8 + $0x3f0] sm:$0xff]
    %v3486 = vld [vmem:[#allocation8 + $0x3f8] sm:$0xff]
    %v3487 = vld [vmem:[#allocation8 + $0x400] sm:$0xff]
    %v3488 = vld [vmem:[#allocation8 + $0x408] sm:$0xff]
    %v3489 = vld [vmem:[#allocation8 + $0x410] sm:$0xff]
    %v3490 = vld [vmem:[#allocation8 + $0x418] sm:$0xff]
    %v3491 = vld [vmem:[#allocation8 + $0x420] sm:$0xff]
    %v3492 = vld [vmem:[#allocation8 + $0x428] sm:$0xff]
    %v3493 = vld [vmem:[#allocation8 + $0x430] sm:$0xff]
    %v3494 = vld [vmem:[#allocation8 + $0x438] sm:$0xff]
    %v3495 = vld [vmem:[#allocation8 + $0x440] sm:$0xff]
    %v3496 = vld [vmem:[#allocation8 + $0x448] sm:$0xff]
    %v3497 = vld [vmem:[#allocation8 + $0x450] sm:$0xff]
    %v3498 = vld [vmem:[#allocation8 + $0x458] sm:$0xff]
    %v3499 = vld [vmem:[#allocation8 + $0x460] sm:$0xff]
    %v3500 = vld [vmem:[#allocation8 + $0x468] sm:$0xff]
    %v3501 = vld [vmem:[#allocation8 + $0x470] sm:$0xff]
    %v3502 = vld [vmem:[#allocation8 + $0x478] sm:$0xff]
    %v3503 = vld [vmem:[#allocation8 + $0x480] sm:$0xff]
    %v3504 = vld [vmem:[#allocation8 + $0x488] sm:$0xff]
    %v3505 = vld [vmem:[#allocation8 + $0x490] sm:$0xff]
    %v3506 = vld [vmem:[#allocation8 + $0x498] sm:$0xff]
    %v3507 = vld [vmem:[#allocation8 + $0x4a0] sm:$0xff]
    %v3508 = vld [vmem:[#allocation8 + $0x4a8] sm:$0xff]
    %v3509 = vld [vmem:[#allocation8 + $0x4b0] sm:$0xff]
    %v3510 = vld [vmem:[#allocation8 + $0x4b8] sm:$0xff]
    %v3511 = vld [vmem:[#allocation8 + $0x4c0] sm:$0xff]
    %v3512 = vld [vmem:[#allocation8 + $0x4c8] sm:$0xff]
    %v3513 = vld [vmem:[#allocation8 + $0x4d0] sm:$0xff]
    %v3514 = vld [vmem:[#allocation8 + $0x4d8] sm:$0xff]
    %v3515 = vld [vmem:[#allocation8 + $0x4e0] sm:$0xff]
    %v3516 = vld [vmem:[#allocation8 + $0x4e8] sm:$0xff]
    %v3517 = vld [vmem:[#allocation8 + $0x4f0] sm:$0xff]
    %v3518 = vld [vmem:[#allocation8 + $0x4f8] sm:$0xff]
    %v3519 = vld [vmem:[#allocation8 + $0x500] sm:$0xff]
    %v3520 = vld [vmem:[#allocation8 + $0x508] sm:$0xff]
    %v3521 = vld [vmem:[#allocation8 + $0x510] sm:$0xff]
    %v3522 = vld [vmem:[#allocation8 + $0x518] sm:$0xff]
    %v3523 = vld [vmem:[#allocation8 + $0x520] sm:$0xff]
    %v3524 = vld [vmem:[#allocation8 + $0x528] sm:$0xff]
    %v3525 = vld [vmem:[#allocation8 + $0x530] sm:$0xff]
    %v3526 = vld [vmem:[#allocation8 + $0x538] sm:$0xff]
    %v3527 = vld [vmem:[#allocation8 + $0x540] sm:$0xff]
    %v3528 = vld [vmem:[#allocation8 + $0x548] sm:$0xff]
    %v3529 = vld [vmem:[#allocation8 + $0x550] sm:$0xff]
    %v3530 = vld [vmem:[#allocation8 + $0x558] sm:$0xff]
    %v3531 = vld [vmem:[#allocation8 + $0x560] sm:$0xff]
    %v3532 = vld [vmem:[#allocation8 + $0x568] sm:$0xff]
    %v3533 = vld [vmem:[#allocation8 + $0x570] sm:$0xff]
    %v3534 = vld [vmem:[#allocation8 + $0x578] sm:$0xff]
    %v3535 = vld [vmem:[#allocation8 + $0x580] sm:$0xff]
    %v3536 = vld [vmem:[#allocation8 + $0x588] sm:$0xff]
    %v3537 = vld [vmem:[#allocation8 + $0x590] sm:$0xff]
    %v3538 = vld [vmem:[#allocation8 + $0x598] sm:$0xff]
    %v3539 = vld [vmem:[#allocation8 + $0x5a0] sm:$0xff]
    %v3540 = vld [vmem:[#allocation8 + $0x5a8] sm:$0xff]
    %v3541 = vld [vmem:[#allocation8 + $0x5b0] sm:$0xff]
    %v3542 = vld [vmem:[#allocation8 + $0x5b8] sm:$0xff]
    %v3543 = vld [vmem:[#allocation8 + $0x5c0] sm:$0xff]
    %v3544 = vld [vmem:[#allocation8 + $0x5c8] sm:$0xff]
    %v3545 = vld [vmem:[#allocation8 + $0x5d0] sm:$0xff]
    %v3546 = vld [vmem:[#allocation8 + $0x5d8] sm:$0xff]
    %v3547 = vld [vmem:[#allocation8 + $0x5e0] sm:$0xff]
    %v3548 = vld [vmem:[#allocation8 + $0x5e8] sm:$0xff]
    %v3549 = vld [vmem:[#allocation8 + $0x5f0] sm:$0xff]
    %v3550 = vld [vmem:[#allocation8 + $0x5f8] sm:$0xff]
    %v3551 = vld [vmem:[#allocation8 + $0x600] sm:$0xff]
    %v3552 = vld [vmem:[#allocation8 + $0x608] sm:$0xff]
    %v3553 = vld [vmem:[#allocation8 + $0x610] sm:$0xff]
    %v3554 = vld [vmem:[#allocation8 + $0x618] sm:$0xff]
    %v3555 = vld [vmem:[#allocation8 + $0x620] sm:$0xff]
    %v3556 = vld [vmem:[#allocation8 + $0x628] sm:$0xff]
    %v3557 = vld [vmem:[#allocation8 + $0x630] sm:$0xff]
    %v3558 = vld [vmem:[#allocation8 + $0x638] sm:$0xff]
    %v3559 = vld [vmem:[#allocation8 + $0x640] sm:$0xff]
    %v3560 = vld [vmem:[#allocation8 + $0x648] sm:$0xff]
    %v3561 = vld [vmem:[#allocation8 + $0x650] sm:$0xff]
    %v3562 = vld [vmem:[#allocation8 + $0x658] sm:$0xff]
    %v3563 = vld [vmem:[#allocation8 + $0x660] sm:$0xff]
    %v3564 = vld [vmem:[#allocation8 + $0x668] sm:$0xff]
    %v3565 = vld [vmem:[#allocation8 + $0x670] sm:$0xff]
    %v3566 = vld [vmem:[#allocation8 + $0x678] sm:$0xff]
    %v3567 = vld [vmem:[#allocation8 + $0x680] sm:$0xff]
    %v3568 = vld [vmem:[#allocation8 + $0x688] sm:$0xff]
    %v3569 = vld [vmem:[#allocation8 + $0x690] sm:$0xff]
    %v3570 = vld [vmem:[#allocation8 + $0x698] sm:$0xff]
    %v3571 = vld [vmem:[#allocation8 + $0x6a0] sm:$0xff]
    %v3572 = vld [vmem:[#allocation8 + $0x6a8] sm:$0xff]
    %v3573 = vld [vmem:[#allocation8 + $0x6b0] sm:$0xff]
    %v3574 = vld [vmem:[#allocation8 + $0x6b8] sm:$0xff]
    %v3575 = vld [vmem:[#allocation8 + $0x6c0] sm:$0xff]
    %v3576 = vld [vmem:[#allocation8 + $0x6c8] sm:$0xff]
    %v3577 = vld [vmem:[#allocation8 + $0x6d0] sm:$0xff]
    %v3578 = vld [vmem:[#allocation8 + $0x6d8] sm:$0xff]
    %v3579 = vld [vmem:[#allocation8 + $0x6e0] sm:$0xff]
    %v3580 = vld [vmem:[#allocation8 + $0x6e8] sm:$0xff]
    %v3581 = vld [vmem:[#allocation8 + $0x6f0] sm:$0xff]
    %v3582 = vld [vmem:[#allocation8 + $0x6f8] sm:$0xff]
    %v3583 = vld [vmem:[#allocation8 + $0x700] sm:$0xff]
    %v3584 = vld [vmem:[#allocation8 + $0x708] sm:$0xff]
    %v3585 = vld [vmem:[#allocation8 + $0x710] sm:$0xff]
    %v3586 = vld [vmem:[#allocation8 + $0x718] sm:$0xff]
    %v3587 = vld [vmem:[#allocation8 + $0x720] sm:$0xff]
    %v3588 = vld [vmem:[#allocation8 + $0x728] sm:$0xff]
    %v3589 = vld [vmem:[#allocation8 + $0x730] sm:$0xff]
    %v3590 = vld [vmem:[#allocation8 + $0x738] sm:$0xff]
    %v3591 = vld [vmem:[#allocation8 + $0x740] sm:$0xff]
    %v3592 = vld [vmem:[#allocation8 + $0x748] sm:$0xff]
    %v3593 = vld [vmem:[#allocation8 + $0x750] sm:$0xff]
    %v3594 = vld [vmem:[#allocation8 + $0x758] sm:$0xff]
    %v3595 = vld [vmem:[#allocation8 + $0x760] sm:$0xff]
    %v3596 = vld [vmem:[#allocation8 + $0x768] sm:$0xff]
    %v3597 = vld [vmem:[#allocation8 + $0x770] sm:$0xff]
    %v3598 = vld [vmem:[#allocation8 + $0x778] sm:$0xff]
    %v3599 = vld [vmem:[#allocation8 + $0x780] sm:$0xff]
    %v3600 = vld [vmem:[#allocation8 + $0x788] sm:$0xff]
    %v3601 = vld [vmem:[#allocation8 + $0x790] sm:$0xff]
    %v3602 = vld [vmem:[#allocation8 + $0x798] sm:$0xff]
    %v3603 = vld [vmem:[#allocation8 + $0x7a0] sm:$0xff]
    %v3604 = vld [vmem:[#allocation8 + $0x7a8] sm:$0xff]
    %v3605 = vld [vmem:[#allocation8 + $0x7b0] sm:$0xff]
    %v3606 = vld [vmem:[#allocation8 + $0x7b8] sm:$0xff]
    %v3607 = vld [vmem:[#allocation8 + $0x7c0] sm:$0xff]
    %v3608 = vld [vmem:[#allocation8 + $0x7c8] sm:$0xff]
    %v3609 = vld [vmem:[#allocation8 + $0x7d0] sm:$0xff]
    %v3610 = vld [vmem:[#allocation8 + $0x7d8] sm:$0xff]
    %v3611 = vld [vmem:[#allocation8 + $0x7e0] sm:$0xff]
    %v3612 = vld [vmem:[#allocation8 + $0x7e8] sm:$0xff]
    %v3613 = vld [vmem:[#allocation8 + $0x7f0] sm:$0xff]
    %v3614 = vld [vmem:[#allocation8 + $0x7f8] sm:$0xff]
    %v3871 = vunpack.c.l.b16 %v3359
    %v3872 = vunpack.c.h.b16 %v3359
    %v3873 = vunpack.c.l.b16 %v3360
    %v3874 = vunpack.c.h.b16 %v3360
    %v3875 = vunpack.c.l.b16 %v3361
    %v3876 = vunpack.c.h.b16 %v3361
    %v3877 = vunpack.c.l.b16 %v3362
    %v3878 = vunpack.c.h.b16 %v3362
    %v3879 = vunpack.c.l.b16 %v3363
    %v3880 = vunpack.c.h.b16 %v3363
    %v3881 = vunpack.c.l.b16 %v3364
    %v3882 = vunpack.c.h.b16 %v3364
    %v3883 = vunpack.c.l.b16 %v3365
    %v3884 = vunpack.c.h.b16 %v3365
    %v3885 = vunpack.c.l.b16 %v3366
    %v3886 = vunpack.c.h.b16 %v3366
    %v3887 = vunpack.c.l.b16 %v3367
    %v3888 = vunpack.c.h.b16 %v3367
    %v3889 = vunpack.c.l.b16 %v3368
    %v3890 = vunpack.c.h.b16 %v3368
    %v3891 = vunpack.c.l.b16 %v3369
    %v3892 = vunpack.c.h.b16 %v3369
    %v3893 = vunpack.c.l.b16 %v3370
    %v3894 = vunpack.c.h.b16 %v3370
    %v3895 = vunpack.c.l.b16 %v3371
    %v3896 = vunpack.c.h.b16 %v3371
    %v3897 = vunpack.c.l.b16 %v3372
    %v3898 = vunpack.c.h.b16 %v3372
    %v3899 = vunpack.c.l.b16 %v3373
    %v3900 = vunpack.c.h.b16 %v3373
    %v3901 = vunpack.c.l.b16 %v3374
    %v3902 = vunpack.c.h.b16 %v3374
    %v3903 = vunpack.c.l.b16 %v3375
    %v3904 = vunpack.c.h.b16 %v3375
    %v3905 = vunpack.c.l.b16 %v3376
    %v3906 = vunpack.c.h.b16 %v3376
    %v3907 = vunpack.c.l.b16 %v3377
    %v3908 = vunpack.c.h.b16 %v3377
    %v3909 = vunpack.c.l.b16 %v3378
    %v3910 = vunpack.c.h.b16 %v3378
    %v3911 = vunpack.c.l.b16 %v3379
    %v3912 = vunpack.c.h.b16 %v3379
    %v3913 = vunpack.c.l.b16 %v3380
    %v3914 = vunpack.c.h.b16 %v3380
    %v3915 = vunpack.c.l.b16 %v3381
    %v3916 = vunpack.c.h.b16 %v3381
    %v3917 = vunpack.c.l.b16 %v3382
    %v3918 = vunpack.c.h.b16 %v3382
    %v3919 = vunpack.c.l.b16 %v3383
    %v3920 = vunpack.c.h.b16 %v3383
    %v3921 = vunpack.c.l.b16 %v3384
    %v3922 = vunpack.c.h.b16 %v3384
    %v3923 = vunpack.c.l.b16 %v3385
    %v3924 = vunpack.c.h.b16 %v3385
    %v3925 = vunpack.c.l.b16 %v3386
    %v3926 = vunpack.c.h.b16 %v3386
    %v3927 = vunpack.c.l.b16 %v3387
    %v3928 = vunpack.c.h.b16 %v3387
    %v3929 = vunpack.c.l.b16 %v3388
    %v3930 = vunpack.c.h.b16 %v3388
    %v3931 = vunpack.c.l.b16 %v3389
    %v3932 = vunpack.c.h.b16 %v3389
    %v3933 = vunpack.c.l.b16 %v3390
    %v3934 = vunpack.c.h.b16 %v3390
    %v3935 = vunpack.c.l.b16 %v3391
    %v3936 = vunpack.c.h.b16 %v3391
    %v3937 = vunpack.c.l.b16 %v3392
    %v3938 = vunpack.c.h.b16 %v3392
    %v3939 = vunpack.c.l.b16 %v3393
    %v3940 = vunpack.c.h.b16 %v3393
    %v3941 = vunpack.c.l.b16 %v3394
    %v3942 = vunpack.c.h.b16 %v3394
    %v3943 = vunpack.c.l.b16 %v3395
    %v3944 = vunpack.c.h.b16 %v3395
    %v3945 = vunpack.c.l.b16 %v3396
    %v3946 = vunpack.c.h.b16 %v3396
    %v3947 = vunpack.c.l.b16 %v3397
    %v3948 = vunpack.c.h.b16 %v3397
    %v3949 = vunpack.c.l.b16 %v3398
    %v3950 = vunpack.c.h.b16 %v3398
    %v3951 = vunpack.c.l.b16 %v3399
    %v3952 = vunpack.c.h.b16 %v3399
    %v3953 = vunpack.c.l.b16 %v3400
    %v3954 = vunpack.c.h.b16 %v3400
    %v3955 = vunpack.c.l.b16 %v3401
    %v3956 = vunpack.c.h.b16 %v3401
    %v3957 = vunpack.c.l.b16 %v3402
    %v3958 = vunpack.c.h.b16 %v3402
    %v3959 = vunpack.c.l.b16 %v3403
    %v3960 = vunpack.c.h.b16 %v3403
    %v3961 = vunpack.c.l.b16 %v3404
    %v3962 = vunpack.c.h.b16 %v3404
    %v3963 = vunpack.c.l.b16 %v3405
    %v3964 = vunpack.c.h.b16 %v3405
    %v3965 = vunpack.c.l.b16 %v3406
    %v3966 = vunpack.c.h.b16 %v3406
    %v3967 = vunpack.c.l.b16 %v3407
    %v3968 = vunpack.c.h.b16 %v3407
    %v3969 = vunpack.c.l.b16 %v3408
    %v3970 = vunpack.c.h.b16 %v3408
    %v3971 = vunpack.c.l.b16 %v3409
    %v3972 = vunpack.c.h.b16 %v3409
    %v3973 = vunpack.c.l.b16 %v3410
    %v3974 = vunpack.c.h.b16 %v3410
    %v3975 = vunpack.c.l.b16 %v3411
    %v3976 = vunpack.c.h.b16 %v3411
    %v3977 = vunpack.c.l.b16 %v3412
    %v3978 = vunpack.c.h.b16 %v3412
    %v3979 = vunpack.c.l.b16 %v3413
    %v3980 = vunpack.c.h.b16 %v3413
    %v3981 = vunpack.c.l.b16 %v3414
    %v3982 = vunpack.c.h.b16 %v3414
    %v3983 = vunpack.c.l.b16 %v3415
    %v3984 = vunpack.c.h.b16 %v3415
    %v3985 = vunpack.c.l.b16 %v3416
    %v3986 = vunpack.c.h.b16 %v3416
    %v3987 = vunpack.c.l.b16 %v3417
    %v3988 = vunpack.c.h.b16 %v3417
    %v3989 = vunpack.c.l.b16 %v3418
    %v3990 = vunpack.c.h.b16 %v3418
    %v3991 = vunpack.c.l.b16 %v3419
    %v3992 = vunpack.c.h.b16 %v3419
    %v3993 = vunpack.c.l.b16 %v3420
    %v3994 = vunpack.c.h.b16 %v3420
    %v3995 = vunpack.c.l.b16 %v3421
    %v3996 = vunpack.c.h.b16 %v3421
    %v3997 = vunpack.c.l.b16 %v3422
    %v3998 = vunpack.c.h.b16 %v3422
    %v3999 = vunpack.c.l.b16 %v3423
    %v4000 = vunpack.c.h.b16 %v3423
    %v4001 = vunpack.c.l.b16 %v3424
    %v4002 = vunpack.c.h.b16 %v3424
    %v4003 = vunpack.c.l.b16 %v3425
    %v4004 = vunpack.c.h.b16 %v3425
    %v4005 = vunpack.c.l.b16 %v3426
    %v4006 = vunpack.c.h.b16 %v3426
    %v4007 = vunpack.c.l.b16 %v3427
    %v4008 = vunpack.c.h.b16 %v3427
    %v4009 = vunpack.c.l.b16 %v3428
    %v4010 = vunpack.c.h.b16 %v3428
    %v4011 = vunpack.c.l.b16 %v3429
    %v4012 = vunpack.c.h.b16 %v3429
    %v4013 = vunpack.c.l.b16 %v3430
    %v4014 = vunpack.c.h.b16 %v3430
    %v4015 = vunpack.c.l.b16 %v3431
    %v4016 = vunpack.c.h.b16 %v3431
    %v4017 = vunpack.c.l.b16 %v3432
    %v4018 = vunpack.c.h.b16 %v3432
    %v4019 = vunpack.c.l.b16 %v3433
    %v4020 = vunpack.c.h.b16 %v3433
    %v4021 = vunpack.c.l.b16 %v3434
    %v4022 = vunpack.c.h.b16 %v3434
    %v4023 = vunpack.c.l.b16 %v3435
    %v4024 = vunpack.c.h.b16 %v3435
    %v4025 = vunpack.c.l.b16 %v3436
    %v4026 = vunpack.c.h.b16 %v3436
    %v4027 = vunpack.c.l.b16 %v3437
    %v4028 = vunpack.c.h.b16 %v3437
    %v4029 = vunpack.c.l.b16 %v3438
    %v4030 = vunpack.c.h.b16 %v3438
    %v4031 = vunpack.c.l.b16 %v3439
    %v4032 = vunpack.c.h.b16 %v3439
    %v4033 = vunpack.c.l.b16 %v3440
    %v4034 = vunpack.c.h.b16 %v3440
    %v4035 = vunpack.c.l.b16 %v3441
    %v4036 = vunpack.c.h.b16 %v3441
    %v4037 = vunpack.c.l.b16 %v3442
    %v4038 = vunpack.c.h.b16 %v3442
    %v4039 = vunpack.c.l.b16 %v3443
    %v4040 = vunpack.c.h.b16 %v3443
    %v4041 = vunpack.c.l.b16 %v3444
    %v4042 = vunpack.c.h.b16 %v3444
    %v4043 = vunpack.c.l.b16 %v3445
    %v4044 = vunpack.c.h.b16 %v3445
    %v4045 = vunpack.c.l.b16 %v3446
    %v4046 = vunpack.c.h.b16 %v3446
    %v4047 = vunpack.c.l.b16 %v3447
    %v4048 = vunpack.c.h.b16 %v3447
    %v4049 = vunpack.c.l.b16 %v3448
    %v4050 = vunpack.c.h.b16 %v3448
    %v4051 = vunpack.c.l.b16 %v3449
    %v4052 = vunpack.c.h.b16 %v3449
    %v4053 = vunpack.c.l.b16 %v3450
    %v4054 = vunpack.c.h.b16 %v3450
    %v4055 = vunpack.c.l.b16 %v3451
    %v4056 = vunpack.c.h.b16 %v3451
    %v4057 = vunpack.c.l.b16 %v3452
    %v4058 = vunpack.c.h.b16 %v3452
    %v4059 = vunpack.c.l.b16 %v3453
    %v4060 = vunpack.c.h.b16 %v3453
    %v4061 = vunpack.c.l.b16 %v3454
    %v4062 = vunpack.c.h.b16 %v3454
    %v4063 = vunpack.c.l.b16 %v3455
    %v4064 = vunpack.c.h.b16 %v3455
    %v4065 = vunpack.c.l.b16 %v3456
    %v4066 = vunpack.c.h.b16 %v3456
    %v4067 = vunpack.c.l.b16 %v3457
    %v4068 = vunpack.c.h.b16 %v3457
    %v4069 = vunpack.c.l.b16 %v3458
    %v4070 = vunpack.c.h.b16 %v3458
    %v4071 = vunpack.c.l.b16 %v3459
    %v4072 = vunpack.c.h.b16 %v3459
    %v4073 = vunpack.c.l.b16 %v3460
    %v4074 = vunpack.c.h.b16 %v3460
    %v4075 = vunpack.c.l.b16 %v3461
    %v4076 = vunpack.c.h.b16 %v3461
    %v4077 = vunpack.c.l.b16 %v3462
    %v4078 = vunpack.c.h.b16 %v3462
    %v4079 = vunpack.c.l.b16 %v3463
    %v4080 = vunpack.c.h.b16 %v3463
    %v4081 = vunpack.c.l.b16 %v3464
    %v4082 = vunpack.c.h.b16 %v3464
    %v4083 = vunpack.c.l.b16 %v3465
    %v4084 = vunpack.c.h.b16 %v3465
    %v4085 = vunpack.c.l.b16 %v3466
    %v4086 = vunpack.c.h.b16 %v3466
    %v4087 = vunpack.c.l.b16 %v3467
    %v4088 = vunpack.c.h.b16 %v3467
    %v4089 = vunpack.c.l.b16 %v3468
    %v4090 = vunpack.c.h.b16 %v3468
    %v4091 = vunpack.c.l.b16 %v3469
    %v4092 = vunpack.c.h.b16 %v3469
    %v4093 = vunpack.c.l.b16 %v3470
    %v4094 = vunpack.c.h.b16 %v3470
    %v4095 = vunpack.c.l.b16 %v3471
    %v4096 = vunpack.c.h.b16 %v3471
    %v4097 = vunpack.c.l.b16 %v3472
    %v4098 = vunpack.c.h.b16 %v3472
    %v4099 = vunpack.c.l.b16 %v3473
    %v4100 = vunpack.c.h.b16 %v3473
    %v4101 = vunpack.c.l.b16 %v3474
    %v4102 = vunpack.c.h.b16 %v3474
    %v4103 = vunpack.c.l.b16 %v3475
    %v4104 = vunpack.c.h.b16 %v3475
    %v4105 = vunpack.c.l.b16 %v3476
    %v4106 = vunpack.c.h.b16 %v3476
    %v4107 = vunpack.c.l.b16 %v3477
    %v4108 = vunpack.c.h.b16 %v3477
    %v4109 = vunpack.c.l.b16 %v3478
    %v4110 = vunpack.c.h.b16 %v3478
    %v4111 = vunpack.c.l.b16 %v3479
    %v4112 = vunpack.c.h.b16 %v3479
    %v4113 = vunpack.c.l.b16 %v3480
    %v4114 = vunpack.c.h.b16 %v3480
    %v4115 = vunpack.c.l.b16 %v3481
    %v4116 = vunpack.c.h.b16 %v3481
    %v4117 = vunpack.c.l.b16 %v3482
    %v4118 = vunpack.c.h.b16 %v3482
    %v4119 = vunpack.c.l.b16 %v3483
    %v4120 = vunpack.c.h.b16 %v3483
    %v4121 = vunpack.c.l.b16 %v3484
    %v4122 = vunpack.c.h.b16 %v3484
    %v4123 = vunpack.c.l.b16 %v3485
    %v4124 = vunpack.c.h.b16 %v3485
    %v4125 = vunpack.c.l.b16 %v3486
    %v4126 = vunpack.c.h.b16 %v3486
    %v4127 = vunpack.c.l.b16 %v3487
    %v4128 = vunpack.c.h.b16 %v3487
    %v4129 = vunpack.c.l.b16 %v3488
    %v4130 = vunpack.c.h.b16 %v3488
    %v4131 = vunpack.c.l.b16 %v3489
    %v4132 = vunpack.c.h.b16 %v3489
    %v4133 = vunpack.c.l.b16 %v3490
    %v4134 = vunpack.c.h.b16 %v3490
    %v4135 = vunpack.c.l.b16 %v3491
    %v4136 = vunpack.c.h.b16 %v3491
    %v4137 = vunpack.c.l.b16 %v3492
    %v4138 = vunpack.c.h.b16 %v3492
    %v4139 = vunpack.c.l.b16 %v3493
    %v4140 = vunpack.c.h.b16 %v3493
    %v4141 = vunpack.c.l.b16 %v3494
    %v4142 = vunpack.c.h.b16 %v3494
    %v4143 = vunpack.c.l.b16 %v3495
    %v4144 = vunpack.c.h.b16 %v3495
    %v4145 = vunpack.c.l.b16 %v3496
    %v4146 = vunpack.c.h.b16 %v3496
    %v4147 = vunpack.c.l.b16 %v3497
    %v4148 = vunpack.c.h.b16 %v3497
    %v4149 = vunpack.c.l.b16 %v3498
    %v4150 = vunpack.c.h.b16 %v3498
    %v4151 = vunpack.c.l.b16 %v3499
    %v4152 = vunpack.c.h.b16 %v3499
    %v4153 = vunpack.c.l.b16 %v3500
    %v4154 = vunpack.c.h.b16 %v3500
    %v4155 = vunpack.c.l.b16 %v3501
    %v4156 = vunpack.c.h.b16 %v3501
    %v4157 = vunpack.c.l.b16 %v3502
    %v4158 = vunpack.c.h.b16 %v3502
    %v4159 = vunpack.c.l.b16 %v3503
    %v4160 = vunpack.c.h.b16 %v3503
    %v4161 = vunpack.c.l.b16 %v3504
    %v4162 = vunpack.c.h.b16 %v3504
    %v4163 = vunpack.c.l.b16 %v3505
    %v4164 = vunpack.c.h.b16 %v3505
    %v4165 = vunpack.c.l.b16 %v3506
    %v4166 = vunpack.c.h.b16 %v3506
    %v4167 = vunpack.c.l.b16 %v3507
    %v4168 = vunpack.c.h.b16 %v3507
    %v4169 = vunpack.c.l.b16 %v3508
    %v4170 = vunpack.c.h.b16 %v3508
    %v4171 = vunpack.c.l.b16 %v3509
    %v4172 = vunpack.c.h.b16 %v3509
    %v4173 = vunpack.c.l.b16 %v3510
    %v4174 = vunpack.c.h.b16 %v3510
    %v4175 = vunpack.c.l.b16 %v3511
    %v4176 = vunpack.c.h.b16 %v3511
    %v4177 = vunpack.c.l.b16 %v3512
    %v4178 = vunpack.c.h.b16 %v3512
    %v4179 = vunpack.c.l.b16 %v3513
    %v4180 = vunpack.c.h.b16 %v3513
    %v4181 = vunpack.c.l.b16 %v3514
    %v4182 = vunpack.c.h.b16 %v3514
    %v4183 = vunpack.c.l.b16 %v3515
    %v4184 = vunpack.c.h.b16 %v3515
    %v4185 = vunpack.c.l.b16 %v3516
    %v4186 = vunpack.c.h.b16 %v3516
    %v4187 = vunpack.c.l.b16 %v3517
    %v4188 = vunpack.c.h.b16 %v3517
    %v4189 = vunpack.c.l.b16 %v3518
    %v4190 = vunpack.c.h.b16 %v3518
    %v4191 = vunpack.c.l.b16 %v3519
    %v4192 = vunpack.c.h.b16 %v3519
    %v4193 = vunpack.c.l.b16 %v3520
    %v4194 = vunpack.c.h.b16 %v3520
    %v4195 = vunpack.c.l.b16 %v3521
    %v4196 = vunpack.c.h.b16 %v3521
    %v4197 = vunpack.c.l.b16 %v3522
    %v4198 = vunpack.c.h.b16 %v3522
    %v4199 = vunpack.c.l.b16 %v3523
    %v4200 = vunpack.c.h.b16 %v3523
    %v4201 = vunpack.c.l.b16 %v3524
    %v4202 = vunpack.c.h.b16 %v3524
    %v4203 = vunpack.c.l.b16 %v3525
    %v4204 = vunpack.c.h.b16 %v3525
    %v4205 = vunpack.c.l.b16 %v3526
    %v4206 = vunpack.c.h.b16 %v3526
    %v4207 = vunpack.c.l.b16 %v3527
    %v4208 = vunpack.c.h.b16 %v3527
    %v4209 = vunpack.c.l.b16 %v3528
    %v4210 = vunpack.c.h.b16 %v3528
    %v4211 = vunpack.c.l.b16 %v3529
    %v4212 = vunpack.c.h.b16 %v3529
    %v4213 = vunpack.c.l.b16 %v3530
    %v4214 = vunpack.c.h.b16 %v3530
    %v4215 = vunpack.c.l.b16 %v3531
    %v4216 = vunpack.c.h.b16 %v3531
    %v4217 = vunpack.c.l.b16 %v3532
    %v4218 = vunpack.c.h.b16 %v3532
    %v4219 = vunpack.c.l.b16 %v3533
    %v4220 = vunpack.c.h.b16 %v3533
    %v4221 = vunpack.c.l.b16 %v3534
    %v4222 = vunpack.c.h.b16 %v3534
    %v4223 = vunpack.c.l.b16 %v3535
    %v4224 = vunpack.c.h.b16 %v3535
    %v4225 = vunpack.c.l.b16 %v3536
    %v4226 = vunpack.c.h.b16 %v3536
    %v4227 = vunpack.c.l.b16 %v3537
    %v4228 = vunpack.c.h.b16 %v3537
    %v4229 = vunpack.c.l.b16 %v3538
    %v4230 = vunpack.c.h.b16 %v3538
    %v4231 = vunpack.c.l.b16 %v3539
    %v4232 = vunpack.c.h.b16 %v3539
    %v4233 = vunpack.c.l.b16 %v3540
    %v4234 = vunpack.c.h.b16 %v3540
    %v4235 = vunpack.c.l.b16 %v3541
    %v4236 = vunpack.c.h.b16 %v3541
    %v4237 = vunpack.c.l.b16 %v3542
    %v4238 = vunpack.c.h.b16 %v3542
    %v4239 = vunpack.c.l.b16 %v3543
    %v4240 = vunpack.c.h.b16 %v3543
    %v4241 = vunpack.c.l.b16 %v3544
    %v4242 = vunpack.c.h.b16 %v3544
    %v4243 = vunpack.c.l.b16 %v3545
    %v4244 = vunpack.c.h.b16 %v3545
    %v4245 = vunpack.c.l.b16 %v3546
    %v4246 = vunpack.c.h.b16 %v3546
    %v4247 = vunpack.c.l.b16 %v3547
    %v4248 = vunpack.c.h.b16 %v3547
    %v4249 = vunpack.c.l.b16 %v3548
    %v4250 = vunpack.c.h.b16 %v3548
    %v4251 = vunpack.c.l.b16 %v3549
    %v4252 = vunpack.c.h.b16 %v3549
    %v4253 = vunpack.c.l.b16 %v3550
    %v4254 = vunpack.c.h.b16 %v3550
    %v4255 = vunpack.c.l.b16 %v3551
    %v4256 = vunpack.c.h.b16 %v3551
    %v4257 = vunpack.c.l.b16 %v3552
    %v4258 = vunpack.c.h.b16 %v3552
    %v4259 = vunpack.c.l.b16 %v3553
    %v4260 = vunpack.c.h.b16 %v3553
    %v4261 = vunpack.c.l.b16 %v3554
    %v4262 = vunpack.c.h.b16 %v3554
    %v4263 = vunpack.c.l.b16 %v3555
    %v4264 = vunpack.c.h.b16 %v3555
    %v4265 = vunpack.c.l.b16 %v3556
    %v4266 = vunpack.c.h.b16 %v3556
    %v4267 = vunpack.c.l.b16 %v3557
    %v4268 = vunpack.c.h.b16 %v3557
    %v4269 = vunpack.c.l.b16 %v3558
    %v4270 = vunpack.c.h.b16 %v3558
    %v4271 = vunpack.c.l.b16 %v3559
    %v4272 = vunpack.c.h.b16 %v3559
    %v4273 = vunpack.c.l.b16 %v3560
    %v4274 = vunpack.c.h.b16 %v3560
    %v4275 = vunpack.c.l.b16 %v3561
    %v4276 = vunpack.c.h.b16 %v3561
    %v4277 = vunpack.c.l.b16 %v3562
    %v4278 = vunpack.c.h.b16 %v3562
    %v4279 = vunpack.c.l.b16 %v3563
    %v4280 = vunpack.c.h.b16 %v3563
    %v4281 = vunpack.c.l.b16 %v3564
    %v4282 = vunpack.c.h.b16 %v3564
    %v4283 = vunpack.c.l.b16 %v3565
    %v4284 = vunpack.c.h.b16 %v3565
    %v4285 = vunpack.c.l.b16 %v3566
    %v4286 = vunpack.c.h.b16 %v3566
    %v4287 = vunpack.c.l.b16 %v3567
    %v4288 = vunpack.c.h.b16 %v3567
    %v4289 = vunpack.c.l.b16 %v3568
    %v4290 = vunpack.c.h.b16 %v3568
    %v4291 = vunpack.c.l.b16 %v3569
    %v4292 = vunpack.c.h.b16 %v3569
    %v4293 = vunpack.c.l.b16 %v3570
    %v4294 = vunpack.c.h.b16 %v3570
    %v4295 = vunpack.c.l.b16 %v3571
    %v4296 = vunpack.c.h.b16 %v3571
    %v4297 = vunpack.c.l.b16 %v3572
    %v4298 = vunpack.c.h.b16 %v3572
    %v4299 = vunpack.c.l.b16 %v3573
    %v4300 = vunpack.c.h.b16 %v3573
    %v4301 = vunpack.c.l.b16 %v3574
    %v4302 = vunpack.c.h.b16 %v3574
    %v4303 = vunpack.c.l.b16 %v3575
    %v4304 = vunpack.c.h.b16 %v3575
    %v4305 = vunpack.c.l.b16 %v3576
    %v4306 = vunpack.c.h.b16 %v3576
    %v4307 = vunpack.c.l.b16 %v3577
    %v4308 = vunpack.c.h.b16 %v3577
    %v4309 = vunpack.c.l.b16 %v3578
    %v4310 = vunpack.c.h.b16 %v3578
    %v4311 = vunpack.c.l.b16 %v3579
    %v4312 = vunpack.c.h.b16 %v3579
    %v4313 = vunpack.c.l.b16 %v3580
    %v4314 = vunpack.c.h.b16 %v3580
    %v4315 = vunpack.c.l.b16 %v3581
    %v4316 = vunpack.c.h.b16 %v3581
    %v4317 = vunpack.c.l.b16 %v3582
    %v4318 = vunpack.c.h.b16 %v3582
    %v4319 = vunpack.c.l.b16 %v3583
    %v4320 = vunpack.c.h.b16 %v3583
    %v4321 = vunpack.c.l.b16 %v3584
    %v4322 = vunpack.c.h.b16 %v3584
    %v4323 = vunpack.c.l.b16 %v3585
    %v4324 = vunpack.c.h.b16 %v3585
    %v4325 = vunpack.c.l.b16 %v3586
    %v4326 = vunpack.c.h.b16 %v3586
    %v4327 = vunpack.c.l.b16 %v3587
    %v4328 = vunpack.c.h.b16 %v3587
    %v4329 = vunpack.c.l.b16 %v3588
    %v4330 = vunpack.c.h.b16 %v3588
    %v4331 = vunpack.c.l.b16 %v3589
    %v4332 = vunpack.c.h.b16 %v3589
    %v4333 = vunpack.c.l.b16 %v3590
    %v4334 = vunpack.c.h.b16 %v3590
    %v4335 = vunpack.c.l.b16 %v3591
    %v4336 = vunpack.c.h.b16 %v3591
    %v4337 = vunpack.c.l.b16 %v3592
    %v4338 = vunpack.c.h.b16 %v3592
    %v4339 = vunpack.c.l.b16 %v3593
    %v4340 = vunpack.c.h.b16 %v3593
    %v4341 = vunpack.c.l.b16 %v3594
    %v4342 = vunpack.c.h.b16 %v3594
    %v4343 = vunpack.c.l.b16 %v3595
    %v4344 = vunpack.c.h.b16 %v3595
    %v4345 = vunpack.c.l.b16 %v3596
    %v4346 = vunpack.c.h.b16 %v3596
    %v4347 = vunpack.c.l.b16 %v3597
    %v4348 = vunpack.c.h.b16 %v3597
    %v4349 = vunpack.c.l.b16 %v3598
    %v4350 = vunpack.c.h.b16 %v3598
    %v4351 = vunpack.c.l.b16 %v3599
    %v4352 = vunpack.c.h.b16 %v3599
    %v4353 = vunpack.c.l.b16 %v3600
    %v4354 = vunpack.c.h.b16 %v3600
    %v4355 = vunpack.c.l.b16 %v3601
    %v4356 = vunpack.c.h.b16 %v3601
    %v4357 = vunpack.c.l.b16 %v3602
    %v4358 = vunpack.c.h.b16 %v3602
    %v4359 = vunpack.c.l.b16 %v3603
    %v4360 = vunpack.c.h.b16 %v3603
    %v4361 = vunpack.c.l.b16 %v3604
    %v4362 = vunpack.c.h.b16 %v3604
    %v4363 = vunpack.c.l.b16 %v3605
    %v4364 = vunpack.c.h.b16 %v3605
    %v4365 = vunpack.c.l.b16 %v3606
    %v4366 = vunpack.c.h.b16 %v3606
    %v4367 = vunpack.c.l.b16 %v3607
    %v4368 = vunpack.c.h.b16 %v3607
    %v4369 = vunpack.c.l.b16 %v3608
    %v4370 = vunpack.c.h.b16 %v3608
    %v4371 = vunpack.c.l.b16 %v3609
    %v4372 = vunpack.c.h.b16 %v3609
    %v4373 = vunpack.c.l.b16 %v3610
    %v4374 = vunpack.c.h.b16 %v3610
    %v4375 = vunpack.c.l.b16 %v3611
    %v4376 = vunpack.c.h.b16 %v3611
    %v4377 = vunpack.c.l.b16 %v3612
    %v4378 = vunpack.c.h.b16 %v3612
    %v4379 = vunpack.c.l.b16 %v3613
    %v4380 = vunpack.c.h.b16 %v3613
    %v4381 = vunpack.c.l.b16 %v3614
    %v4382 = vunpack.c.h.b16 %v3614
    %v4383 = vpack.c.b16 %v3875, %v3871
    %v4384 = vpack.c.b16 %v3876, %v3872
    %v4385 = vpack.c.b16 %v3877, %v3873
    %v4386 = vpack.c.b16 %v3878, %v3874
    %v4387 = vpack.c.b16 %v3883, %v3879
    %v4388 = vpack.c.b16 %v3884, %v3880
    %v4389 = vpack.c.b16 %v3885, %v3881
    %v4390 = vpack.c.b16 %v3886, %v3882
    %v4391 = vpack.c.b16 %v3891, %v3887
    %v4392 = vpack.c.b16 %v3892, %v3888
    %v4393 = vpack.c.b16 %v3893, %v3889
    %v4394 = vpack.c.b16 %v3894, %v3890
    %v4395 = vpack.c.b16 %v3899, %v3895
    %v4396 = vpack.c.b16 %v3900, %v3896
    %v4397 = vpack.c.b16 %v3901, %v3897
    %v4398 = vpack.c.b16 %v3902, %v3898
    %v4399 = vpack.c.b16 %v3907, %v3903
    %v4400 = vpack.c.b16 %v3908, %v3904
    %v4401 = vpack.c.b16 %v3909, %v3905
    %v4402 = vpack.c.b16 %v3910, %v3906
    %v4403 = vpack.c.b16 %v3915, %v3911
    %v4404 = vpack.c.b16 %v3916, %v3912
    %v4405 = vpack.c.b16 %v3917, %v3913
    %v4406 = vpack.c.b16 %v3918, %v3914
    %v4407 = vpack.c.b16 %v3923, %v3919
    %v4408 = vpack.c.b16 %v3924, %v3920
    %v4409 = vpack.c.b16 %v3925, %v3921
    %v4410 = vpack.c.b16 %v3926, %v3922
    %v4411 = vpack.c.b16 %v3931, %v3927
    %v4412 = vpack.c.b16 %v3932, %v3928
    %v4413 = vpack.c.b16 %v3933, %v3929
    %v4414 = vpack.c.b16 %v3934, %v3930
    %v4415 = vpack.c.b16 %v3939, %v3935
    %v4416 = vpack.c.b16 %v3940, %v3936
    %v4417 = vpack.c.b16 %v3941, %v3937
    %v4418 = vpack.c.b16 %v3942, %v3938
    %v4419 = vpack.c.b16 %v3947, %v3943
    %v4420 = vpack.c.b16 %v3948, %v3944
    %v4421 = vpack.c.b16 %v3949, %v3945
    %v4422 = vpack.c.b16 %v3950, %v3946
    %v4423 = vpack.c.b16 %v3955, %v3951
    %v4424 = vpack.c.b16 %v3956, %v3952
    %v4425 = vpack.c.b16 %v3957, %v3953
    %v4426 = vpack.c.b16 %v3958, %v3954
    %v4427 = vpack.c.b16 %v3963, %v3959
    %v4428 = vpack.c.b16 %v3964, %v3960
    %v4429 = vpack.c.b16 %v3965, %v3961
    %v4430 = vpack.c.b16 %v3966, %v3962
    %v4431 = vpack.c.b16 %v3971, %v3967
    %v4432 = vpack.c.b16 %v3972, %v3968
    %v4433 = vpack.c.b16 %v3973, %v3969
    %v4434 = vpack.c.b16 %v3974, %v3970
    %v4435 = vpack.c.b16 %v3979, %v3975
    %v4436 = vpack.c.b16 %v3980, %v3976
    %v4437 = vpack.c.b16 %v3981, %v3977
    %v4438 = vpack.c.b16 %v3982, %v3978
    %v4439 = vpack.c.b16 %v3987, %v3983
    %v4440 = vpack.c.b16 %v3988, %v3984
    %v4441 = vpack.c.b16 %v3989, %v3985
    %v4442 = vpack.c.b16 %v3990, %v3986
    %v4443 = vpack.c.b16 %v3995, %v3991
    %v4444 = vpack.c.b16 %v3996, %v3992
    %v4445 = vpack.c.b16 %v3997, %v3993
    %v4446 = vpack.c.b16 %v3998, %v3994
    %v4447 = vpack.c.b16 %v4003, %v3999
    %v4448 = vpack.c.b16 %v4004, %v4000
    %v4449 = vpack.c.b16 %v4005, %v4001
    %v4450 = vpack.c.b16 %v4006, %v4002
    %v4451 = vpack.c.b16 %v4011, %v4007
    %v4452 = vpack.c.b16 %v4012, %v4008
    %v4453 = vpack.c.b16 %v4013, %v4009
    %v4454 = vpack.c.b16 %v4014, %v4010
    %v4455 = vpack.c.b16 %v4019, %v4015
    %v4456 = vpack.c.b16 %v4020, %v4016
    %v4457 = vpack.c.b16 %v4021, %v4017
    %v4458 = vpack.c.b16 %v4022, %v4018
    %v4459 = vpack.c.b16 %v4027, %v4023
    %v4460 = vpack.c.b16 %v4028, %v4024
    %v4461 = vpack.c.b16 %v4029, %v4025
    %v4462 = vpack.c.b16 %v4030, %v4026
    %v4463 = vpack.c.b16 %v4035, %v4031
    %v4464 = vpack.c.b16 %v4036, %v4032
    %v4465 = vpack.c.b16 %v4037, %v4033
    %v4466 = vpack.c.b16 %v4038, %v4034
    %v4467 = vpack.c.b16 %v4043, %v4039
    %v4468 = vpack.c.b16 %v4044, %v4040
    %v4469 = vpack.c.b16 %v4045, %v4041
    %v4470 = vpack.c.b16 %v4046, %v4042
    %v4471 = vpack.c.b16 %v4051, %v4047
    %v4472 = vpack.c.b16 %v4052, %v4048
    %v4473 = vpack.c.b16 %v4053, %v4049
    %v4474 = vpack.c.b16 %v4054, %v4050
    %v4475 = vpack.c.b16 %v4059, %v4055
    %v4476 = vpack.c.b16 %v4060, %v4056
    %v4477 = vpack.c.b16 %v4061, %v4057
    %v4478 = vpack.c.b16 %v4062, %v4058
    %v4479 = vpack.c.b16 %v4067, %v4063
    %v4480 = vpack.c.b16 %v4068, %v4064
    %v4481 = vpack.c.b16 %v4069, %v4065
    %v4482 = vpack.c.b16 %v4070, %v4066
    %v4483 = vpack.c.b16 %v4075, %v4071
    %v4484 = vpack.c.b16 %v4076, %v4072
    %v4485 = vpack.c.b16 %v4077, %v4073
    %v4486 = vpack.c.b16 %v4078, %v4074
    %v4487 = vpack.c.b16 %v4083, %v4079
    %v4488 = vpack.c.b16 %v4084, %v4080
    %v4489 = vpack.c.b16 %v4085, %v4081
    %v4490 = vpack.c.b16 %v4086, %v4082
    %v4491 = vpack.c.b16 %v4091, %v4087
    %v4492 = vpack.c.b16 %v4092, %v4088
    %v4493 = vpack.c.b16 %v4093, %v4089
    %v4494 = vpack.c.b16 %v4094, %v4090
    %v4495 = vpack.c.b16 %v4099, %v4095
    %v4496 = vpack.c.b16 %v4100, %v4096
    %v4497 = vpack.c.b16 %v4101, %v4097
    %v4498 = vpack.c.b16 %v4102, %v4098
    %v4499 = vpack.c.b16 %v4107, %v4103
    %v4500 = vpack.c.b16 %v4108, %v4104
    %v4501 = vpack.c.b16 %v4109, %v4105
    %v4502 = vpack.c.b16 %v4110, %v4106
    %v4503 = vpack.c.b16 %v4115, %v4111
    %v4504 = vpack.c.b16 %v4116, %v4112
    %v4505 = vpack.c.b16 %v4117, %v4113
    %v4506 = vpack.c.b16 %v4118, %v4114
    %v4507 = vpack.c.b16 %v4123, %v4119
    %v4508 = vpack.c.b16 %v4124, %v4120
    %v4509 = vpack.c.b16 %v4125, %v4121
    %v4510 = vpack.c.b16 %v4126, %v4122
    %v4511 = vpack.c.b16 %v4131, %v4127
    %v4512 = vpack.c.b16 %v4132, %v4128
    %v4513 = vpack.c.b16 %v4133, %v4129
    %v4514 = vpack.c.b16 %v4134, %v4130
    %v4515 = vpack.c.b16 %v4139, %v4135
    %v4516 = vpack.c.b16 %v4140, %v4136
    %v4517 = vpack.c.b16 %v4141, %v4137
    %v4518 = vpack.c.b16 %v4142, %v4138
    %v4519 = vpack.c.b16 %v4147, %v4143
    %v4520 = vpack.c.b16 %v4148, %v4144
    %v4521 = vpack.c.b16 %v4149, %v4145
    %v4522 = vpack.c.b16 %v4150, %v4146
    %v4523 = vpack.c.b16 %v4155, %v4151
    %v4524 = vpack.c.b16 %v4156, %v4152
    %v4525 = vpack.c.b16 %v4157, %v4153
    %v4526 = vpack.c.b16 %v4158, %v4154
    %v4527 = vpack.c.b16 %v4163, %v4159
    %v4528 = vpack.c.b16 %v4164, %v4160
    %v4529 = vpack.c.b16 %v4165, %v4161
    %v4530 = vpack.c.b16 %v4166, %v4162
    %v4531 = vpack.c.b16 %v4171, %v4167
    %v4532 = vpack.c.b16 %v4172, %v4168
    %v4533 = vpack.c.b16 %v4173, %v4169
    %v4534 = vpack.c.b16 %v4174, %v4170
    %v4535 = vpack.c.b16 %v4179, %v4175
    %v4536 = vpack.c.b16 %v4180, %v4176
    %v4537 = vpack.c.b16 %v4181, %v4177
    %v4538 = vpack.c.b16 %v4182, %v4178
    %v4539 = vpack.c.b16 %v4187, %v4183
    %v4540 = vpack.c.b16 %v4188, %v4184
    %v4541 = vpack.c.b16 %v4189, %v4185
    %v4542 = vpack.c.b16 %v4190, %v4186
    %v4543 = vpack.c.b16 %v4195, %v4191
    %v4544 = vpack.c.b16 %v4196, %v4192
    %v4545 = vpack.c.b16 %v4197, %v4193
    %v4546 = vpack.c.b16 %v4198, %v4194
    %v4547 = vpack.c.b16 %v4203, %v4199
    %v4548 = vpack.c.b16 %v4204, %v4200
    %v4549 = vpack.c.b16 %v4205, %v4201
    %v4550 = vpack.c.b16 %v4206, %v4202
    %v4551 = vpack.c.b16 %v4211, %v4207
    %v4552 = vpack.c.b16 %v4212, %v4208
    %v4553 = vpack.c.b16 %v4213, %v4209
    %v4554 = vpack.c.b16 %v4214, %v4210
    %v4555 = vpack.c.b16 %v4219, %v4215
    %v4556 = vpack.c.b16 %v4220, %v4216
    %v4557 = vpack.c.b16 %v4221, %v4217
    %v4558 = vpack.c.b16 %v4222, %v4218
    %v4559 = vpack.c.b16 %v4227, %v4223
    %v4560 = vpack.c.b16 %v4228, %v4224
    %v4561 = vpack.c.b16 %v4229, %v4225
    %v4562 = vpack.c.b16 %v4230, %v4226
    %v4563 = vpack.c.b16 %v4235, %v4231
    %v4564 = vpack.c.b16 %v4236, %v4232
    %v4565 = vpack.c.b16 %v4237, %v4233
    %v4566 = vpack.c.b16 %v4238, %v4234
    %v4567 = vpack.c.b16 %v4243, %v4239
    %v4568 = vpack.c.b16 %v4244, %v4240
    %v4569 = vpack.c.b16 %v4245, %v4241
    %v4570 = vpack.c.b16 %v4246, %v4242
    %v4571 = vpack.c.b16 %v4251, %v4247
    %v4572 = vpack.c.b16 %v4252, %v4248
    %v4573 = vpack.c.b16 %v4253, %v4249
    %v4574 = vpack.c.b16 %v4254, %v4250
    %v4575 = vpack.c.b16 %v4259, %v4255
    %v4576 = vpack.c.b16 %v4260, %v4256
    %v4577 = vpack.c.b16 %v4261, %v4257
    %v4578 = vpack.c.b16 %v4262, %v4258
    %v4579 = vpack.c.b16 %v4267, %v4263
    %v4580 = vpack.c.b16 %v4268, %v4264
    %v4581 = vpack.c.b16 %v4269, %v4265
    %v4582 = vpack.c.b16 %v4270, %v4266
    %v4583 = vpack.c.b16 %v4275, %v4271
    %v4584 = vpack.c.b16 %v4276, %v4272
    %v4585 = vpack.c.b16 %v4277, %v4273
    %v4586 = vpack.c.b16 %v4278, %v4274
    %v4587 = vpack.c.b16 %v4283, %v4279
    %v4588 = vpack.c.b16 %v4284, %v4280
    %v4589 = vpack.c.b16 %v4285, %v4281
    %v4590 = vpack.c.b16 %v4286, %v4282
    %v4591 = vpack.c.b16 %v4291, %v4287
    %v4592 = vpack.c.b16 %v4292, %v4288
    %v4593 = vpack.c.b16 %v4293, %v4289
    %v4594 = vpack.c.b16 %v4294, %v4290
    %v4595 = vpack.c.b16 %v4299, %v4295
    %v4596 = vpack.c.b16 %v4300, %v4296
    %v4597 = vpack.c.b16 %v4301, %v4297
    %v4598 = vpack.c.b16 %v4302, %v4298
    %v4599 = vpack.c.b16 %v4307, %v4303
    %v4600 = vpack.c.b16 %v4308, %v4304
    %v4601 = vpack.c.b16 %v4309, %v4305
    %v4602 = vpack.c.b16 %v4310, %v4306
    %v4603 = vpack.c.b16 %v4315, %v4311
    %v4604 = vpack.c.b16 %v4316, %v4312
    %v4605 = vpack.c.b16 %v4317, %v4313
    %v4606 = vpack.c.b16 %v4318, %v4314
    %v4607 = vpack.c.b16 %v4323, %v4319
    %v4608 = vpack.c.b16 %v4324, %v4320
    %v4609 = vpack.c.b16 %v4325, %v4321
    %v4610 = vpack.c.b16 %v4326, %v4322
    %v4611 = vpack.c.b16 %v4331, %v4327
    %v4612 = vpack.c.b16 %v4332, %v4328
    %v4613 = vpack.c.b16 %v4333, %v4329
    %v4614 = vpack.c.b16 %v4334, %v4330
    %v4615 = vpack.c.b16 %v4339, %v4335
    %v4616 = vpack.c.b16 %v4340, %v4336
    %v4617 = vpack.c.b16 %v4341, %v4337
    %v4618 = vpack.c.b16 %v4342, %v4338
    %v4619 = vpack.c.b16 %v4347, %v4343
    %v4620 = vpack.c.b16 %v4348, %v4344
    %v4621 = vpack.c.b16 %v4349, %v4345
    %v4622 = vpack.c.b16 %v4350, %v4346
    %v4623 = vpack.c.b16 %v4355, %v4351
    %v4624 = vpack.c.b16 %v4356, %v4352
    %v4625 = vpack.c.b16 %v4357, %v4353
    %v4626 = vpack.c.b16 %v4358, %v4354
    %v4627 = vpack.c.b16 %v4363, %v4359
    %v4628 = vpack.c.b16 %v4364, %v4360
    %v4629 = vpack.c.b16 %v4365, %v4361
    %v4630 = vpack.c.b16 %v4366, %v4362
    %v4631 = vpack.c.b16 %v4371, %v4367
    %v4632 = vpack.c.b16 %v4372, %v4368
    %v4633 = vpack.c.b16 %v4373, %v4369
    %v4634 = vpack.c.b16 %v4374, %v4370
    %v4635 = vpack.c.b16 %v4379, %v4375
    %v4636 = vpack.c.b16 %v4380, %v4376
    %v4637 = vpack.c.b16 %v4381, %v4377
    %v4638 = vpack.c.b16 %v4382, %v4378
    %4895 = vmatpush.bf16.msra.mxu0 %v4411
    %4896 = vmatpush.bf16.msra.mxu0 %v4407
    %4897 = vmatpush.bf16.msra.mxu0 %v4403
    %4898 = vmatpush.bf16.msra.mxu0 %v4399
    %4899 = vmatpush.bf16.msra.mxu0 %v4395
    %4900 = vmatpush.bf16.msra.mxu0 %v4391
    %4901 = vmatpush.bf16.msra.mxu0 %v4387
    %4902 = vmatpush.bf16.msra.mxu0 %v4383
    %4903 = vmatmul.bf16.gmra.mxu0 %v3351
    %v4904 = vpop.f32.mrf.mxu0
    %v4905 = vadd.f32 0.0, %v4904
    %v4906 = vpop.f32.mrf.mxu0
    %4907 = vdwg.mxu0
    %4908 = vmatpush.bf16.msra.mxu0 %v4443
    %4909 = vmatpush.bf16.msra.mxu0 %v4439
    %4910 = vmatpush.bf16.msra.mxu0 %v4435
    %4911 = vmatpush.bf16.msra.mxu0 %v4431
    %4912 = vmatpush.bf16.msra.mxu0 %v4427
    %4913 = vmatpush.bf16.msra.mxu0 %v4423
    %4914 = vmatpush.bf16.msra.mxu0 %v4419
    %4915 = vmatpush.bf16.msra.mxu0 %v4415
    %4916 = vmatmul.bf16.gmra.mxu0 %v3352
    %v4917 = vpop.f32.mrf.mxu0
    %v4918 = vadd.f32 %v4905, %v4917
    %v4919 = vpop.f32.mrf.mxu0
    %4920 = vdwg.mxu0
    %4921 = vmatpush.bf16.msra.mxu0 %v4475
    %4922 = vmatpush.bf16.msra.mxu0 %v4471
    %4923 = vmatpush.bf16.msra.mxu0 %v4467
    %4924 = vmatpush.bf16.msra.mxu0 %v4463
    %4925 = vmatpush.bf16.msra.mxu0 %v4459
    %4926 = vmatpush.bf16.msra.mxu0 %v4455
    %4927 = vmatpush.bf16.msra.mxu0 %v4451
    %4928 = vmatpush.bf16.msra.mxu0 %v4447
    %4929 = vmatmul.bf16.gmra.mxu0 %v3353
    %v4930 = vpop.f32.mrf.mxu0
    %v4931 = vadd.f32 %v4918, %v4930
    %v4932 = vpop.f32.mrf.mxu0
    %4933 = vdwg.mxu0
    %4934 = vmatpush.bf16.msra.mxu0 %v4507
    %4935 = vmatpush.bf16.msra.mxu0 %v4503
    %4936 = vmatpush.bf16.msra.mxu0 %v4499
    %4937 = vmatpush.bf16.msra.mxu0 %v4495
    %4938 = vmatpush.bf16.msra.mxu0 %v4491
    %4939 = vmatpush.bf16.msra.mxu0 %v4487
    %4940 = vmatpush.bf16.msra.mxu0 %v4483
    %4941 = vmatpush.bf16.msra.mxu0 %v4479
    %4942 = vmatmul.bf16.gmra.mxu0 %v3354
    %v4943 = vpop.f32.mrf.mxu0
    %v4944 = vadd.f32 %v4931, %v4943
    %v4945 = vpop.f32.mrf.mxu0
    %4946 = vdwg.mxu0
    %4947 = vmatpush.bf16.msra.mxu0 %v4539
    %4948 = vmatpush.bf16.msra.mxu0 %v4535
    %4949 = vmatpush.bf16.msra.mxu0 %v4531
    %4950 = vmatpush.bf16.msra.mxu0 %v4527
    %4951 = vmatpush.bf16.msra.mxu0 %v4523
    %4952 = vmatpush.bf16.msra.mxu0 %v4519
    %4953 = vmatpush.bf16.msra.mxu0 %v4515
    %4954 = vmatpush.bf16.msra.mxu0 %v4511
    %4955 = vmatmul.bf16.gmra.mxu0 %v3355
    %v4956 = vpop.f32.mrf.mxu0
    %v4957 = vadd.f32 %v4944, %v4956
    %v4958 = vpop.f32.mrf.mxu0
    %4959 = vdwg.mxu0
    %4960 = vmatpush.bf16.msra.mxu0 %v4571
    %4961 = vmatpush.bf16.msra.mxu0 %v4567
    %4962 = vmatpush.bf16.msra.mxu0 %v4563
    %4963 = vmatpush.bf16.msra.mxu0 %v4559
    %4964 = vmatpush.bf16.msra.mxu0 %v4555
    %4965 = vmatpush.bf16.msra.mxu0 %v4551
    %4966 = vmatpush.bf16.msra.mxu0 %v4547
    %4967 = vmatpush.bf16.msra.mxu0 %v4543
    %4968 = vmatmul.bf16.gmra.mxu0 %v3356
    %v4969 = vpop.f32.mrf.mxu0
    %v4970 = vadd.f32 %v4957, %v4969
    %v4971 = vpop.f32.mrf.mxu0
    %4972 = vdwg.mxu0
    %4973 = vmatpush.bf16.msra.mxu0 %v4603
    %4974 = vmatpush.bf16.msra.mxu0 %v4599
    %4975 = vmatpush.bf16.msra.mxu0 %v4595
    %4976 = vmatpush.bf16.msra.mxu0 %v4591
    %4977 = vmatpush.bf16.msra.mxu0 %v4587
    %4978 = vmatpush.bf16.msra.mxu0 %v4583
    %4979 = vmatpush.bf16.msra.mxu0 %v4579
    %4980 = vmatpush.bf16.msra.mxu0 %v4575
    %4981 = vmatmul.bf16.gmra.mxu0 %v3357
    %v4982 = vpop.f32.mrf.mxu0
    %v4983 = vadd.f32 %v4970, %v4982
    %v4984 = vpop.f32.mrf.mxu0
    %4985 = vdwg.mxu0
    %4986 = vmatpush.bf16.msra.mxu0 %v4635
    %4987 = vmatpush.bf16.msra.mxu0 %v4631
    %4988 = vmatpush.bf16.msra.mxu0 %v4627
    %4989 = vmatpush.bf16.msra.mxu0 %v4623
    %4990 = vmatpush.bf16.msra.mxu0 %v4619
    %4991 = vmatpush.bf16.msra.mxu0 %v4615
    %4992 = vmatpush.bf16.msra.mxu0 %v4611
    %4993 = vmatpush.bf16.msra.mxu0 %v4607
    %4994 = vmatmul.bf16.gmra.mxu0 %v3358
    %v4995 = vpop.f32.mrf.mxu0
    %v4996 = vadd.f32 %v4983, %v4995
    %v4997 = vpop.f32.mrf.mxu0
    %4998 = vdwg.mxu0
    %4999 = vmatpush.bf16.msra.mxu0 %v4412
    %5000 = vmatpush.bf16.msra.mxu0 %v4408
    %5001 = vmatpush.bf16.msra.mxu0 %v4404
    %5002 = vmatpush.bf16.msra.mxu0 %v4400
    %5003 = vmatpush.bf16.msra.mxu0 %v4396
    %5004 = vmatpush.bf16.msra.mxu0 %v4392
    %5005 = vmatpush.bf16.msra.mxu0 %v4388
    %5006 = vmatpush.bf16.msra.mxu0 %v4384
    %5007 = vmatmul.bf16.gmra.mxu0 %v3351
    %v5008 = vpop.f32.mrf.mxu0
    %v5009 = vadd.f32 0.0, %v5008
    %v5010 = vpop.f32.mrf.mxu0
    %5011 = vdwg.mxu0
    %5012 = vmatpush.bf16.msra.mxu0 %v4444
    %5013 = vmatpush.bf16.msra.mxu0 %v4440
    %5014 = vmatpush.bf16.msra.mxu0 %v4436
    %5015 = vmatpush.bf16.msra.mxu0 %v4432
    %5016 = vmatpush.bf16.msra.mxu0 %v4428
    %5017 = vmatpush.bf16.msra.mxu0 %v4424
    %5018 = vmatpush.bf16.msra.mxu0 %v4420
    %5019 = vmatpush.bf16.msra.mxu0 %v4416
    %5020 = vmatmul.bf16.gmra.mxu0 %v3352
    %v5021 = vpop.f32.mrf.mxu0
    %v5022 = vadd.f32 %v5009, %v5021
    %v5023 = vpop.f32.mrf.mxu0
    %5024 = vdwg.mxu0
    %5025 = vmatpush.bf16.msra.mxu0 %v4476
    %5026 = vmatpush.bf16.msra.mxu0 %v4472
    %5027 = vmatpush.bf16.msra.mxu0 %v4468
    %5028 = vmatpush.bf16.msra.mxu0 %v4464
    %5029 = vmatpush.bf16.msra.mxu0 %v4460
    %5030 = vmatpush.bf16.msra.mxu0 %v4456
    %5031 = vmatpush.bf16.msra.mxu0 %v4452
    %5032 = vmatpush.bf16.msra.mxu0 %v4448
    %5033 = vmatmul.bf16.gmra.mxu0 %v3353
    %v5034 = vpop.f32.mrf.mxu0
    %v5035 = vadd.f32 %v5022, %v5034
    %v5036 = vpop.f32.mrf.mxu0
    %5037 = vdwg.mxu0
    %5038 = vmatpush.bf16.msra.mxu0 %v4508
    %5039 = vmatpush.bf16.msra.mxu0 %v4504
    %5040 = vmatpush.bf16.msra.mxu0 %v4500
    %5041 = vmatpush.bf16.msra.mxu0 %v4496
    %5042 = vmatpush.bf16.msra.mxu0 %v4492
    %5043 = vmatpush.bf16.msra.mxu0 %v4488
    %5044 = vmatpush.bf16.msra.mxu0 %v4484
    %5045 = vmatpush.bf16.msra.mxu0 %v4480
    %5046 = vmatmul.bf16.gmra.mxu0 %v3354
    %v5047 = vpop.f32.mrf.mxu0
    %v5048 = vadd.f32 %v5035, %v5047
    %v5049 = vpop.f32.mrf.mxu0
    %5050 = vdwg.mxu0
    %5051 = vmatpush.bf16.msra.mxu0 %v4540
    %5052 = vmatpush.bf16.msra.mxu0 %v4536
    %5053 = vmatpush.bf16.msra.mxu0 %v4532
    %5054 = vmatpush.bf16.msra.mxu0 %v4528
    %5055 = vmatpush.bf16.msra.mxu0 %v4524
    %5056 = vmatpush.bf16.msra.mxu0 %v4520
    %5057 = vmatpush.bf16.msra.mxu0 %v4516
    %5058 = vmatpush.bf16.msra.mxu0 %v4512
    %5059 = vmatmul.bf16.gmra.mxu0 %v3355
    %v5060 = vpop.f32.mrf.mxu0
    %v5061 = vadd.f32 %v5048, %v5060
    %v5062 = vpop.f32.mrf.mxu0
    %5063 = vdwg.mxu0
    %5064 = vmatpush.bf16.msra.mxu0 %v4572
    %5065 = vmatpush.bf16.msra.mxu0 %v4568
    %5066 = vmatpush.bf16.msra.mxu0 %v4564
    %5067 = vmatpush.bf16.msra.mxu0 %v4560
    %5068 = vmatpush.bf16.msra.mxu0 %v4556
    %5069 = vmatpush.bf16.msra.mxu0 %v4552
    %5070 = vmatpush.bf16.msra.mxu0 %v4548
    %5071 = vmatpush.bf16.msra.mxu0 %v4544
    %5072 = vmatmul.bf16.gmra.mxu0 %v3356
    %v5073 = vpop.f32.mrf.mxu0
    %v5074 = vadd.f32 %v5061, %v5073
    %v5075 = vpop.f32.mrf.mxu0
    %5076 = vdwg.mxu0
    %5077 = vmatpush.bf16.msra.mxu0 %v4604
    %5078 = vmatpush.bf16.msra.mxu0 %v4600
    %5079 = vmatpush.bf16.msra.mxu0 %v4596
    %5080 = vmatpush.bf16.msra.mxu0 %v4592
    %5081 = vmatpush.bf16.msra.mxu0 %v4588
    %5082 = vmatpush.bf16.msra.mxu0 %v4584
    %5083 = vmatpush.bf16.msra.mxu0 %v4580
    %5084 = vmatpush.bf16.msra.mxu0 %v4576
    %5085 = vmatmul.bf16.gmra.mxu0 %v3357
    %v5086 = vpop.f32.mrf.mxu0
    %v5087 = vadd.f32 %v5074, %v5086
    %v5088 = vpop.f32.mrf.mxu0
    %5089 = vdwg.mxu0
    %5090 = vmatpush.bf16.msra.mxu0 %v4636
    %5091 = vmatpush.bf16.msra.mxu0 %v4632
    %5092 = vmatpush.bf16.msra.mxu0 %v4628
    %5093 = vmatpush.bf16.msra.mxu0 %v4624
    %5094 = vmatpush.bf16.msra.mxu0 %v4620
    %5095 = vmatpush.bf16.msra.mxu0 %v4616
    %5096 = vmatpush.bf16.msra.mxu0 %v4612
    %5097 = vmatpush.bf16.msra.mxu0 %v4608
    %5098 = vmatmul.bf16.gmra.mxu0 %v3358
    %v5099 = vpop.f32.mrf.mxu0
    %v5100 = vadd.f32 %v5087, %v5099
    %v5101 = vpop.f32.mrf.mxu0
    %5102 = vdwg.mxu0
    %5103 = vmatpush.bf16.msra.mxu0 %v4413
    %5104 = vmatpush.bf16.msra.mxu0 %v4409
    %5105 = vmatpush.bf16.msra.mxu0 %v4405
    %5106 = vmatpush.bf16.msra.mxu0 %v4401
    %5107 = vmatpush.bf16.msra.mxu0 %v4397
    %5108 = vmatpush.bf16.msra.mxu0 %v4393
    %5109 = vmatpush.bf16.msra.mxu0 %v4389
    %5110 = vmatpush.bf16.msra.mxu0 %v4385
    %5111 = vmatmul.bf16.gmra.mxu0 %v3351
    %v5112 = vpop.f32.mrf.mxu0
    %v5113 = vadd.f32 0.0, %v5112
    %v5114 = vpop.f32.mrf.mxu0
    %5115 = vdwg.mxu0
    %5116 = vmatpush.bf16.msra.mxu0 %v4445
    %5117 = vmatpush.bf16.msra.mxu0 %v4441
    %5118 = vmatpush.bf16.msra.mxu0 %v4437
    %5119 = vmatpush.bf16.msra.mxu0 %v4433
    %5120 = vmatpush.bf16.msra.mxu0 %v4429
    %5121 = vmatpush.bf16.msra.mxu0 %v4425
    %5122 = vmatpush.bf16.msra.mxu0 %v4421
    %5123 = vmatpush.bf16.msra.mxu0 %v4417
    %5124 = vmatmul.bf16.gmra.mxu0 %v3352
    %v5125 = vpop.f32.mrf.mxu0
    %v5126 = vadd.f32 %v5113, %v5125
    %v5127 = vpop.f32.mrf.mxu0
    %5128 = vdwg.mxu0
    %5129 = vmatpush.bf16.msra.mxu0 %v4477
    %5130 = vmatpush.bf16.msra.mxu0 %v4473
    %5131 = vmatpush.bf16.msra.mxu0 %v4469
    %5132 = vmatpush.bf16.msra.mxu0 %v4465
    %5133 = vmatpush.bf16.msra.mxu0 %v4461
    %5134 = vmatpush.bf16.msra.mxu0 %v4457
    %5135 = vmatpush.bf16.msra.mxu0 %v4453
    %5136 = vmatpush.bf16.msra.mxu0 %v4449
    %5137 = vmatmul.bf16.gmra.mxu0 %v3353
    %v5138 = vpop.f32.mrf.mxu0
    %v5139 = vadd.f32 %v5126, %v5138
    %v5140 = vpop.f32.mrf.mxu0
    %5141 = vdwg.mxu0
    %5142 = vmatpush.bf16.msra.mxu0 %v4509
    %5143 = vmatpush.bf16.msra.mxu0 %v4505
    %5144 = vmatpush.bf16.msra.mxu0 %v4501
    %5145 = vmatpush.bf16.msra.mxu0 %v4497
    %5146 = vmatpush.bf16.msra.mxu0 %v4493
    %5147 = vmatpush.bf16.msra.mxu0 %v4489
    %5148 = vmatpush.bf16.msra.mxu0 %v4485
    %5149 = vmatpush.bf16.msra.mxu0 %v4481
    %5150 = vmatmul.bf16.gmra.mxu0 %v3354
    %v5151 = vpop.f32.mrf.mxu0
    %v5152 = vadd.f32 %v5139, %v5151
    %v5153 = vpop.f32.mrf.mxu0
    %5154 = vdwg.mxu0
    %5155 = vmatpush.bf16.msra.mxu0 %v4541
    %5156 = vmatpush.bf16.msra.mxu0 %v4537
    %5157 = vmatpush.bf16.msra.mxu0 %v4533
    %5158 = vmatpush.bf16.msra.mxu0 %v4529
    %5159 = vmatpush.bf16.msra.mxu0 %v4525
    %5160 = vmatpush.bf16.msra.mxu0 %v4521
    %5161 = vmatpush.bf16.msra.mxu0 %v4517
    %5162 = vmatpush.bf16.msra.mxu0 %v4513
    %5163 = vmatmul.bf16.gmra.mxu0 %v3355
    %v5164 = vpop.f32.mrf.mxu0
    %v5165 = vadd.f32 %v5152, %v5164
    %v5166 = vpop.f32.mrf.mxu0
    %5167 = vdwg.mxu0
    %5168 = vmatpush.bf16.msra.mxu0 %v4573
    %5169 = vmatpush.bf16.msra.mxu0 %v4569
    %5170 = vmatpush.bf16.msra.mxu0 %v4565
    %5171 = vmatpush.bf16.msra.mxu0 %v4561
    %5172 = vmatpush.bf16.msra.mxu0 %v4557
    %5173 = vmatpush.bf16.msra.mxu0 %v4553
    %5174 = vmatpush.bf16.msra.mxu0 %v4549
    %5175 = vmatpush.bf16.msra.mxu0 %v4545
    %5176 = vmatmul.bf16.gmra.mxu0 %v3356
    %v5177 = vpop.f32.mrf.mxu0
    %v5178 = vadd.f32 %v5165, %v5177
    %v5179 = vpop.f32.mrf.mxu0
    %5180 = vdwg.mxu0
    %5181 = vmatpush.bf16.msra.mxu0 %v4605
    %5182 = vmatpush.bf16.msra.mxu0 %v4601
    %5183 = vmatpush.bf16.msra.mxu0 %v4597
    %5184 = vmatpush.bf16.msra.mxu0 %v4593
    %5185 = vmatpush.bf16.msra.mxu0 %v4589
    %5186 = vmatpush.bf16.msra.mxu0 %v4585
    %5187 = vmatpush.bf16.msra.mxu0 %v4581
    %5188 = vmatpush.bf16.msra.mxu0 %v4577
    %5189 = vmatmul.bf16.gmra.mxu0 %v3357
    %v5190 = vpop.f32.mrf.mxu0
    %v5191 = vadd.f32 %v5178, %v5190
    %v5192 = vpop.f32.mrf.mxu0
    %5193 = vdwg.mxu0
    %5194 = vmatpush.bf16.msra.mxu0 %v4637
    %5195 = vmatpush.bf16.msra.mxu0 %v4633
    %5196 = vmatpush.bf16.msra.mxu0 %v4629
    %5197 = vmatpush.bf16.msra.mxu0 %v4625
    %5198 = vmatpush.bf16.msra.mxu0 %v4621
    %5199 = vmatpush.bf16.msra.mxu0 %v4617
    %5200 = vmatpush.bf16.msra.mxu0 %v4613
    %5201 = vmatpush.bf16.msra.mxu0 %v4609
    %5202 = vmatmul.bf16.gmra.mxu0 %v3358
    %v5203 = vpop.f32.mrf.mxu0
    %v5204 = vadd.f32 %v5191, %v5203
    %v5205 = vpop.f32.mrf.mxu0
    %5206 = vdwg.mxu0
    %5207 = vmatpush.bf16.msra.mxu0 %v4414
    %5208 = vmatpush.bf16.msra.mxu0 %v4410
    %5209 = vmatpush.bf16.msra.mxu0 %v4406
    %5210 = vmatpush.bf16.msra.mxu0 %v4402
    %5211 = vmatpush.bf16.msra.mxu0 %v4398
    %5212 = vmatpush.bf16.msra.mxu0 %v4394
    %5213 = vmatpush.bf16.msra.mxu0 %v4390
    %5214 = vmatpush.bf16.msra.mxu0 %v4386
    %5215 = vmatmul.bf16.gmra.mxu0 %v3351
    %v5216 = vpop.f32.mrf.mxu0
    %v5217 = vadd.f32 0.0, %v5216
    %v5218 = vpop.f32.mrf.mxu0
    %5219 = vdwg.mxu0
    %5220 = vmatpush.bf16.msra.mxu0 %v4446
    %5221 = vmatpush.bf16.msra.mxu0 %v4442
    %5222 = vmatpush.bf16.msra.mxu0 %v4438
    %5223 = vmatpush.bf16.msra.mxu0 %v4434
    %5224 = vmatpush.bf16.msra.mxu0 %v4430
    %5225 = vmatpush.bf16.msra.mxu0 %v4426
    %5226 = vmatpush.bf16.msra.mxu0 %v4422
    %5227 = vmatpush.bf16.msra.mxu0 %v4418
    %5228 = vmatmul.bf16.gmra.mxu0 %v3352
    %v5229 = vpop.f32.mrf.mxu0
    %v5230 = vadd.f32 %v5217, %v5229
    %v5231 = vpop.f32.mrf.mxu0
    %5232 = vdwg.mxu0
    %5233 = vmatpush.bf16.msra.mxu0 %v4478
    %5234 = vmatpush.bf16.msra.mxu0 %v4474
    %5235 = vmatpush.bf16.msra.mxu0 %v4470
    %5236 = vmatpush.bf16.msra.mxu0 %v4466
    %5237 = vmatpush.bf16.msra.mxu0 %v4462
    %5238 = vmatpush.bf16.msra.mxu0 %v4458
    %5239 = vmatpush.bf16.msra.mxu0 %v4454
    %5240 = vmatpush.bf16.msra.mxu0 %v4450
    %5241 = vmatmul.bf16.gmra.mxu0 %v3353
    %v5242 = vpop.f32.mrf.mxu0
    %v5243 = vadd.f32 %v5230, %v5242
    %v5244 = vpop.f32.mrf.mxu0
    %5245 = vdwg.mxu0
    %5246 = vmatpush.bf16.msra.mxu0 %v4510
    %5247 = vmatpush.bf16.msra.mxu0 %v4506
    %5248 = vmatpush.bf16.msra.mxu0 %v4502
    %5249 = vmatpush.bf16.msra.mxu0 %v4498
    %5250 = vmatpush.bf16.msra.mxu0 %v4494
    %5251 = vmatpush.bf16.msra.mxu0 %v4490
    %5252 = vmatpush.bf16.msra.mxu0 %v4486
    %5253 = vmatpush.bf16.msra.mxu0 %v4482
    %5254 = vmatmul.bf16.gmra.mxu0 %v3354
    %v5255 = vpop.f32.mrf.mxu0
    %v5256 = vadd.f32 %v5243, %v5255
    %v5257 = vpop.f32.mrf.mxu0
    %5258 = vdwg.mxu0
    %5259 = vmatpush.bf16.msra.mxu0 %v4542
    %5260 = vmatpush.bf16.msra.mxu0 %v4538
    %5261 = vmatpush.bf16.msra.mxu0 %v4534
    %5262 = vmatpush.bf16.msra.mxu0 %v4530
    %5263 = vmatpush.bf16.msra.mxu0 %v4526
    %5264 = vmatpush.bf16.msra.mxu0 %v4522
    %5265 = vmatpush.bf16.msra.mxu0 %v4518
    %5266 = vmatpush.bf16.msra.mxu0 %v4514
    %5267 = vmatmul.bf16.gmra.mxu0 %v3355
    %v5268 = vpop.f32.mrf.mxu0
    %v5269 = vadd.f32 %v5256, %v5268
    %v5270 = vpop.f32.mrf.mxu0
    %5271 = vdwg.mxu0
    %5272 = vmatpush.bf16.msra.mxu0 %v4574
    %5273 = vmatpush.bf16.msra.mxu0 %v4570
    %5274 = vmatpush.bf16.msra.mxu0 %v4566
    %5275 = vmatpush.bf16.msra.mxu0 %v4562
    %5276 = vmatpush.bf16.msra.mxu0 %v4558
    %5277 = vmatpush.bf16.msra.mxu0 %v4554
    %5278 = vmatpush.bf16.msra.mxu0 %v4550
    %5279 = vmatpush.bf16.msra.mxu0 %v4546
    %5280 = vmatmul.bf16.gmra.mxu0 %v3356
    %v5281 = vpop.f32.mrf.mxu0
    %v5282 = vadd.f32 %v5269, %v5281
    %v5283 = vpop.f32.mrf.mxu0
    %5284 = vdwg.mxu0
    %5285 = vmatpush.bf16.msra.mxu0 %v4606
    %5286 = vmatpush.bf16.msra.mxu0 %v4602
    %5287 = vmatpush.bf16.msra.mxu0 %v4598
    %5288 = vmatpush.bf16.msra.mxu0 %v4594
    %5289 = vmatpush.bf16.msra.mxu0 %v4590
    %5290 = vmatpush.bf16.msra.mxu0 %v4586
    %5291 = vmatpush.bf16.msra.mxu0 %v4582
    %5292 = vmatpush.bf16.msra.mxu0 %v4578
    %5293 = vmatmul.bf16.gmra.mxu0 %v3357
    %v5294 = vpop.f32.mrf.mxu0
    %v5295 = vadd.f32 %v5282, %v5294
    %v5296 = vpop.f32.mrf.mxu0
    %5297 = vdwg.mxu0
    %5298 = vmatpush.bf16.msra.mxu0 %v4638
    %5299 = vmatpush.bf16.msra.mxu0 %v4634
    %5300 = vmatpush.bf16.msra.mxu0 %v4630
    %5301 = vmatpush.bf16.msra.mxu0 %v4626
    %5302 = vmatpush.bf16.msra.mxu0 %v4622
    %5303 = vmatpush.bf16.msra.mxu0 %v4618
    %5304 = vmatpush.bf16.msra.mxu0 %v4614
    %5305 = vmatpush.bf16.msra.mxu0 %v4610
    %5306 = vmatmul.bf16.gmra.mxu0 %v3358
    %v5307 = vpop.f32.mrf.mxu0
    %v5308 = vadd.f32 %v5295, %v5307
    %v5309 = vpop.f32.mrf.mxu0
    %5310 = vdwg.mxu0
    %v5311 = vpack.c.bf16 %v5100, %v4996
    %v5312 = vpack.c.bf16 %v5308, %v5204
    %v5313 = vld [vmem:[#allocation10] sm:$0xf]
    %5315 = vst [vmem:[#allocation1] ss:$9 sm:$0xff] %v5313
    %v5316 = vld [vmem:[#allocation1] sm:$0xff]
    %v5317 = vld [vmem:[#allocation1 + $0x9] sm:$0xff]
    %v5318 = vld [vmem:[#allocation1 + $0x12] sm:$0xff]
    %v5319 = vld [vmem:[#allocation1 + $0x1b] sm:$0xff]
    %v5320 = vpack.i.b16 %v5316, %v5316
    %v5322 = vperm.slane %v5320, 0
    %v5323 = vpack.i.b16 %v5317, %v5317
    %v5325 = vperm.slane %v5323, 0
    %v5326 = vpack.i.b16 %v5318, %v5318
    %v5328 = vperm.slane %v5326, 0
    %v5329 = vpack.i.b16 %v5319, %v5319
    %v5331 = vperm.slane %v5329, 0
    %v5332 = vunpack.c.l.bf16 %v5311
    %v5333 = vunpack.c.h.bf16 %v5311
    %v5334 = vunpack.c.l.bf16 %v5312
    %v5335 = vunpack.c.h.bf16 %v5312
    %v5336 = vunpack.c.l.bf16 %v5322
    %v5337 = vunpack.c.l.bf16 %v5325
    %v5338 = vunpack.c.l.bf16 %v5328
    %v5339 = vunpack.c.l.bf16 %v5331
    %v5340 = vadd.f32 %v5332, %v5336
    %v5341 = vadd.f32 %v5333, %v5337
    %v5342 = vadd.f32 %v5334, %v5338
    %v5343 = vadd.f32 %v5335, %v5339
    %v5344 = vpack.c.bf16 %v5341, %v5340
    %v5345 = vpack.c.bf16 %v5343, %v5342
    %v5346 = vunpack.c.l.bf16 %v5344
    %v5347 = vunpack.c.h.bf16 %v5344
    %v5348 = vunpack.c.l.bf16 %v5345
    %v5349 = vunpack.c.h.bf16 %v5345
    %v5350 = vmul.f32 %v5346, 0.20019531
    %v5351 = vmul.f32 %v5347, 0.20019531
    %v5352 = vmul.f32 %v5348, 0.20019531
    %v5353 = vmul.f32 %v5349, 0.20019531
    %v5354 = vpack.c.bf16 %v5351, %v5350
    %v5355 = vpack.c.bf16 %v5353, %v5352
    %v5356 = vunpack.c.l.bf16 %v5354
    %v5357 = vunpack.c.h.bf16 %v5354
    %v5358 = vunpack.c.l.bf16 %v5355
    %v5359 = vunpack.c.h.bf16 %v5355
    %v5360 = vmax.f32 %v5346, %v5356
    %v5361 = vmax.f32 %v5347, %v5357
    %v5362 = vmax.f32 %v5348, %v5358
    %v5363 = vmax.f32 %v5349, %v5359
    %v5364 = vpack.c.bf16 %v5360, %v5360
    %v5365 = vpack.c.bf16 %v5361, %v5361
    %v5366 = vpack.c.bf16 %v5362, %v5362
    %v5367 = vpack.c.bf16 %v5363, %v5363
    %v5368 = vld [vmem:[#allocation11] sm:$0xff]
    %v5369 = vld [vmem:[#allocation11 + $0x8] sm:$0xff]
    %v5370 = vld [vmem:[#allocation11 + $0x10] sm:$0xff]
    %v5371 = vld [vmem:[#allocation11 + $0x18] sm:$0xff]
    %v5372 = vld [vmem:[#allocation11 + $0x20] sm:$0xff]
    %v5373 = vld [vmem:[#allocation11 + $0x28] sm:$0xff]
    %v5374 = vld [vmem:[#allocation11 + $0x30] sm:$0xff]
    %v5375 = vld [vmem:[#allocation11 + $0x38] sm:$0xff]
    %v5376 = vld [vmem:[#allocation11 + $0x40] sm:$0xff]
    %v5377 = vld [vmem:[#allocation11 + $0x48] sm:$0xff]
    %v5378 = vld [vmem:[#allocation11 + $0x50] sm:$0xff]
    %v5379 = vld [vmem:[#allocation11 + $0x58] sm:$0xff]
    %v5380 = vld [vmem:[#allocation11 + $0x60] sm:$0xff]
    %v5381 = vld [vmem:[#allocation11 + $0x68] sm:$0xff]
    %v5382 = vld [vmem:[#allocation11 + $0x70] sm:$0xff]
    %v5383 = vld [vmem:[#allocation11 + $0x78] sm:$0xff]
    %v5384 = vld [vmem:[#allocation11 + $0x80] sm:$0xff]
    %v5385 = vld [vmem:[#allocation11 + $0x88] sm:$0xff]
    %v5386 = vld [vmem:[#allocation11 + $0x90] sm:$0xff]
    %v5387 = vld [vmem:[#allocation11 + $0x98] sm:$0xff]
    %v5388 = vld [vmem:[#allocation11 + $0xa0] sm:$0xff]
    %v5389 = vld [vmem:[#allocation11 + $0xa8] sm:$0xff]
    %v5390 = vld [vmem:[#allocation11 + $0xb0] sm:$0xff]
    %v5391 = vld [vmem:[#allocation11 + $0xb8] sm:$0xff]
    %v5392 = vld [vmem:[#allocation11 + $0xc0] sm:$0xff]
    %v5393 = vld [vmem:[#allocation11 + $0xc8] sm:$0xff]
    %v5394 = vld [vmem:[#allocation11 + $0xd0] sm:$0xff]
    %v5395 = vld [vmem:[#allocation11 + $0xd8] sm:$0xff]
    %v5396 = vld [vmem:[#allocation11 + $0xe0] sm:$0xff]
    %v5397 = vld [vmem:[#allocation11 + $0xe8] sm:$0xff]
    %v5398 = vld [vmem:[#allocation11 + $0xf0] sm:$0xff]
    %v5399 = vld [vmem:[#allocation11 + $0xf8] sm:$0xff]
    %v5400 = vld [vmem:[#allocation11 + $0x100] sm:$0xff]
    %v5401 = vld [vmem:[#allocation11 + $0x108] sm:$0xff]
    %v5402 = vld [vmem:[#allocation11 + $0x110] sm:$0xff]
    %v5403 = vld [vmem:[#allocation11 + $0x118] sm:$0xff]
    %v5404 = vld [vmem:[#allocation11 + $0x120] sm:$0xff]
    %v5405 = vld [vmem:[#allocation11 + $0x128] sm:$0xff]
    %v5406 = vld [vmem:[#allocation11 + $0x130] sm:$0xff]
    %v5407 = vld [vmem:[#allocation11 + $0x138] sm:$0xff]
    %v5408 = vld [vmem:[#allocation11 + $0x140] sm:$0xff]
    %v5409 = vld [vmem:[#allocation11 + $0x148] sm:$0xff]
    %v5410 = vld [vmem:[#allocation11 + $0x150] sm:$0xff]
    %v5411 = vld [vmem:[#allocation11 + $0x158] sm:$0xff]
    %v5412 = vld [vmem:[#allocation11 + $0x160] sm:$0xff]
    %v5413 = vld [vmem:[#allocation11 + $0x168] sm:$0xff]
    %v5414 = vld [vmem:[#allocation11 + $0x170] sm:$0xff]
    %v5415 = vld [vmem:[#allocation11 + $0x178] sm:$0xff]
    %v5416 = vld [vmem:[#allocation11 + $0x180] sm:$0xff]
    %v5417 = vld [vmem:[#allocation11 + $0x188] sm:$0xff]
    %v5418 = vld [vmem:[#allocation11 + $0x190] sm:$0xff]
    %v5419 = vld [vmem:[#allocation11 + $0x198] sm:$0xff]
    %v5420 = vld [vmem:[#allocation11 + $0x1a0] sm:$0xff]
    %v5421 = vld [vmem:[#allocation11 + $0x1a8] sm:$0xff]
    %v5422 = vld [vmem:[#allocation11 + $0x1b0] sm:$0xff]
    %v5423 = vld [vmem:[#allocation11 + $0x1b8] sm:$0xff]
    %v5424 = vld [vmem:[#allocation11 + $0x1c0] sm:$0xff]
    %v5425 = vld [vmem:[#allocation11 + $0x1c8] sm:$0xff]
    %v5426 = vld [vmem:[#allocation11 + $0x1d0] sm:$0xff]
    %v5427 = vld [vmem:[#allocation11 + $0x1d8] sm:$0xff]
    %v5428 = vld [vmem:[#allocation11 + $0x1e0] sm:$0xff]
    %v5429 = vld [vmem:[#allocation11 + $0x1e8] sm:$0xff]
    %v5430 = vld [vmem:[#allocation11 + $0x1f0] sm:$0xff]
    %v5431 = vld [vmem:[#allocation11 + $0x1f8] sm:$0xff]
    %v5496 = vunpack.c.l.b16 %v5368
    %v5497 = vunpack.c.h.b16 %v5368
    %v5498 = vunpack.c.l.b16 %v5369
    %v5499 = vunpack.c.h.b16 %v5369
    %v5500 = vunpack.c.l.b16 %v5370
    %v5501 = vunpack.c.h.b16 %v5370
    %v5502 = vunpack.c.l.b16 %v5371
    %v5503 = vunpack.c.h.b16 %v5371
    %v5504 = vunpack.c.l.b16 %v5372
    %v5505 = vunpack.c.h.b16 %v5372
    %v5506 = vunpack.c.l.b16 %v5373
    %v5507 = vunpack.c.h.b16 %v5373
    %v5508 = vunpack.c.l.b16 %v5374
    %v5509 = vunpack.c.h.b16 %v5374
    %v5510 = vunpack.c.l.b16 %v5375
    %v5511 = vunpack.c.h.b16 %v5375
    %v5512 = vunpack.c.l.b16 %v5376
    %v5513 = vunpack.c.h.b16 %v5376
    %v5514 = vunpack.c.l.b16 %v5377
    %v5515 = vunpack.c.h.b16 %v5377
    %v5516 = vunpack.c.l.b16 %v5378
    %v5517 = vunpack.c.h.b16 %v5378
    %v5518 = vunpack.c.l.b16 %v5379
    %v5519 = vunpack.c.h.b16 %v5379
    %v5520 = vunpack.c.l.b16 %v5380
    %v5521 = vunpack.c.h.b16 %v5380
    %v5522 = vunpack.c.l.b16 %v5381
    %v5523 = vunpack.c.h.b16 %v5381
    %v5524 = vunpack.c.l.b16 %v5382
    %v5525 = vunpack.c.h.b16 %v5382
    %v5526 = vunpack.c.l.b16 %v5383
    %v5527 = vunpack.c.h.b16 %v5383
    %v5528 = vunpack.c.l.b16 %v5384
    %v5529 = vunpack.c.h.b16 %v5384
    %v5530 = vunpack.c.l.b16 %v5385
    %v5531 = vunpack.c.h.b16 %v5385
    %v5532 = vunpack.c.l.b16 %v5386
    %v5533 = vunpack.c.h.b16 %v5386
    %v5534 = vunpack.c.l.b16 %v5387
    %v5535 = vunpack.c.h.b16 %v5387
    %v5536 = vunpack.c.l.b16 %v5388
    %v5537 = vunpack.c.h.b16 %v5388
    %v5538 = vunpack.c.l.b16 %v5389
    %v5539 = vunpack.c.h.b16 %v5389
    %v5540 = vunpack.c.l.b16 %v5390
    %v5541 = vunpack.c.h.b16 %v5390
    %v5542 = vunpack.c.l.b16 %v5391
    %v5543 = vunpack.c.h.b16 %v5391
    %v5544 = vunpack.c.l.b16 %v5392
    %v5545 = vunpack.c.h.b16 %v5392
    %v5546 = vunpack.c.l.b16 %v5393
    %v5547 = vunpack.c.h.b16 %v5393
    %v5548 = vunpack.c.l.b16 %v5394
    %v5549 = vunpack.c.h.b16 %v5394
    %v5550 = vunpack.c.l.b16 %v5395
    %v5551 = vunpack.c.h.b16 %v5395
    %v5552 = vunpack.c.l.b16 %v5396
    %v5553 = vunpack.c.h.b16 %v5396
    %v5554 = vunpack.c.l.b16 %v5397
    %v5555 = vunpack.c.h.b16 %v5397
    %v5556 = vunpack.c.l.b16 %v5398
    %v5557 = vunpack.c.h.b16 %v5398
    %v5558 = vunpack.c.l.b16 %v5399
    %v5559 = vunpack.c.h.b16 %v5399
    %v5560 = vunpack.c.l.b16 %v5400
    %v5561 = vunpack.c.h.b16 %v5400
    %v5562 = vunpack.c.l.b16 %v5401
    %v5563 = vunpack.c.h.b16 %v5401
    %v5564 = vunpack.c.l.b16 %v5402
    %v5565 = vunpack.c.h.b16 %v5402
    %v5566 = vunpack.c.l.b16 %v5403
    %v5567 = vunpack.c.h.b16 %v5403
    %v5568 = vunpack.c.l.b16 %v5404
    %v5569 = vunpack.c.h.b16 %v5404
    %v5570 = vunpack.c.l.b16 %v5405
    %v5571 = vunpack.c.h.b16 %v5405
    %v5572 = vunpack.c.l.b16 %v5406
    %v5573 = vunpack.c.h.b16 %v5406
    %v5574 = vunpack.c.l.b16 %v5407
    %v5575 = vunpack.c.h.b16 %v5407
    %v5576 = vunpack.c.l.b16 %v5408
    %v5577 = vunpack.c.h.b16 %v5408
    %v5578 = vunpack.c.l.b16 %v5409
    %v5579 = vunpack.c.h.b16 %v5409
    %v5580 = vunpack.c.l.b16 %v5410
    %v5581 = vunpack.c.h.b16 %v5410
    %v5582 = vunpack.c.l.b16 %v5411
    %v5583 = vunpack.c.h.b16 %v5411
    %v5584 = vunpack.c.l.b16 %v5412
    %v5585 = vunpack.c.h.b16 %v5412
    %v5586 = vunpack.c.l.b16 %v5413
    %v5587 = vunpack.c.h.b16 %v5413
    %v5588 = vunpack.c.l.b16 %v5414
    %v5589 = vunpack.c.h.b16 %v5414
    %v5590 = vunpack.c.l.b16 %v5415
    %v5591 = vunpack.c.h.b16 %v5415
    %v5592 = vunpack.c.l.b16 %v5416
    %v5593 = vunpack.c.h.b16 %v5416
    %v5594 = vunpack.c.l.b16 %v5417
    %v5595 = vunpack.c.h.b16 %v5417
    %v5596 = vunpack.c.l.b16 %v5418
    %v5597 = vunpack.c.h.b16 %v5418
    %v5598 = vunpack.c.l.b16 %v5419
    %v5599 = vunpack.c.h.b16 %v5419
    %v5600 = vunpack.c.l.b16 %v5420
    %v5601 = vunpack.c.h.b16 %v5420
    %v5602 = vunpack.c.l.b16 %v5421
    %v5603 = vunpack.c.h.b16 %v5421
    %v5604 = vunpack.c.l.b16 %v5422
    %v5605 = vunpack.c.h.b16 %v5422
    %v5606 = vunpack.c.l.b16 %v5423
    %v5607 = vunpack.c.h.b16 %v5423
    %v5608 = vunpack.c.l.b16 %v5424
    %v5609 = vunpack.c.h.b16 %v5424
    %v5610 = vunpack.c.l.b16 %v5425
    %v5611 = vunpack.c.h.b16 %v5425
    %v5612 = vunpack.c.l.b16 %v5426
    %v5613 = vunpack.c.h.b16 %v5426
    %v5614 = vunpack.c.l.b16 %v5427
    %v5615 = vunpack.c.h.b16 %v5427
    %v5616 = vunpack.c.l.b16 %v5428
    %v5617 = vunpack.c.h.b16 %v5428
    %v5618 = vunpack.c.l.b16 %v5429
    %v5619 = vunpack.c.h.b16 %v5429
    %v5620 = vunpack.c.l.b16 %v5430
    %v5621 = vunpack.c.h.b16 %v5430
    %v5622 = vunpack.c.l.b16 %v5431
    %v5623 = vunpack.c.h.b16 %v5431
    %v5624 = vpack.c.b16 %v5498, %v5496
    %v5625 = vpack.c.b16 %v5499, %v5497
    %v5626 = vpack.c.b16 %v5502, %v5500
    %v5627 = vpack.c.b16 %v5503, %v5501
    %v5628 = vpack.c.b16 %v5506, %v5504
    %v5629 = vpack.c.b16 %v5507, %v5505
    %v5630 = vpack.c.b16 %v5510, %v5508
    %v5631 = vpack.c.b16 %v5511, %v5509
    %v5632 = vpack.c.b16 %v5514, %v5512
    %v5633 = vpack.c.b16 %v5515, %v5513
    %v5634 = vpack.c.b16 %v5518, %v5516
    %v5635 = vpack.c.b16 %v5519, %v5517
    %v5636 = vpack.c.b16 %v5522, %v5520
    %v5637 = vpack.c.b16 %v5523, %v5521
    %v5638 = vpack.c.b16 %v5526, %v5524
    %v5639 = vpack.c.b16 %v5527, %v5525
    %v5640 = vpack.c.b16 %v5530, %v5528
    %v5641 = vpack.c.b16 %v5531, %v5529
    %v5642 = vpack.c.b16 %v5534, %v5532
    %v5643 = vpack.c.b16 %v5535, %v5533
    %v5644 = vpack.c.b16 %v5538, %v5536
    %v5645 = vpack.c.b16 %v5539, %v5537
    %v5646 = vpack.c.b16 %v5542, %v5540
    %v5647 = vpack.c.b16 %v5543, %v5541
    %v5648 = vpack.c.b16 %v5546, %v5544
    %v5649 = vpack.c.b16 %v5547, %v5545
    %v5650 = vpack.c.b16 %v5550, %v5548
    %v5651 = vpack.c.b16 %v5551, %v5549
    %v5652 = vpack.c.b16 %v5554, %v5552
    %v5653 = vpack.c.b16 %v5555, %v5553
    %v5654 = vpack.c.b16 %v5558, %v5556
    %v5655 = vpack.c.b16 %v5559, %v5557
    %v5656 = vpack.c.b16 %v5562, %v5560
    %v5657 = vpack.c.b16 %v5563, %v5561
    %v5658 = vpack.c.b16 %v5566, %v5564
    %v5659 = vpack.c.b16 %v5567, %v5565
    %v5660 = vpack.c.b16 %v5570, %v5568
    %v5661 = vpack.c.b16 %v5571, %v5569
    %v5662 = vpack.c.b16 %v5574, %v5572
    %v5663 = vpack.c.b16 %v5575, %v5573
    %v5664 = vpack.c.b16 %v5578, %v5576
    %v5665 = vpack.c.b16 %v5579, %v5577
    %v5666 = vpack.c.b16 %v5582, %v5580
    %v5667 = vpack.c.b16 %v5583, %v5581
    %v5668 = vpack.c.b16 %v5586, %v5584
    %v5669 = vpack.c.b16 %v5587, %v5585
    %v5670 = vpack.c.b16 %v5590, %v5588
    %v5671 = vpack.c.b16 %v5591, %v5589
    %v5672 = vpack.c.b16 %v5594, %v5592
    %v5673 = vpack.c.b16 %v5595, %v5593
    %v5674 = vpack.c.b16 %v5598, %v5596
    %v5675 = vpack.c.b16 %v5599, %v5597
    %v5676 = vpack.c.b16 %v5602, %v5600
    %v5677 = vpack.c.b16 %v5603, %v5601
    %v5678 = vpack.c.b16 %v5606, %v5604
    %v5679 = vpack.c.b16 %v5607, %v5605
    %v5680 = vpack.c.b16 %v5610, %v5608
    %v5681 = vpack.c.b16 %v5611, %v5609
    %v5682 = vpack.c.b16 %v5614, %v5612
    %v5683 = vpack.c.b16 %v5615, %v5613
    %v5684 = vpack.c.b16 %v5618, %v5616
    %v5685 = vpack.c.b16 %v5619, %v5617
    %v5686 = vpack.c.b16 %v5622, %v5620
    %v5687 = vpack.c.b16 %v5623, %v5621
    %5752 = vmatpush.bf16.msra.mxu0 %v5638
    %5753 = vmatpush.bf16.msra.mxu0 %v5636
    %5754 = vmatpush.bf16.msra.mxu0 %v5634
    %5755 = vmatpush.bf16.msra.mxu0 %v5632
    %5756 = vmatpush.bf16.msra.mxu0 %v5630
    %5757 = vmatpush.bf16.msra.mxu0 %v5628
    %5758 = vmatpush.bf16.msra.mxu0 %v5626
    %5759 = vmatpush.bf16.msra.mxu0 %v5624
    %5760 = vmatmul.bf16.gmra.mxu0 %v5364
    %v5761 = vpop.f32.mrf.mxu0
    %v5762 = vadd.f32 0.0, %v5761
    %v5763 = vpop.f32.mrf.mxu0
    %5764 = vdwg.mxu0
    %5765 = vmatpush.bf16.msra.mxu0 %v5654
    %5766 = vmatpush.bf16.msra.mxu0 %v5652
    %5767 = vmatpush.bf16.msra.mxu0 %v5650
    %5768 = vmatpush.bf16.msra.mxu0 %v5648
    %5769 = vmatpush.bf16.msra.mxu0 %v5646
    %5770 = vmatpush.bf16.msra.mxu0 %v5644
    %5771 = vmatpush.bf16.msra.mxu0 %v5642
    %5772 = vmatpush.bf16.msra.mxu0 %v5640
    %5773 = vmatmul.bf16.gmra.mxu0 %v5365
    %v5774 = vpop.f32.mrf.mxu0
    %v5775 = vadd.f32 %v5762, %v5774
    %v5776 = vpop.f32.mrf.mxu0
    %5777 = vdwg.mxu0
    %5778 = vmatpush.bf16.msra.mxu0 %v5670
    %5779 = vmatpush.bf16.msra.mxu0 %v5668
    %5780 = vmatpush.bf16.msra.mxu0 %v5666
    %5781 = vmatpush.bf16.msra.mxu0 %v5664
    %5782 = vmatpush.bf16.msra.mxu0 %v5662
    %5783 = vmatpush.bf16.msra.mxu0 %v5660
    %5784 = vmatpush.bf16.msra.mxu0 %v5658
    %5785 = vmatpush.bf16.msra.mxu0 %v5656
    %5786 = vmatmul.bf16.gmra.mxu0 %v5366
    %v5787 = vpop.f32.mrf.mxu0
    %v5788 = vadd.f32 %v5775, %v5787
    %v5789 = vpop.f32.mrf.mxu0
    %5790 = vdwg.mxu0
    %5791 = vmatpush.bf16.msra.mxu0 %v5686
    %5792 = vmatpush.bf16.msra.mxu0 %v5684
    %5793 = vmatpush.bf16.msra.mxu0 %v5682
    %5794 = vmatpush.bf16.msra.mxu0 %v5680
    %5795 = vmatpush.bf16.msra.mxu0 %v5678
    %5796 = vmatpush.bf16.msra.mxu0 %v5676
    %5797 = vmatpush.bf16.msra.mxu0 %v5674
    %5798 = vmatpush.bf16.msra.mxu0 %v5672
    %5799 = vmatmul.bf16.gmra.mxu0 %v5367
    %v5800 = vpop.f32.mrf.mxu0
    %v5801 = vadd.f32 %v5788, %v5800
    %v5802 = vpop.f32.mrf.mxu0
    %5803 = vdwg.mxu0
    %5804 = vmatpush.bf16.msra.mxu0 %v5639
    %5805 = vmatpush.bf16.msra.mxu0 %v5637
    %5806 = vmatpush.bf16.msra.mxu0 %v5635
    %5807 = vmatpush.bf16.msra.mxu0 %v5633
    %5808 = vmatpush.bf16.msra.mxu0 %v5631
    %5809 = vmatpush.bf16.msra.mxu0 %v5629
    %5810 = vmatpush.bf16.msra.mxu0 %v5627
    %5811 = vmatpush.bf16.msra.mxu0 %v5625
    %5812 = vmatmul.bf16.gmra.mxu0 %v5364
    %v5813 = vpop.f32.mrf.mxu0
    %v5814 = vadd.f32 0.0, %v5813
    %v5815 = vpop.f32.mrf.mxu0
    %5816 = vdwg.mxu0
    %5817 = vmatpush.bf16.msra.mxu0 %v5655
    %5818 = vmatpush.bf16.msra.mxu0 %v5653
    %5819 = vmatpush.bf16.msra.mxu0 %v5651
    %5820 = vmatpush.bf16.msra.mxu0 %v5649
    %5821 = vmatpush.bf16.msra.mxu0 %v5647
    %5822 = vmatpush.bf16.msra.mxu0 %v5645
    %5823 = vmatpush.bf16.msra.mxu0 %v5643
    %5824 = vmatpush.bf16.msra.mxu0 %v5641
    %5825 = vmatmul.bf16.gmra.mxu0 %v5365
    %v5826 = vpop.f32.mrf.mxu0
    %v5827 = vadd.f32 %v5814, %v5826
    %v5828 = vpop.f32.mrf.mxu0
    %5829 = vdwg.mxu0
    %5830 = vmatpush.bf16.msra.mxu0 %v5671
    %5831 = vmatpush.bf16.msra.mxu0 %v5669
    %5832 = vmatpush.bf16.msra.mxu0 %v5667
    %5833 = vmatpush.bf16.msra.mxu0 %v5665
    %5834 = vmatpush.bf16.msra.mxu0 %v5663
    %5835 = vmatpush.bf16.msra.mxu0 %v5661
    %5836 = vmatpush.bf16.msra.mxu0 %v5659
    %5837 = vmatpush.bf16.msra.mxu0 %v5657
    %5838 = vmatmul.bf16.gmra.mxu0 %v5366
    %v5839 = vpop.f32.mrf.mxu0
    %v5840 = vadd.f32 %v5827, %v5839
    %v5841 = vpop.f32.mrf.mxu0
    %5842 = vdwg.mxu0
    %5843 = vmatpush.bf16.msra.mxu0 %v5687
    %5844 = vmatpush.bf16.msra.mxu0 %v5685
    %5845 = vmatpush.bf16.msra.mxu0 %v5683
    %5846 = vmatpush.bf16.msra.mxu0 %v5681
    %5847 = vmatpush.bf16.msra.mxu0 %v5679
    %5848 = vmatpush.bf16.msra.mxu0 %v5677
    %5849 = vmatpush.bf16.msra.mxu0 %v5675
    %5850 = vmatpush.bf16.msra.mxu0 %v5673
    %5851 = vmatmul.bf16.gmra.mxu0 %v5367
    %v5852 = vpop.f32.mrf.mxu0
    %v5853 = vadd.f32 %v5840, %v5852
    %v5854 = vpop.f32.mrf.mxu0
    %5855 = vdwg.mxu0
    %v5856 = vpack.c.bf16 %v5853, %v5801
    %v5857 = vld [vmem:[#allocation13] sm:$0x3]
    %5859 = vst [vmem:[#allocation1] ss:$9 sm:$0xff] %v5857
    %v5860 = vld [vmem:[#allocation1] sm:$0xff]
    %v5861 = vld [vmem:[#allocation1 + $0x9] sm:$0xff]
    %v5862 = vpack.i.b16 %v5860, %v5860
    %v5864 = vperm.slane %v5862, 0
    %v5865 = vpack.i.b16 %v5861, %v5861
    %v5867 = vperm.slane %v5865, 0
    %v5868 = vunpack.c.l.bf16 %v5856
    %v5869 = vunpack.c.h.bf16 %v5856
    %v5870 = vunpack.c.l.bf16 %v5864
    %v5871 = vunpack.c.l.bf16 %v5867
    %v5872 = vadd.f32 %v5868, %v5870
    %v5873 = vadd.f32 %v5869, %v5871
    %v5874 = vpack.c.bf16 %v5873, %v5872
    %v5875 = vunpack.c.l.bf16 %v5874
    %v5876 = vunpack.c.h.bf16 %v5874
    %v5877 = vmul.f32 %v5875, 0.20019531
    %v5878 = vmul.f32 %v5876, 0.20019531
    %v5879 = vpack.c.bf16 %v5878, %v5877
    %v5880 = vunpack.c.l.bf16 %v5879
    %v5881 = vunpack.c.h.bf16 %v5879
    %v5882 = vmax.f32 %v5875, %v5880
    %v5883 = vmax.f32 %v5876, %v5881
    %v5884 = vpack.c.bf16 %v5883, %v5882
    %v5885 = vunpack.c.l.bf16 %v5884
    %v5886 = vunpack.c.h.bf16 %v5884
    %v5887 = vld [vmem:[#allocation14] sm:$0x3]
    %v5889 = vperm.slane %v5887, 0
    %v5890 = vperm.slane %v5887, 1
    %v5893 = vmul.f32 %v5885, %v5889
    %v5894 = vmul.f32 %v5886, %v5890
    %v5895 = vadd.f32 %v5893, %v5894
    %5896 = vadd.xlane.f32.xlu0 %v5895
    %v5897 = vpop.xlane.xlu0 %5896
    %v5898 = vld [vmem:[#allocation2] sm:$0x1]
    %v5900 = vperm.slane %v5898, 0
    %v5902 = vadd.f32 %v5897, %v5900
    %v5903 = vmax.f32 %v5902, -30.0
    %v5904 = vmin.f32 %v5903, 30.0
    %v5905 = vsub.f32 0.0, %v5904
    %v5906 = vmul.f32 %v5905, 1.442695
    %v5907 = vpow.pop %v5906
    %v5908 = vadd.f32 %v5907, 1.0
    %v5909 = vrcp.pop %v5908
    %vm5910 = vcmask 7168
    %5911 = vst.msk [vmem:[%s9] sm:$0xff] %vm5910, %v5909
    // Predicated region
    $region70: #{tpu_custom_call.1} parent=1 // pred_check
      _
    $region71: #{tpu_custom_call.1} parent=1 // pred_check_branch
      %5913 = sbr.rel (0) target = $region73
    $region72: #{tpu_custom_call.1} parent=1 // pred_region
      _
    $region73: #{tpu_custom_call.1} parent=1 // pred_fallthru
      _
    // Predicated region
    $region74: #{tpu_custom_call.1} parent=1 // pred_check
      _
    $region75: #{tpu_custom_call.1} parent=1 // pred_check_branch
      %5915 = sbr.rel (0) target = $region77
    $region76: #{tpu_custom_call.1} parent=1 // pred_region
      _
    $region77: #{tpu_custom_call.1} parent=1 // pred_fallthru
      _
    %5916 = vsyncpa [#allocation4], 1
    %5917 = vsyncpa [#allocation6], 1
    %5918 = vsyncpa [#allocation9], 1
    %5919 = vsyncpa [#allocation12], 1
    %5920 = vsyncpa [#allocation15], 1

</llo_original>
